<compile_context>
chip_gen: v7x
topology: tpu7x:2x2x1
jax: 0.10.0
libtpu: 0.0.40
codegen_flags: <defaults>
</compile_context>

<pallas_src>
import functools

import jax
import jax.numpy as jnp
from jax import lax
from jax.experimental import pallas as pl
from jax.experimental.pallas import tpu as pltpu


def _round_up(x, m):
    return (x + m - 1) // m * m


# ---------------------------------------------------------------------------
# Fused kernel: per-chunk input projection + serial LSTM recurrence
# ---------------------------------------------------------------------------
def _lstm_fused_kernel(x_ref, wih_ref, whh_ref, b_ref, out_ref, cn_ref,
                       gx_scr, h_scr, c_scr, *,
                       hidden_pad, batch_pad, t_chunk, seq_len,
                       mxu_dtype, unroll):
    # x_ref  : (tc*Bp, I)   bf16  chunk of the flattened (Sp*Bp, I) input
    # wih_ref: (I, 4Hp)     bf16  W_ih^T, resident across the grid
    # whh_ref: (Hp, 4Hp)    bf16  W_hh^T, resident across the grid
    # b_ref  : (1, 4Hp)     f32   b_ih + b_hh (per-gate, padded to Hp)
    # out_ref: (tc, Bp, Hp) f32   lstm_out chunk
    # cn_ref : (Bp, Hp)     f32   final cell state (written exactly once)
    # gx_scr : (tc*Bp, 4Hp) f32   x-projection for this chunk (VMEM only)
    # h_scr/c_scr : (Bp, Hp) f32  recurrent state, persists across grid steps
    chunk = pl.program_id(0)
    Hp = hidden_pad
    Bp = batch_pad
    tc = t_chunk

    @pl.when(chunk == 0)
    def _():
        h_scr[...] = jnp.zeros_like(h_scr)
        c_scr[...] = jnp.zeros_like(c_scr)

    # Input projection for the whole chunk in one big-M MXU matmul (M = tc*Bp),
    # off the serial critical path; gates_x never touches HBM.
    gx_scr[...] = (
        jnp.dot(x_ref[...], wih_ref[...], preferred_element_type=jnp.float32)
        + b_ref[...])

    # Global timestep S-1 lands at (chunk == last_chunk, i == last_i).  Padded
    # timesteps after it may run freely (their output rows are sliced off in
    # the wrapper), so no per-step validity selects are needed at all.
    last_chunk = (seq_len - 1) // tc
    last_i = (seq_len - 1) % tc

    def step(i, carry):
        h_prev, c_prev = carry                                   # f32 (Bp, Hp)
        row0 = pl.multiple_of(i * Bp, Bp)
        # Only the recurrent matmul is on the serial critical path.
        gates = gx_scr[pl.ds(row0, Bp), :] + jnp.dot(
            h_prev.astype(mxu_dtype), whh_ref[...],
            preferred_element_type=jnp.float32)                  # (Bp, 4Hp) f32
        # Gate slices are lane-aligned (Hp % 128 == 0): pure VPU/EUP work.
        i_g = jax.nn.sigmoid(gates[:, 0 * Hp:1 * Hp])
        f_g = jax.nn.sigmoid(gates[:, 1 * Hp:2 * Hp])
        g_g = jnp.tanh(gates[:, 2 * Hp:3 * Hp])
        o_g = jax.nn.sigmoid(gates[:, 3 * Hp:4 * Hp])
        c_new = f_g * c_prev + i_g * g_g
        h_new = o_g * jnp.tanh(c_new)
        out_ref[i] = h_new

        # Capture c_n exactly at the last valid timestep: one predicated store
        # total instead of two full-width selects on every timestep.
        @pl.when((chunk == last_chunk) & (i == last_i))
        def _():
            cn_ref[...] = c_new

        return h_new, c_new

    h_fin, c_fin = lax.fori_loop(0, tc, step, (h_scr[...], c_scr[...]),
                                 unroll=unroll)
    h_scr[...] = h_fin
    c_scr[...] = c_fin


# ---------------------------------------------------------------------------
# Wrapper
# ---------------------------------------------------------------------------
def lstm_encoder_forward(x, w_ih, w_hh, b_ih, b_hh, *, t_chunk=16,
                         mxu_dtype=jnp.bfloat16):
    """Forward of the single-layer seq-major lstm_encoder.

    x    : (S, B, I)
    w_ih : (4H, I)  PyTorch weight_ih_l0, gate order (i, f, g, o)
    w_hh : (4H, H)  PyTorch weight_hh_l0
    b_ih, b_hh : (4H,)
    returns (lstm_out (S,B,H) f32, (h_n (1,B,H) f32, c_n (1,B,H) f32))
    """
    S, B, I = x.shape
    H = w_hh.shape[1]
    assert w_ih.shape == (4 * H, I)

    mxu_bytes = jnp.dtype(mxu_dtype).itemsize
    Hp = _round_up(H, 128)                      # lane-aligned gates / output
    # bf16 packs 16 rows per sublane group: pad B to 16 so the per-step LHS
    # (h cast to bf16) and the x rows occupy full packed vregs.
    Bp = _round_up(B, 16 if mxu_bytes < 4 else 8)
    tc = max(1, min(t_chunk, S))                # timesteps per grid step
    Sp = _round_up(S, tc)
    n_chunks = Sp // tc
    # Spill guard: at large Hp the fully unrolled step's live set exceeds the
    # 64-vreg file; lower the unroll factor instead.
    unroll = True if Hp <= 256 else 4

    # --- repack weights: per-gate transpose, each gate's H padded to Hp -----
    def pack_wT(w):                                   # (4H, D) -> (D, 4*Hp)
        D = w.shape[1]
        wg = w.reshape(4, H, D).transpose(0, 2, 1)            # (4, D, H)
        wg = jnp.pad(wg, ((0, 0), (0, 0), (0, Hp - H)))       # (4, D, Hp)
        return wg.transpose(1, 0, 2).reshape(D, 4 * Hp)

    wih_t = pack_wT(w_ih.astype(jnp.float32)).astype(mxu_dtype)       # (I, 4Hp)
    whh_t = pack_wT(w_hh.astype(jnp.float32))                         # (H, 4Hp)
    whh_t = jnp.pad(whh_t, ((0, Hp - H), (0, 0))).astype(mxu_dtype)   # (Hp,4Hp)
    bias = (b_ih + b_hh).astype(jnp.float32).reshape(4, H)
    bias = jnp.pad(bias, ((0, 0), (0, Hp - H))).reshape(1, 4 * Hp)

    # --- pad inputs: S -> Sp (chunking), B -> Bp (sublanes / bf16 packing) --
    x_p = jnp.pad(x.astype(jnp.float32), ((0, Sp - S), (0, Bp - B), (0, 0)))
    x2d = x_p.reshape(Sp * Bp, I).astype(mxu_dtype)

    # --- VMEM budget: actual working set (default double-buffering) + margin,
    #     capped at 48 MiB so the request also fits v7x's 64 MiB per-core VMEM.
    working_set = (
        2 * tc * Bp * I * mxu_bytes            # x chunk (double-buffered)
        + 2 * I * 4 * Hp * mxu_bytes           # W_ih^T (resident)
        + 2 * Hp * 4 * Hp * mxu_bytes          # W_hh^T (resident)
        + 2 * 4 * Hp * 4                       # bias
        + 2 * tc * Bp * Hp * 4                 # lstm_out chunk
        + 2 * Bp * Hp * 4                      # c_n block
        + tc * Bp * 4 * Hp * 4                 # gx scratch
        + 2 * Bp * Hp * 4                      # h / c scratch
    )
    vmem_limit = min(48 * 1024 * 1024, 2 * working_set + 8 * 1024 * 1024)

    kernel = functools.partial(
        _lstm_fused_kernel, hidden_pad=Hp, batch_pad=Bp, t_chunk=tc,
        seq_len=S, mxu_dtype=mxu_dtype, unroll=unroll)

    out_p, cn_p = pl.pallas_call(
        kernel,
        out_shape=(
            jax.ShapeDtypeStruct((Sp, Bp, Hp), jnp.float32),      # lstm_out
            jax.ShapeDtypeStruct((Bp, Hp), jnp.float32),          # c_n
        ),
        grid_spec=pltpu.PrefetchScalarGridSpec(
            num_scalar_prefetch=0,
            grid=(n_chunks,),
            in_specs=[
                pl.BlockSpec((tc * Bp, I), lambda c: (c, 0)),         # x rows
                pl.BlockSpec((I, 4 * Hp), lambda c: (0, 0)),          # W_ih^T
                pl.BlockSpec((Hp, 4 * Hp), lambda c: (0, 0)),         # W_hh^T
                pl.BlockSpec((1, 4 * Hp), lambda c: (0, 0)),          # bias
            ],
            out_specs=(
                pl.BlockSpec((tc, Bp, Hp), lambda c: (c, 0, 0)),
                pl.BlockSpec((Bp, Hp), lambda c: (0, 0)),
            ),
            scratch_shapes=[
                pltpu.VMEM((tc * Bp, 4 * Hp), jnp.float32),  # gx chunk (VMEM only)
                pltpu.VMEM((Bp, Hp), jnp.float32),           # h state
                pltpu.VMEM((Bp, Hp), jnp.float32),           # c state (always f32)
            ],
        ),
        compiler_params=pltpu.CompilerParams(
            dimension_semantics=("arbitrary",),       # sequential recurrence
            vmem_limit_bytes=int(vmem_limit)),
    )(x2d, wih_t, whh_t, bias)

    lstm_out = out_p[:S, :B, :H]
    h_n = lstm_out[S - 1:S]                 # (1, B, H) final hidden state
    c_n = cn_p[:B, :H][None]                # (1, B, H) final cell state
    return lstm_out, (h_n, c_n)


# ---------------------------------------------------------------------------
# Pure-JAX reference (PyTorch nn.LSTM semantics, gate order i, f, g, o)
# ---------------------------------------------------------------------------
def _lstm_reference(x, w_ih, w_hh, b_ih, b_hh):
    S, B, I = x.shape
    H = w_hh.shape[1]
    wih_t = w_ih.T
    whh_t = w_hh.T
    b = b_ih + b_hh

    def step(carry, x_t):
        h, c = carry
        gates = x_t @ wih_t + h @ whh_t + b
        i = jax.nn.sigmoid(gates[:, 0 * H:1 * H])
        f = jax.nn.sigmoid(gates[:, 1 * H:2 * H])
        g = jnp.tanh(gates[:, 2 * H:3 * H])
        o = jax.nn.sigmoid(gates[:, 3 * H:4 * H])
        c_new = f * c + i * g
        h_new = o * jnp.tanh(c_new)
        return (h_new, c_new), h_new

    init = (jnp.zeros((B, H), jnp.float32), jnp.zeros((B, H), jnp.float32))
    (h_n, c_n), out = lax.scan(step, init, x)
    return out, (h_n[None], c_n[None])


if __name__ == "__main__":
    # Small shapes consistent with the module: x_input (seq, batch, input_size)
    S, B, I, H = 8, 2, 16, 32

    key = jax.random.PRNGKey(0)
    kx, k1, k2, k3, k4 = jax.random.split(key, 5)

    bound = 1.0 / (H ** 0.5)   # PyTorch nn.LSTM init: U(-1/sqrt(H), 1/sqrt(H))
    w_ih = jax.random.uniform(k1, (4 * H, I), jnp.float32, -bound, bound)
    w_hh = jax.random.uniform(k2, (4 * H, H), jnp.float32, -bound, bound)
    b_ih = jax.random.uniform(k3, (4 * H,), jnp.float32, -bound, bound)
    b_hh = jax.random.uniform(k4, (4 * H,), jnp.float32, -bound, bound)
    x = jax.random.normal(kx, (S, B, I), jnp.float32)

    lstm_out, (h_n, c_n) = jax.jit(lstm_encoder_forward)(x, w_ih, w_hh,
                                                         b_ih, b_hh)
    jax.block_until_ready((lstm_out, h_n, c_n))

    ref_out, (ref_h, ref_c) = _lstm_reference(x, w_ih, w_hh, b_ih, b_hh)
    assert lstm_out.shape == (S, B, H) and lstm_out.dtype == jnp.float32
    assert h_n.shape == (1, B, H) and c_n.shape == (1, B, H)
    # bf16 MXU operands with f32 accumulation / f32 cell state: tolerance ~2e-2
    assert jnp.allclose(lstm_out, ref_out, atol=2e-2, rtol=2e-2)
    assert jnp.allclose(h_n, ref_h, atol=2e-2, rtol=2e-2)
    assert jnp.allclose(c_n, ref_c, atol=2e-2, rtol=2e-2)

    print("KERNEL_OK")
</pallas_src>

<mosaic_0001>
module attributes {stable_mosaic.version = 11 : i64} {
  func.func @_lstm_fused_kernel(%arg0: i32, %arg1: memref<128x16xbf16, #tpu.memory_space<vmem>>, %arg2: memref<16x512xbf16, #tpu.memory_space<vmem>>, %arg3: memref<128x512xbf16, #tpu.memory_space<vmem>>, %arg4: memref<1x512xf32, #tpu.memory_space<vmem>>, %arg5: memref<8x16x128xf32, #tpu.memory_space<vmem>>, %arg6: memref<16x128xf32, #tpu.memory_space<vmem>>, %arg7: memref<128x512xf32, #tpu.memory_space<vmem>>, %arg8: memref<16x128xf32, #tpu.memory_space<vmem>>, %arg9: memref<16x128xf32, #tpu.memory_space<vmem>>) attributes {dimension_semantics = [#tpu.dimension_semantics<arbitrary>], iteration_bounds = array<i64: 1>, scalar_prefetch = 0 : i64, scratch_operands = 3 : i64, tpu.core_type = #tpu.core_type<tc>, window_params = [{transform_indices = @transform_0, window_bounds = array<i64: 128, 16>}, {pipeline_mode = #tpu.pipeline_mode<synchronous>, transform_indices = @transform_1, window_bounds = array<i64: 16, 512>}, {pipeline_mode = #tpu.pipeline_mode<synchronous>, transform_indices = @transform_2, window_bounds = array<i64: 128, 512>}, {pipeline_mode = #tpu.pipeline_mode<synchronous>, transform_indices = @transform_3, window_bounds = array<i64: 1, 512>}, {transform_indices = @transform_4, window_bounds = array<i64: 8, 16, 128>}, {pipeline_mode = #tpu.pipeline_mode<synchronous>, transform_indices = @transform_5, window_bounds = array<i64: 16, 128>}]} {
    %c0_i32 = arith.constant 0 : i32
    %0 = arith.cmpi eq, %arg0, %c0_i32 : i32
    %1 = arith.extui %0 : i1 to i32
    %c0_i32_0 = arith.constant 0 : i32
    %2 = arith.cmpi ne, %1, %c0_i32_0 : i32
    scf.if %2 {
      %cst_120 = arith.constant 0.000000e+00 : f32
      %350 = vector.broadcast %cst_120 : f32 to vector<16x128xf32>
      %c0_121 = arith.constant 0 : index
      %c0_122 = arith.constant 0 : index
      %351 = vector.load %arg8[%c0_121, %c0_122] : memref<16x128xf32, #tpu.memory_space<vmem>>, vector<16x128xf32>
      tpu.vector_store %arg8[%c0_121, %c0_122], %350 {strides = array<i32>} : memref<16x128xf32, #tpu.memory_space<vmem>>, vector<16x128xf32>,
      %cst_123 = arith.constant 0.000000e+00 : f32
      %352 = vector.broadcast %cst_123 : f32 to vector<16x128xf32>
      %c0_124 = arith.constant 0 : index
      %c0_125 = arith.constant 0 : index
      %353 = vector.load %arg9[%c0_124, %c0_125] : memref<16x128xf32, #tpu.memory_space<vmem>>, vector<16x128xf32>
      tpu.vector_store %arg9[%c0_124, %c0_125], %352 {strides = array<i32>} : memref<16x128xf32, #tpu.memory_space<vmem>>, vector<16x128xf32>,
    } else {
    }
    %c0 = arith.constant 0 : index
    %c0_1 = arith.constant 0 : index
    %3 = vector.load %arg1[%c0, %c0_1] : memref<128x16xbf16, #tpu.memory_space<vmem>>, vector<128x16xbf16>
    %c0_2 = arith.constant 0 : index
    %c0_3 = arith.constant 0 : index
    %4 = vector.load %arg2[%c0_2, %c0_3] : memref<16x512xbf16, #tpu.memory_space<vmem>>, vector<16x512xbf16>
    %cst = arith.constant dense<0.000000e+00> : vector<128x512xf32>
    %5 = tpu.matmul %3, %4, %cst {dimension_numbers = #tpu.dot_dimension_numbers<[1], [0], [0], [1], [0, 0, 1, 1], [], []>} : vector<128x16xbf16>, vector<16x512xbf16>, vector<128x512xf32> -> vector<128x512xf32>
    %c0_4 = arith.constant 0 : index
    %c0_5 = arith.constant 0 : index
    %6 = vector.load %arg4[%c0_4, %c0_5] : memref<1x512xf32, #tpu.memory_space<vmem>>, vector<1x512xf32>
    %7 = vector.broadcast %6 : vector<1x512xf32> to vector<128x512xf32>
    %8 = arith.addf %5, %7 : vector<128x512xf32>
    %c0_6 = arith.constant 0 : index
    %c0_7 = arith.constant 0 : index
    %9 = vector.load %arg7[%c0_6, %c0_7] : memref<128x512xf32, #tpu.memory_space<vmem>>, vector<128x512xf32>
    tpu.vector_store %arg7[%c0_6, %c0_7], %8 {strides = array<i32>} : memref<128x512xf32, #tpu.memory_space<vmem>>, vector<128x512xf32>,
    %c0_8 = arith.constant 0 : index
    %c0_9 = arith.constant 0 : index
    %10 = vector.load %arg8[%c0_8, %c0_9] : memref<16x128xf32, #tpu.memory_space<vmem>>, vector<16x128xf32>
    %c0_10 = arith.constant 0 : index
    %c0_11 = arith.constant 0 : index
    %11 = vector.load %arg9[%c0_10, %c0_11] : memref<16x128xf32, #tpu.memory_space<vmem>>, vector<16x128xf32>
    %c0_i32_12 = arith.constant 0 : i32
    %c16_i32 = arith.constant 16 : i32
    %12 = arith.muli %c0_i32_12, %c16_i32 : i32
    %13 = tpu.assume_multiple %12, 16 : i32
    %14 = arith.index_cast %13 : i32 to index
    %c0_13 = arith.constant 0 : index
    %15 = vector.load %arg7[%14, %c0_13] : memref<128x512xf32, #tpu.memory_space<vmem>>, vector<16x512xf32>
    %16 = arith.truncf %10 : vector<16x128xf32> to vector<16x128xbf16>
    %c0_14 = arith.constant 0 : index
    %c0_15 = arith.constant 0 : index
    %17 = vector.load %arg3[%c0_14, %c0_15] : memref<128x512xbf16, #tpu.memory_space<vmem>>, vector<128x512xbf16>
    %cst_16 = arith.constant dense<0.000000e+00> : vector<16x512xf32>
    %18 = tpu.matmul %16, %17, %cst_16 {dimension_numbers = #tpu.dot_dimension_numbers<[1], [0], [0], [1], [0, 0, 1, 1], [], []>} : vector<16x128xbf16>, vector<128x512xbf16>, vector<16x512xf32> -> vector<16x512xf32>
    %19 = arith.addf %15, %18 : vector<16x512xf32>
    %20 = vector.extract_strided_slice %19 {offsets = [0, 0], sizes = [16, 128], strides = [1, 1]} : vector<16x512xf32> to vector<16x128xf32>
    %21 = arith.negf %20 : vector<16x128xf32>
    %22 = math.exp %21 : vector<16x128xf32>
    %cst_17 = arith.constant 1.000000e+00 : f32
    %23 = vector.broadcast %cst_17 : f32 to vector<16x128xf32>
    %24 = arith.addf %23, %22 : vector<16x128xf32>
    %25 = arith.divf %23, %24 : vector<16x128xf32>
    %26 = vector.extract_strided_slice %19 {offsets = [0, 128], sizes = [16, 128], strides = [1, 1]} : vector<16x512xf32> to vector<16x128xf32>
    %27 = arith.negf %26 : vector<16x128xf32>
    %28 = math.exp %27 : vector<16x128xf32>
    %cst_18 = arith.constant 1.000000e+00 : f32
    %29 = vector.broadcast %cst_18 : f32 to vector<16x128xf32>
    %30 = arith.addf %29, %28 : vector<16x128xf32>
    %31 = arith.divf %29, %30 : vector<16x128xf32>
    %32 = vector.extract_strided_slice %19 {offsets = [0, 256], sizes = [16, 128], strides = [1, 1]} : vector<16x512xf32> to vector<16x128xf32>
    %33 = math.tanh %32 : vector<16x128xf32>
    %34 = vector.extract_strided_slice %19 {offsets = [0, 384], sizes = [16, 128], strides = [1, 1]} : vector<16x512xf32> to vector<16x128xf32>
    %35 = arith.negf %34 : vector<16x128xf32>
    %36 = math.exp %35 : vector<16x128xf32>
    %cst_19 = arith.constant 1.000000e+00 : f32
    %37 = vector.broadcast %cst_19 : f32 to vector<16x128xf32>
    %38 = arith.addf %37, %36 : vector<16x128xf32>
    %39 = arith.divf %37, %38 : vector<16x128xf32>
    %40 = arith.mulf %31, %11 : vector<16x128xf32>
    %41 = arith.mulf %25, %33 : vector<16x128xf32>
    %42 = arith.addf %40, %41 : vector<16x128xf32>
    %43 = math.tanh %42 : vector<16x128xf32>
    %44 = arith.mulf %39, %43 : vector<16x128xf32>
    %45 = arith.index_cast %c0_i32_12 : i32 to index
    %c0_20 = arith.constant 0 : index
    %c0_21 = arith.constant 0 : index
    %46 = vector.load %arg5[%45, %c0_20, %c0_21] : memref<8x16x128xf32, #tpu.memory_space<vmem>>, vector<1x16x128xf32>
    %47 = vector.shape_cast %46 : vector<1x16x128xf32> to vector<16x128xf32>
    %48 = vector.shape_cast %44 : vector<16x128xf32> to vector<1x16x128xf32>
    tpu.vector_store %arg5[%45, %c0_20, %c0_21], %48 {strides = array<i32>} : memref<8x16x128xf32, #tpu.memory_space<vmem>>, vector<1x16x128xf32>,
    %c0_i32_22 = arith.constant 0 : i32
    %49 = arith.cmpi eq, %arg0, %c0_i32_22 : i32
    %c7_i32 = arith.constant 7 : i32
    %50 = arith.cmpi eq, %c0_i32_12, %c7_i32 : i32
    %51 = arith.andi %49, %50 : i1
    %52 = arith.extui %51 : i1 to i32
    %c0_i32_23 = arith.constant 0 : i32
    %53 = arith.cmpi ne, %52, %c0_i32_23 : i32
    scf.if %53 {
      %c0_120 = arith.constant 0 : index
      %c0_121 = arith.constant 0 : index
      %350 = vector.load %arg6[%c0_120, %c0_121] : memref<16x128xf32, #tpu.memory_space<vmem>>, vector<16x128xf32>
      tpu.vector_store %arg6[%c0_120, %c0_121], %42 {strides = array<i32>} : memref<16x128xf32, #tpu.memory_space<vmem>>, vector<16x128xf32>,
    } else {
    }
    %c1_i32 = arith.constant 1 : i32
    %c16_i32_24 = arith.constant 16 : i32
    %54 = arith.muli %c1_i32, %c16_i32_24 : i32
    %55 = tpu.assume_multiple %54, 16 : i32
    %56 = arith.index_cast %55 : i32 to index
    %c0_25 = arith.constant 0 : index
    %57 = vector.load %arg7[%56, %c0_25] : memref<128x512xf32, #tpu.memory_space<vmem>>, vector<16x512xf32>
    %58 = arith.truncf %44 : vector<16x128xf32> to vector<16x128xbf16>
    %c0_26 = arith.constant 0 : index
    %c0_27 = arith.constant 0 : index
    %59 = vector.load %arg3[%c0_26, %c0_27] : memref<128x512xbf16, #tpu.memory_space<vmem>>, vector<128x512xbf16>
    %cst_28 = arith.constant dense<0.000000e+00> : vector<16x512xf32>
    %60 = tpu.matmul %58, %59, %cst_28 {dimension_numbers = #tpu.dot_dimension_numbers<[1], [0], [0], [1], [0, 0, 1, 1], [], []>} : vector<16x128xbf16>, vector<128x512xbf16>, vector<16x512xf32> -> vector<16x512xf32>
    %61 = arith.addf %57, %60 : vector<16x512xf32>
    %62 = vector.extract_strided_slice %61 {offsets = [0, 0], sizes = [16, 128], strides = [1, 1]} : vector<16x512xf32> to vector<16x128xf32>
    %63 = arith.negf %62 : vector<16x128xf32>
    %64 = math.exp %63 : vector<16x128xf32>
    %cst_29 = arith.constant 1.000000e+00 : f32
    %65 = vector.broadcast %cst_29 : f32 to vector<16x128xf32>
    %66 = arith.addf %65, %64 : vector<16x128xf32>
    %67 = arith.divf %65, %66 : vector<16x128xf32>
    %68 = vector.extract_strided_slice %61 {offsets = [0, 128], sizes = [16, 128], strides = [1, 1]} : vector<16x512xf32> to vector<16x128xf32>
    %69 = arith.negf %68 : vector<16x128xf32>
    %70 = math.exp %69 : vector<16x128xf32>
    %cst_30 = arith.constant 1.000000e+00 : f32
    %71 = vector.broadcast %cst_30 : f32 to vector<16x128xf32>
    %72 = arith.addf %71, %70 : vector<16x128xf32>
    %73 = arith.divf %71, %72 : vector<16x128xf32>
    %74 = vector.extract_strided_slice %61 {offsets = [0, 256], sizes = [16, 128], strides = [1, 1]} : vector<16x512xf32> to vector<16x128xf32>
    %75 = math.tanh %74 : vector<16x128xf32>
    %76 = vector.extract_strided_slice %61 {offsets = [0, 384], sizes = [16, 128], strides = [1, 1]} : vector<16x512xf32> to vector<16x128xf32>
    %77 = arith.negf %76 : vector<16x128xf32>
    %78 = math.exp %77 : vector<16x128xf32>
    %cst_31 = arith.constant 1.000000e+00 : f32
    %79 = vector.broadcast %cst_31 : f32 to vector<16x128xf32>
    %80 = arith.addf %79, %78 : vector<16x128xf32>
    %81 = arith.divf %79, %80 : vector<16x128xf32>
    %82 = arith.mulf %73, %42 : vector<16x128xf32>
    %83 = arith.mulf %67, %75 : vector<16x128xf32>
    %84 = arith.addf %82, %83 : vector<16x128xf32>
    %85 = math.tanh %84 : vector<16x128xf32>
    %86 = arith.mulf %81, %85 : vector<16x128xf32>
    %87 = arith.index_cast %c1_i32 : i32 to index
    %c0_32 = arith.constant 0 : index
    %c0_33 = arith.constant 0 : index
    %88 = vector.load %arg5[%87, %c0_32, %c0_33] : memref<8x16x128xf32, #tpu.memory_space<vmem>>, vector<1x16x128xf32>
    %89 = vector.shape_cast %88 : vector<1x16x128xf32> to vector<16x128xf32>
    %90 = vector.shape_cast %86 : vector<16x128xf32> to vector<1x16x128xf32>
    tpu.vector_store %arg5[%87, %c0_32, %c0_33], %90 {strides = array<i32>} : memref<8x16x128xf32, #tpu.memory_space<vmem>>, vector<1x16x128xf32>,
    %c0_i32_34 = arith.constant 0 : i32
    %91 = arith.cmpi eq, %arg0, %c0_i32_34 : i32
    %c7_i32_35 = arith.constant 7 : i32
    %92 = arith.cmpi eq, %c1_i32, %c7_i32_35 : i32
    %93 = arith.andi %91, %92 : i1
    %94 = arith.extui %93 : i1 to i32
    %c0_i32_36 = arith.constant 0 : i32
    %95 = arith.cmpi ne, %94, %c0_i32_36 : i32
    scf.if %95 {
      %c0_120 = arith.constant 0 : index
      %c0_121 = arith.constant 0 : index
      %350 = vector.load %arg6[%c0_120, %c0_121] : memref<16x128xf32, #tpu.memory_space<vmem>>, vector<16x128xf32>
      tpu.vector_store %arg6[%c0_120, %c0_121], %84 {strides = array<i32>} : memref<16x128xf32, #tpu.memory_space<vmem>>, vector<16x128xf32>,
    } else {
    }
    %c2_i32 = arith.constant 2 : i32
    %c16_i32_37 = arith.constant 16 : i32
    %96 = arith.muli %c2_i32, %c16_i32_37 : i32
    %97 = tpu.assume_multiple %96, 16 : i32
    %98 = arith.index_cast %97 : i32 to index
    %c0_38 = arith.constant 0 : index
    %99 = vector.load %arg7[%98, %c0_38] : memref<128x512xf32, #tpu.memory_space<vmem>>, vector<16x512xf32>
    %100 = arith.truncf %86 : vector<16x128xf32> to vector<16x128xbf16>
    %c0_39 = arith.constant 0 : index
    %c0_40 = arith.constant 0 : index
    %101 = vector.load %arg3[%c0_39, %c0_40] : memref<128x512xbf16, #tpu.memory_space<vmem>>, vector<128x512xbf16>
    %cst_41 = arith.constant dense<0.000000e+00> : vector<16x512xf32>
    %102 = tpu.matmul %100, %101, %cst_41 {dimension_numbers = #tpu.dot_dimension_numbers<[1], [0], [0], [1], [0, 0, 1, 1], [], []>} : vector<16x128xbf16>, vector<128x512xbf16>, vector<16x512xf32> -> vector<16x512xf32>
    %103 = arith.addf %99, %102 : vector<16x512xf32>
    %104 = vector.extract_strided_slice %103 {offsets = [0, 0], sizes = [16, 128], strides = [1, 1]} : vector<16x512xf32> to vector<16x128xf32>
    %105 = arith.negf %104 : vector<16x128xf32>
    %106 = math.exp %105 : vector<16x128xf32>
    %cst_42 = arith.constant 1.000000e+00 : f32
    %107 = vector.broadcast %cst_42 : f32 to vector<16x128xf32>
    %108 = arith.addf %107, %106 : vector<16x128xf32>
    %109 = arith.divf %107, %108 : vector<16x128xf32>
    %110 = vector.extract_strided_slice %103 {offsets = [0, 128], sizes = [16, 128], strides = [1, 1]} : vector<16x512xf32> to vector<16x128xf32>
    %111 = arith.negf %110 : vector<16x128xf32>
    %112 = math.exp %111 : vector<16x128xf32>
    %cst_43 = arith.constant 1.000000e+00 : f32
    %113 = vector.broadcast %cst_43 : f32 to vector<16x128xf32>
    %114 = arith.addf %113, %112 : vector<16x128xf32>
    %115 = arith.divf %113, %114 : vector<16x128xf32>
    %116 = vector.extract_strided_slice %103 {offsets = [0, 256], sizes = [16, 128], strides = [1, 1]} : vector<16x512xf32> to vector<16x128xf32>
    %117 = math.tanh %116 : vector<16x128xf32>
    %118 = vector.extract_strided_slice %103 {offsets = [0, 384], sizes = [16, 128], strides = [1, 1]} : vector<16x512xf32> to vector<16x128xf32>
    %119 = arith.negf %118 : vector<16x128xf32>
    %120 = math.exp %119 : vector<16x128xf32>
    %cst_44 = arith.constant 1.000000e+00 : f32
    %121 = vector.broadcast %cst_44 : f32 to vector<16x128xf32>
    %122 = arith.addf %121, %120 : vector<16x128xf32>
    %123 = arith.divf %121, %122 : vector<16x128xf32>
    %124 = arith.mulf %115, %84 : vector<16x128xf32>
    %125 = arith.mulf %109, %117 : vector<16x128xf32>
    %126 = arith.addf %124, %125 : vector<16x128xf32>
    %127 = math.tanh %126 : vector<16x128xf32>
    %128 = arith.mulf %123, %127 : vector<16x128xf32>
    %129 = arith.index_cast %c2_i32 : i32 to index
    %c0_45 = arith.constant 0 : index
    %c0_46 = arith.constant 0 : index
    %130 = vector.load %arg5[%129, %c0_45, %c0_46] : memref<8x16x128xf32, #tpu.memory_space<vmem>>, vector<1x16x128xf32>
    %131 = vector.shape_cast %130 : vector<1x16x128xf32> to vector<16x128xf32>
    %132 = vector.shape_cast %128 : vector<16x128xf32> to vector<1x16x128xf32>
    tpu.vector_store %arg5[%129, %c0_45, %c0_46], %132 {strides = array<i32>} : memref<8x16x128xf32, #tpu.memory_space<vmem>>, vector<1x16x128xf32>,
    %c0_i32_47 = arith.constant 0 : i32
    %133 = arith.cmpi eq, %arg0, %c0_i32_47 : i32
    %c7_i32_48 = arith.constant 7 : i32
    %134 = arith.cmpi eq, %c2_i32, %c7_i32_48 : i32
    %135 = arith.andi %133, %134 : i1
    %136 = arith.extui %135 : i1 to i32
    %c0_i32_49 = arith.constant 0 : i32
    %137 = arith.cmpi ne, %136, %c0_i32_49 : i32
    scf.if %137 {
      %c0_120 = arith.constant 0 : index
      %c0_121 = arith.constant 0 : index
      %350 = vector.load %arg6[%c0_120, %c0_121] : memref<16x128xf32, #tpu.memory_space<vmem>>, vector<16x128xf32>
      tpu.vector_store %arg6[%c0_120, %c0_121], %126 {strides = array<i32>} : memref<16x128xf32, #tpu.memory_space<vmem>>, vector<16x128xf32>,
    } else {
    }
    %c3_i32 = arith.constant 3 : i32
    %c16_i32_50 = arith.constant 16 : i32
    %138 = arith.muli %c3_i32, %c16_i32_50 : i32
    %139 = tpu.assume_multiple %138, 16 : i32
    %140 = arith.index_cast %139 : i32 to index
    %c0_51 = arith.constant 0 : index
    %141 = vector.load %arg7[%140, %c0_51] : memref<128x512xf32, #tpu.memory_space<vmem>>, vector<16x512xf32>
    %142 = arith.truncf %128 : vector<16x128xf32> to vector<16x128xbf16>
    %c0_52 = arith.constant 0 : index
    %c0_53 = arith.constant 0 : index
    %143 = vector.load %arg3[%c0_52, %c0_53] : memref<128x512xbf16, #tpu.memory_space<vmem>>, vector<128x512xbf16>
    %cst_54 = arith.constant dense<0.000000e+00> : vector<16x512xf32>
    %144 = tpu.matmul %142, %143, %cst_54 {dimension_numbers = #tpu.dot_dimension_numbers<[1], [0], [0], [1], [0, 0, 1, 1], [], []>} : vector<16x128xbf16>, vector<128x512xbf16>, vector<16x512xf32> -> vector<16x512xf32>
    %145 = arith.addf %141, %144 : vector<16x512xf32>
    %146 = vector.extract_strided_slice %145 {offsets = [0, 0], sizes = [16, 128], strides = [1, 1]} : vector<16x512xf32> to vector<16x128xf32>
    %147 = arith.negf %146 : vector<16x128xf32>
    %148 = math.exp %147 : vector<16x128xf32>
    %cst_55 = arith.constant 1.000000e+00 : f32
    %149 = vector.broadcast %cst_55 : f32 to vector<16x128xf32>
    %150 = arith.addf %149, %148 : vector<16x128xf32>
    %151 = arith.divf %149, %150 : vector<16x128xf32>
    %152 = vector.extract_strided_slice %145 {offsets = [0, 128], sizes = [16, 128], strides = [1, 1]} : vector<16x512xf32> to vector<16x128xf32>
    %153 = arith.negf %152 : vector<16x128xf32>
    %154 = math.exp %153 : vector<16x128xf32>
    %cst_56 = arith.constant 1.000000e+00 : f32
    %155 = vector.broadcast %cst_56 : f32 to vector<16x128xf32>
    %156 = arith.addf %155, %154 : vector<16x128xf32>
    %157 = arith.divf %155, %156 : vector<16x128xf32>
    %158 = vector.extract_strided_slice %145 {offsets = [0, 256], sizes = [16, 128], strides = [1, 1]} : vector<16x512xf32> to vector<16x128xf32>
    %159 = math.tanh %158 : vector<16x128xf32>
    %160 = vector.extract_strided_slice %145 {offsets = [0, 384], sizes = [16, 128], strides = [1, 1]} : vector<16x512xf32> to vector<16x128xf32>
    %161 = arith.negf %160 : vector<16x128xf32>
    %162 = math.exp %161 : vector<16x128xf32>
    %cst_57 = arith.constant 1.000000e+00 : f32
    %163 = vector.broadcast %cst_57 : f32 to vector<16x128xf32>
    %164 = arith.addf %163, %162 : vector<16x128xf32>
    %165 = arith.divf %163, %164 : vector<16x128xf32>
    %166 = arith.mulf %157, %126 : vector<16x128xf32>
    %167 = arith.mulf %151, %159 : vector<16x128xf32>
    %168 = arith.addf %166, %167 : vector<16x128xf32>
    %169 = math.tanh %168 : vector<16x128xf32>
    %170 = arith.mulf %165, %169 : vector<16x128xf32>
    %171 = arith.index_cast %c3_i32 : i32 to index
    %c0_58 = arith.constant 0 : index
    %c0_59 = arith.constant 0 : index
    %172 = vector.load %arg5[%171, %c0_58, %c0_59] : memref<8x16x128xf32, #tpu.memory_space<vmem>>, vector<1x16x128xf32>
    %173 = vector.shape_cast %172 : vector<1x16x128xf32> to vector<16x128xf32>
    %174 = vector.shape_cast %170 : vector<16x128xf32> to vector<1x16x128xf32>
    tpu.vector_store %arg5[%171, %c0_58, %c0_59], %174 {strides = array<i32>} : memref<8x16x128xf32, #tpu.memory_space<vmem>>, vector<1x16x128xf32>,
    %c0_i32_60 = arith.constant 0 : i32
    %175 = arith.cmpi eq, %arg0, %c0_i32_60 : i32
    %c7_i32_61 = arith.constant 7 : i32
    %176 = arith.cmpi eq, %c3_i32, %c7_i32_61 : i32
    %177 = arith.andi %175, %176 : i1
    %178 = arith.extui %177 : i1 to i32
    %c0_i32_62 = arith.constant 0 : i32
    %179 = arith.cmpi ne, %178, %c0_i32_62 : i32
    scf.if %179 {
      %c0_120 = arith.constant 0 : index
      %c0_121 = arith.constant 0 : index
      %350 = vector.load %arg6[%c0_120, %c0_121] : memref<16x128xf32, #tpu.memory_space<vmem>>, vector<16x128xf32>
      tpu.vector_store %arg6[%c0_120, %c0_121], %168 {strides = array<i32>} : memref<16x128xf32, #tpu.memory_space<vmem>>, vector<16x128xf32>,
    } else {
    }
    %c4_i32 = arith.constant 4 : i32
    %c16_i32_63 = arith.constant 16 : i32
    %180 = arith.muli %c4_i32, %c16_i32_63 : i32
    %181 = tpu.assume_multiple %180, 16 : i32
    %182 = arith.index_cast %181 : i32 to index
    %c0_64 = arith.constant 0 : index
    %183 = vector.load %arg7[%182, %c0_64] : memref<128x512xf32, #tpu.memory_space<vmem>>, vector<16x512xf32>
    %184 = arith.truncf %170 : vector<16x128xf32> to vector<16x128xbf16>
    %c0_65 = arith.constant 0 : index
    %c0_66 = arith.constant 0 : index
    %185 = vector.load %arg3[%c0_65, %c0_66] : memref<128x512xbf16, #tpu.memory_space<vmem>>, vector<128x512xbf16>
    %cst_67 = arith.constant dense<0.000000e+00> : vector<16x512xf32>
    %186 = tpu.matmul %184, %185, %cst_67 {dimension_numbers = #tpu.dot_dimension_numbers<[1], [0], [0], [1], [0, 0, 1, 1], [], []>} : vector<16x128xbf16>, vector<128x512xbf16>, vector<16x512xf32> -> vector<16x512xf32>
    %187 = arith.addf %183, %186 : vector<16x512xf32>
    %188 = vector.extract_strided_slice %187 {offsets = [0, 0], sizes = [16, 128], strides = [1, 1]} : vector<16x512xf32> to vector<16x128xf32>
    %189 = arith.negf %188 : vector<16x128xf32>
    %190 = math.exp %189 : vector<16x128xf32>
    %cst_68 = arith.constant 1.000000e+00 : f32
    %191 = vector.broadcast %cst_68 : f32 to vector<16x128xf32>
    %192 = arith.addf %191, %190 : vector<16x128xf32>
    %193 = arith.divf %191, %192 : vector<16x128xf32>
    %194 = vector.extract_strided_slice %187 {offsets = [0, 128], sizes = [16, 128], strides = [1, 1]} : vector<16x512xf32> to vector<16x128xf32>
    %195 = arith.negf %194 : vector<16x128xf32>
    %196 = math.exp %195 : vector<16x128xf32>
    %cst_69 = arith.constant 1.000000e+00 : f32
    %197 = vector.broadcast %cst_69 : f32 to vector<16x128xf32>
    %198 = arith.addf %197, %196 : vector<16x128xf32>
    %199 = arith.divf %197, %198 : vector<16x128xf32>
    %200 = vector.extract_strided_slice %187 {offsets = [0, 256], sizes = [16, 128], strides = [1, 1]} : vector<16x512xf32> to vector<16x128xf32>
    %201 = math.tanh %200 : vector<16x128xf32>
    %202 = vector.extract_strided_slice %187 {offsets = [0, 384], sizes = [16, 128], strides = [1, 1]} : vector<16x512xf32> to vector<16x128xf32>
    %203 = arith.negf %202 : vector<16x128xf32>
    %204 = math.exp %203 : vector<16x128xf32>
    %cst_70 = arith.constant 1.000000e+00 : f32
    %205 = vector.broadcast %cst_70 : f32 to vector<16x128xf32>
    %206 = arith.addf %205, %204 : vector<16x128xf32>
    %207 = arith.divf %205, %206 : vector<16x128xf32>
    %208 = arith.mulf %199, %168 : vector<16x128xf32>
    %209 = arith.mulf %193, %201 : vector<16x128xf32>
    %210 = arith.addf %208, %209 : vector<16x128xf32>
    %211 = math.tanh %210 : vector<16x128xf32>
    %212 = arith.mulf %207, %211 : vector<16x128xf32>
    %213 = arith.index_cast %c4_i32 : i32 to index
    %c0_71 = arith.constant 0 : index
    %c0_72 = arith.constant 0 : index
    %214 = vector.load %arg5[%213, %c0_71, %c0_72] : memref<8x16x128xf32, #tpu.memory_space<vmem>>, vector<1x16x128xf32>
    %215 = vector.shape_cast %214 : vector<1x16x128xf32> to vector<16x128xf32>
    %216 = vector.shape_cast %212 : vector<16x128xf32> to vector<1x16x128xf32>
    tpu.vector_store %arg5[%213, %c0_71, %c0_72], %216 {strides = array<i32>} : memref<8x16x128xf32, #tpu.memory_space<vmem>>, vector<1x16x128xf32>,
    %c0_i32_73 = arith.constant 0 : i32
    %217 = arith.cmpi eq, %arg0, %c0_i32_73 : i32
    %c7_i32_74 = arith.constant 7 : i32
    %218 = arith.cmpi eq, %c4_i32, %c7_i32_74 : i32
    %219 = arith.andi %217, %218 : i1
    %220 = arith.extui %219 : i1 to i32
    %c0_i32_75 = arith.constant 0 : i32
    %221 = arith.cmpi ne, %220, %c0_i32_75 : i32
    scf.if %221 {
      %c0_120 = arith.constant 0 : index
      %c0_121 = arith.constant 0 : index
      %350 = vector.load %arg6[%c0_120, %c0_121] : memref<16x128xf32, #tpu.memory_space<vmem>>, vector<16x128xf32>
      tpu.vector_store %arg6[%c0_120, %c0_121], %210 {strides = array<i32>} : memref<16x128xf32, #tpu.memory_space<vmem>>, vector<16x128xf32>,
    } else {
    }
    %c5_i32 = arith.constant 5 : i32
    %c16_i32_76 = arith.constant 16 : i32
    %222 = arith.muli %c5_i32, %c16_i32_76 : i32
    %223 = tpu.assume_multiple %222, 16 : i32
    %224 = arith.index_cast %223 : i32 to index
    %c0_77 = arith.constant 0 : index
    %225 = vector.load %arg7[%224, %c0_77] : memref<128x512xf32, #tpu.memory_space<vmem>>, vector<16x512xf32>
    %226 = arith.truncf %212 : vector<16x128xf32> to vector<16x128xbf16>
    %c0_78 = arith.constant 0 : index
    %c0_79 = arith.constant 0 : index
    %227 = vector.load %arg3[%c0_78, %c0_79] : memref<128x512xbf16, #tpu.memory_space<vmem>>, vector<128x512xbf16>
    %cst_80 = arith.constant dense<0.000000e+00> : vector<16x512xf32>
    %228 = tpu.matmul %226, %227, %cst_80 {dimension_numbers = #tpu.dot_dimension_numbers<[1], [0], [0], [1], [0, 0, 1, 1], [], []>} : vector<16x128xbf16>, vector<128x512xbf16>, vector<16x512xf32> -> vector<16x512xf32>
    %229 = arith.addf %225, %228 : vector<16x512xf32>
    %230 = vector.extract_strided_slice %229 {offsets = [0, 0], sizes = [16, 128], strides = [1, 1]} : vector<16x512xf32> to vector<16x128xf32>
    %231 = arith.negf %230 : vector<16x128xf32>
    %232 = math.exp %231 : vector<16x128xf32>
    %cst_81 = arith.constant 1.000000e+00 : f32
    %233 = vector.broadcast %cst_81 : f32 to vector<16x128xf32>
    %234 = arith.addf %233, %232 : vector<16x128xf32>
    %235 = arith.divf %233, %234 : vector<16x128xf32>
    %236 = vector.extract_strided_slice %229 {offsets = [0, 128], sizes = [16, 128], strides = [1, 1]} : vector<16x512xf32> to vector<16x128xf32>
    %237 = arith.negf %236 : vector<16x128xf32>
    %238 = math.exp %237 : vector<16x128xf32>
    %cst_82 = arith.constant 1.000000e+00 : f32
    %239 = vector.broadcast %cst_82 : f32 to vector<16x128xf32>
    %240 = arith.addf %239, %238 : vector<16x128xf32>
    %241 = arith.divf %239, %240 : vector<16x128xf32>
    %242 = vector.extract_strided_slice %229 {offsets = [0, 256], sizes = [16, 128], strides = [1, 1]} : vector<16x512xf32> to vector<16x128xf32>
    %243 = math.tanh %242 : vector<16x128xf32>
    %244 = vector.extract_strided_slice %229 {offsets = [0, 384], sizes = [16, 128], strides = [1, 1]} : vector<16x512xf32> to vector<16x128xf32>
    %245 = arith.negf %244 : vector<16x128xf32>
    %246 = math.exp %245 : vector<16x128xf32>
    %cst_83 = arith.constant 1.000000e+00 : f32
    %247 = vector.broadcast %cst_83 : f32 to vector<16x128xf32>
    %248 = arith.addf %247, %246 : vector<16x128xf32>
    %249 = arith.divf %247, %248 : vector<16x128xf32>
    %250 = arith.mulf %241, %210 : vector<16x128xf32>
    %251 = arith.mulf %235, %243 : vector<16x128xf32>
    %252 = arith.addf %250, %251 : vector<16x128xf32>
    %253 = math.tanh %252 : vector<16x128xf32>
    %254 = arith.mulf %249, %253 : vector<16x128xf32>
    %255 = arith.index_cast %c5_i32 : i32 to index
    %c0_84 = arith.constant 0 : index
    %c0_85 = arith.constant 0 : index
    %256 = vector.load %arg5[%255, %c0_84, %c0_85] : memref<8x16x128xf32, #tpu.memory_space<vmem>>, vector<1x16x128xf32>
    %257 = vector.shape_cast %256 : vector<1x16x128xf32> to vector<16x128xf32>
    %258 = vector.shape_cast %254 : vector<16x128xf32> to vector<1x16x128xf32>
    tpu.vector_store %arg5[%255, %c0_84, %c0_85], %258 {strides = array<i32>} : memref<8x16x128xf32, #tpu.memory_space<vmem>>, vector<1x16x128xf32>,
    %c0_i32_86 = arith.constant 0 : i32
    %259 = arith.cmpi eq, %arg0, %c0_i32_86 : i32
    %c7_i32_87 = arith.constant 7 : i32
    %260 = arith.cmpi eq, %c5_i32, %c7_i32_87 : i32
    %261 = arith.andi %259, %260 : i1
    %262 = arith.extui %261 : i1 to i32
    %c0_i32_88 = arith.constant 0 : i32
    %263 = arith.cmpi ne, %262, %c0_i32_88 : i32
    scf.if %263 {
      %c0_120 = arith.constant 0 : index
      %c0_121 = arith.constant 0 : index
      %350 = vector.load %arg6[%c0_120, %c0_121] : memref<16x128xf32, #tpu.memory_space<vmem>>, vector<16x128xf32>
      tpu.vector_store %arg6[%c0_120, %c0_121], %252 {strides = array<i32>} : memref<16x128xf32, #tpu.memory_space<vmem>>, vector<16x128xf32>,
    } else {
    }
    %c6_i32 = arith.constant 6 : i32
    %c16_i32_89 = arith.constant 16 : i32
    %264 = arith.muli %c6_i32, %c16_i32_89 : i32
    %265 = tpu.assume_multiple %264, 16 : i32
    %266 = arith.index_cast %265 : i32 to index
    %c0_90 = arith.constant 0 : index
    %267 = vector.load %arg7[%266, %c0_90] : memref<128x512xf32, #tpu.memory_space<vmem>>, vector<16x512xf32>
    %268 = arith.truncf %254 : vector<16x128xf32> to vector<16x128xbf16>
    %c0_91 = arith.constant 0 : index
    %c0_92 = arith.constant 0 : index
    %269 = vector.load %arg3[%c0_91, %c0_92] : memref<128x512xbf16, #tpu.memory_space<vmem>>, vector<128x512xbf16>
    %cst_93 = arith.constant dense<0.000000e+00> : vector<16x512xf32>
    %270 = tpu.matmul %268, %269, %cst_93 {dimension_numbers = #tpu.dot_dimension_numbers<[1], [0], [0], [1], [0, 0, 1, 1], [], []>} : vector<16x128xbf16>, vector<128x512xbf16>, vector<16x512xf32> -> vector<16x512xf32>
    %271 = arith.addf %267, %270 : vector<16x512xf32>
    %272 = vector.extract_strided_slice %271 {offsets = [0, 0], sizes = [16, 128], strides = [1, 1]} : vector<16x512xf32> to vector<16x128xf32>
    %273 = arith.negf %272 : vector<16x128xf32>
    %274 = math.exp %273 : vector<16x128xf32>
    %cst_94 = arith.constant 1.000000e+00 : f32
    %275 = vector.broadcast %cst_94 : f32 to vector<16x128xf32>
    %276 = arith.addf %275, %274 : vector<16x128xf32>
    %277 = arith.divf %275, %276 : vector<16x128xf32>
    %278 = vector.extract_strided_slice %271 {offsets = [0, 128], sizes = [16, 128], strides = [1, 1]} : vector<16x512xf32> to vector<16x128xf32>
    %279 = arith.negf %278 : vector<16x128xf32>
    %280 = math.exp %279 : vector<16x128xf32>
    %cst_95 = arith.constant 1.000000e+00 : f32
    %281 = vector.broadcast %cst_95 : f32 to vector<16x128xf32>
    %282 = arith.addf %281, %280 : vector<16x128xf32>
    %283 = arith.divf %281, %282 : vector<16x128xf32>
    %284 = vector.extract_strided_slice %271 {offsets = [0, 256], sizes = [16, 128], strides = [1, 1]} : vector<16x512xf32> to vector<16x128xf32>
    %285 = math.tanh %284 : vector<16x128xf32>
    %286 = vector.extract_strided_slice %271 {offsets = [0, 384], sizes = [16, 128], strides = [1, 1]} : vector<16x512xf32> to vector<16x128xf32>
    %287 = arith.negf %286 : vector<16x128xf32>
    %288 = math.exp %287 : vector<16x128xf32>
    %cst_96 = arith.constant 1.000000e+00 : f32
    %289 = vector.broadcast %cst_96 : f32 to vector<16x128xf32>
    %290 = arith.addf %289, %288 : vector<16x128xf32>
    %291 = arith.divf %289, %290 : vector<16x128xf32>
    %292 = arith.mulf %283, %252 : vector<16x128xf32>
    %293 = arith.mulf %277, %285 : vector<16x128xf32>
    %294 = arith.addf %292, %293 : vector<16x128xf32>
    %295 = math.tanh %294 : vector<16x128xf32>
    %296 = arith.mulf %291, %295 : vector<16x128xf32>
    %297 = arith.index_cast %c6_i32 : i32 to index
    %c0_97 = arith.constant 0 : index
    %c0_98 = arith.constant 0 : index
    %298 = vector.load %arg5[%297, %c0_97, %c0_98] : memref<8x16x128xf32, #tpu.memory_space<vmem>>, vector<1x16x128xf32>
    %299 = vector.shape_cast %298 : vector<1x16x128xf32> to vector<16x128xf32>
    %300 = vector.shape_cast %296 : vector<16x128xf32> to vector<1x16x128xf32>
    tpu.vector_store %arg5[%297, %c0_97, %c0_98], %300 {strides = array<i32>} : memref<8x16x128xf32, #tpu.memory_space<vmem>>, vector<1x16x128xf32>,
    %c0_i32_99 = arith.constant 0 : i32
    %301 = arith.cmpi eq, %arg0, %c0_i32_99 : i32
    %c7_i32_100 = arith.constant 7 : i32
    %302 = arith.cmpi eq, %c6_i32, %c7_i32_100 : i32
    %303 = arith.andi %301, %302 : i1
    %304 = arith.extui %303 : i1 to i32
    %c0_i32_101 = arith.constant 0 : i32
    %305 = arith.cmpi ne, %304, %c0_i32_101 : i32
    scf.if %305 {
      %c0_120 = arith.constant 0 : index
      %c0_121 = arith.constant 0 : index
      %350 = vector.load %arg6[%c0_120, %c0_121] : memref<16x128xf32, #tpu.memory_space<vmem>>, vector<16x128xf32>
      tpu.vector_store %arg6[%c0_120, %c0_121], %294 {strides = array<i32>} : memref<16x128xf32, #tpu.memory_space<vmem>>, vector<16x128xf32>,
    } else {
    }
    %c7_i32_102 = arith.constant 7 : i32
    %c16_i32_103 = arith.constant 16 : i32
    %306 = arith.muli %c7_i32_102, %c16_i32_103 : i32
    %307 = tpu.assume_multiple %306, 16 : i32
    %308 = arith.index_cast %307 : i32 to index
    %c0_104 = arith.constant 0 : index
    %309 = vector.load %arg7[%308, %c0_104] : memref<128x512xf32, #tpu.memory_space<vmem>>, vector<16x512xf32>
    %310 = arith.truncf %296 : vector<16x128xf32> to vector<16x128xbf16>
    %c0_105 = arith.constant 0 : index
    %c0_106 = arith.constant 0 : index
    %311 = vector.load %arg3[%c0_105, %c0_106] : memref<128x512xbf16, #tpu.memory_space<vmem>>, vector<128x512xbf16>
    %cst_107 = arith.constant dense<0.000000e+00> : vector<16x512xf32>
    %312 = tpu.matmul %310, %311, %cst_107 {dimension_numbers = #tpu.dot_dimension_numbers<[1], [0], [0], [1], [0, 0, 1, 1], [], []>} : vector<16x128xbf16>, vector<128x512xbf16>, vector<16x512xf32> -> vector<16x512xf32>
    %313 = arith.addf %309, %312 : vector<16x512xf32>
    %314 = vector.extract_strided_slice %313 {offsets = [0, 0], sizes = [16, 128], strides = [1, 1]} : vector<16x512xf32> to vector<16x128xf32>
    %315 = arith.negf %314 : vector<16x128xf32>
    %316 = math.exp %315 : vector<16x128xf32>
    %cst_108 = arith.constant 1.000000e+00 : f32
    %317 = vector.broadcast %cst_108 : f32 to vector<16x128xf32>
    %318 = arith.addf %317, %316 : vector<16x128xf32>
    %319 = arith.divf %317, %318 : vector<16x128xf32>
    %320 = vector.extract_strided_slice %313 {offsets = [0, 128], sizes = [16, 128], strides = [1, 1]} : vector<16x512xf32> to vector<16x128xf32>
    %321 = arith.negf %320 : vector<16x128xf32>
    %322 = math.exp %321 : vector<16x128xf32>
    %cst_109 = arith.constant 1.000000e+00 : f32
    %323 = vector.broadcast %cst_109 : f32 to vector<16x128xf32>
    %324 = arith.addf %323, %322 : vector<16x128xf32>
    %325 = arith.divf %323, %324 : vector<16x128xf32>
    %326 = vector.extract_strided_slice %313 {offsets = [0, 256], sizes = [16, 128], strides = [1, 1]} : vector<16x512xf32> to vector<16x128xf32>
    %327 = math.tanh %326 : vector<16x128xf32>
    %328 = vector.extract_strided_slice %313 {offsets = [0, 384], sizes = [16, 128], strides = [1, 1]} : vector<16x512xf32> to vector<16x128xf32>
    %329 = arith.negf %328 : vector<16x128xf32>
    %330 = math.exp %329 : vector<16x128xf32>
    %cst_110 = arith.constant 1.000000e+00 : f32
    %331 = vector.broadcast %cst_110 : f32 to vector<16x128xf32>
    %332 = arith.addf %331, %330 : vector<16x128xf32>
    %333 = arith.divf %331, %332 : vector<16x128xf32>
    %334 = arith.mulf %325, %294 : vector<16x128xf32>
    %335 = arith.mulf %319, %327 : vector<16x128xf32>
    %336 = arith.addf %334, %335 : vector<16x128xf32>
    %337 = math.tanh %336 : vector<16x128xf32>
    %338 = arith.mulf %333, %337 : vector<16x128xf32>
    %339 = arith.index_cast %c7_i32_102 : i32 to index
    %c0_111 = arith.constant 0 : index
    %c0_112 = arith.constant 0 : index
    %340 = vector.load %arg5[%339, %c0_111, %c0_112] : memref<8x16x128xf32, #tpu.memory_space<vmem>>, vector<1x16x128xf32>
    %341 = vector.shape_cast %340 : vector<1x16x128xf32> to vector<16x128xf32>
    %342 = vector.shape_cast %338 : vector<16x128xf32> to vector<1x16x128xf32>
    tpu.vector_store %arg5[%339, %c0_111, %c0_112], %342 {strides = array<i32>} : memref<8x16x128xf32, #tpu.memory_space<vmem>>, vector<1x16x128xf32>,
    %c0_i32_113 = arith.constant 0 : i32
    %343 = arith.cmpi eq, %arg0, %c0_i32_113 : i32
    %c7_i32_114 = arith.constant 7 : i32
    %344 = arith.cmpi eq, %c7_i32_102, %c7_i32_114 : i32
    %345 = arith.andi %343, %344 : i1
    %346 = arith.extui %345 : i1 to i32
    %c0_i32_115 = arith.constant 0 : i32
    %347 = arith.cmpi ne, %346, %c0_i32_115 : i32
    scf.if %347 {
      %c0_120 = arith.constant 0 : index
      %c0_121 = arith.constant 0 : index
      %350 = vector.load %arg6[%c0_120, %c0_121] : memref<16x128xf32, #tpu.memory_space<vmem>>, vector<16x128xf32>
      tpu.vector_store %arg6[%c0_120, %c0_121], %336 {strides = array<i32>} : memref<16x128xf32, #tpu.memory_space<vmem>>, vector<16x128xf32>,
    } else {
    }
    %c8_i32 = arith.constant 8 : i32
    %c0_116 = arith.constant 0 : index
    %c0_117 = arith.constant 0 : index
    %348 = vector.load %arg8[%c0_116, %c0_117] : memref<16x128xf32, #tpu.memory_space<vmem>>, vector<16x128xf32>
    tpu.vector_store %arg8[%c0_116, %c0_117], %338 {strides = array<i32>} : memref<16x128xf32, #tpu.memory_space<vmem>>, vector<16x128xf32>,
    %c0_118 = arith.constant 0 : index
    %c0_119 = arith.constant 0 : index
    %349 = vector.load %arg9[%c0_118, %c0_119] : memref<16x128xf32, #tpu.memory_space<vmem>>, vector<16x128xf32>
    tpu.vector_store %arg9[%c0_118, %c0_119], %336 {strides = array<i32>} : memref<16x128xf32, #tpu.memory_space<vmem>>, vector<16x128xf32>,
    return
  }
  func.func @transform_0(%arg0: i32) -> (i32, i32) {
    %c0_i32 = arith.constant 0 : i32
    %c0_i32_0 = arith.constant 0 : i32
    return %arg0, %c0_i32 : i32, i32
  }
  func.func @transform_1(%arg0: i32) -> (i32, i32) {
    %c0_i32 = arith.constant 0 : i32
    %c0_i32_0 = arith.constant 0 : i32
    %c0_i32_1 = arith.constant 0 : i32
    return %c0_i32, %c0_i32_0 : i32, i32
  }
  func.func @transform_2(%arg0: i32) -> (i32, i32) {
    %c0_i32 = arith.constant 0 : i32
    %c0_i32_0 = arith.constant 0 : i32
    %c0_i32_1 = arith.constant 0 : i32
    return %c0_i32, %c0_i32_0 : i32, i32
  }
  func.func @transform_3(%arg0: i32) -> (i32, i32) {
    %c0_i32 = arith.constant 0 : i32
    %c0_i32_0 = arith.constant 0 : i32
    %c0_i32_1 = arith.constant 0 : i32
    return %c0_i32, %c0_i32_0 : i32, i32
  }
  func.func @transform_4(%arg0: i32) -> (i32, i32, i32) {
    %c0_i32 = arith.constant 0 : i32
    %c0_i32_0 = arith.constant 0 : i32
    %c0_i32_1 = arith.constant 0 : i32
    return %arg0, %c0_i32, %c0_i32_0 : i32, i32, i32
  }
  func.func @transform_5(%arg0: i32) -> (i32, i32) {
    %c0_i32 = arith.constant 0 : i32
    %c0_i32_0 = arith.constant 0 : i32
    %c0_i32_1 = arith.constant 0 : i32
    return %c0_i32, %c0_i32_0 : i32, i32
  }
}

</mosaic_0001>

<llo_original>
// kernel: lstm_encoder_forward.1
$region0: #{lstm_encoder_forward.1}
  #allocation0 [shape = 'u32[]', space=smem, size = 0x4, offset = 0x4, fixed_abs, tag = 'smem constant byte address 0x4 - core index']
  #allocation1 [shape = 'u32[144,128]{1,0:T(1,128)}', space=vmem, size = 0x12000, scoped, tag = 'internal scratch']
  #allocation2 [shape = 'f32[128,512]{1,0:T(8,128)}', space=vmem, size = 0x40000, scoped, tag = 'scratch operand']
  #allocation3 [shape = 'f32[16,128]{1,0:T(8,128)}', space=vmem, size = 0x2000, scoped, tag = 'scratch operand']
  #allocation4 [shape = 'f32[16,128]{1,0:T(8,128)}', space=vmem, size = 0x2000, scoped, tag = 'scratch operand']
  %s0 = inlined_call_operand.vmem [shape: bf16[128,16], index: 0, kind: input, shape index: {}]
  %s1 = inlined_call_operand.vmem [shape: bf16[16,512], index: 1, kind: input, shape index: {}]
  %s2 = inlined_call_operand.vmem [shape: bf16[128,512], index: 2, kind: input, shape index: {}]
  %s3 = inlined_call_operand.vmem [shape: f32[1,512], index: 3, kind: input, shape index: {}]
  %s4 = inlined_call_operand.vmem [shape: f32[8,16,128], index: 4, kind: output, shape index: {0}]
  %s5 = inlined_call_operand.vmem [shape: f32[16,128], index: 5, kind: output, shape index: {1}]
  %6 = xla_tuple %s4, %s5
  %s7 = sld [smem:[#allocation0]]
  $region42: #{lstm_encoder_forward.1} parent=0
    _
  %s9 = ssub.s32 1, %s7
  %s10 = scalar_select 0, %s9, %s7
  // Predicated region
  $region2: #{lstm_encoder_forward.1} parent=0 // pred_check
    _
  $region3: #{lstm_encoder_forward.1} parent=0 // pred_check_branch
    %12 = sbr.rel (0) target = $region5
  $region4: #{lstm_encoder_forward.1} parent=0 // pred_region
    _
  $region5: #{lstm_encoder_forward.1} parent=0 // pred_fallthru
    _
  // Predicated region
  $region6: #{lstm_encoder_forward.1} parent=0 // pred_check
    _
  $region7: #{lstm_encoder_forward.1} parent=0 // pred_check_branch
    %14 = sbr.rel (0) target = $region9
  $region8: #{lstm_encoder_forward.1} parent=0 // pred_region
    _
  $region9: #{lstm_encoder_forward.1} parent=0 // pred_fallthru
    _
  // Predicated region
  $region10: #{lstm_encoder_forward.1} parent=0 // pred_check
    _
  $region11: #{lstm_encoder_forward.1} parent=0 // pred_check_branch
    %16 = sbr.rel (0) target = $region13
  $region12: #{lstm_encoder_forward.1} parent=0 // pred_region
    _
  $region13: #{lstm_encoder_forward.1} parent=0 // pred_fallthru
    _
  // Predicated region
  $region14: #{lstm_encoder_forward.1} parent=0 // pred_check
    _
  $region15: #{lstm_encoder_forward.1} parent=0 // pred_check_branch
    %18 = sbr.rel (0) target = $region17
  $region16: #{lstm_encoder_forward.1} parent=0 // pred_region
    _
  $region17: #{lstm_encoder_forward.1} parent=0 // pred_fallthru
    _
  %p20 = scmp.eq.s32.totalorder 0, 0
  // Predicated region
  $region18: #{lstm_encoder_forward.1} parent=0 // pred_check
    %p21 = pneg %p20
  $region19: #{lstm_encoder_forward.1} parent=0 // pred_check_branch
    %23 = sbr.rel (%p21) target = $region21
  $region20: #{lstm_encoder_forward.1} parent=0 // pred_region
    %24 = vst [vmem:[#allocation3] sm:$0xff] 0.0
    %25 = vst [vmem:[#allocation3 + $0x8] sm:$0xff] 0.0
    %26 = vst [vmem:[#allocation4] sm:$0xff] 0.0
    %27 = vst [vmem:[#allocation4 + $0x8] sm:$0xff] 0.0
  $region21: #{lstm_encoder_forward.1} parent=0 // pred_fallthru
    _
  %v28 = vld [vmem:[%s0] sm:$0xf]
  %v29 = vld [vmem:[%s0 + $0x4] sm:$0xf]
  %v30 = vld [vmem:[%s0 + $0x8] sm:$0xf]
  %v31 = vld [vmem:[%s0 + $0xc] sm:$0xf]
  %v32 = vld [vmem:[%s0 + $0x10] sm:$0xf]
  %v33 = vld [vmem:[%s0 + $0x14] sm:$0xf]
  %v34 = vld [vmem:[%s0 + $0x18] sm:$0xf]
  %v35 = vld [vmem:[%s0 + $0x1c] sm:$0xf]
  %v36 = vld [vmem:[%s0 + $0x20] sm:$0xf]
  %v37 = vld [vmem:[%s0 + $0x24] sm:$0xf]
  %v38 = vld [vmem:[%s0 + $0x28] sm:$0xf]
  %v39 = vld [vmem:[%s0 + $0x2c] sm:$0xf]
  %v40 = vld [vmem:[%s0 + $0x30] sm:$0xf]
  %v41 = vld [vmem:[%s0 + $0x34] sm:$0xf]
  %v42 = vld [vmem:[%s0 + $0x38] sm:$0xf]
  %v43 = vld [vmem:[%s0 + $0x3c] sm:$0xf]
  %v44 = vld [vmem:[%s1] sm:$0xff]
  %v45 = vld [vmem:[%s1 + $0x8] sm:$0xff]
  %v46 = vld [vmem:[%s1 + $0x10] sm:$0xff]
  %v47 = vld [vmem:[%s1 + $0x18] sm:$0xff]
  %v48 = vld [vmem:[%s3] sm:$0xf]
  %v50 = vlaneseq
  %v51 = vshrl.u32 %v50, 7
  %v52 = vsub.s32 0, %v51
  %v53 = vrot.slane %v48, %v52
  %v54 = vlaneseq
  %v55 = vshrl.u32 %v54, 7
  %v56 = vsub.s32 1, %v55
  %v57 = vrot.slane %v48, %v56
  %v58 = vlaneseq
  %v59 = vshrl.u32 %v58, 7
  %v60 = vsub.s32 2, %v59
  %v61 = vrot.slane %v48, %v60
  %v62 = vlaneseq
  %v63 = vshrl.u32 %v62, 7
  %v64 = vsub.s32 3, %v63
  %v65 = vrot.slane %v48, %v64
  %v86 = vunpack.c.l.b16 %v28
  %v87 = vunpack.c.l.b16 %v29
  %v88 = vunpack.c.l.b16 %v30
  %v89 = vunpack.c.l.b16 %v31
  %v90 = vunpack.c.l.b16 %v32
  %v91 = vunpack.c.l.b16 %v33
  %v92 = vunpack.c.l.b16 %v34
  %v93 = vunpack.c.l.b16 %v35
  %v94 = vunpack.c.l.b16 %v36
  %v95 = vunpack.c.l.b16 %v37
  %v96 = vunpack.c.l.b16 %v38
  %v97 = vunpack.c.l.b16 %v39
  %v98 = vunpack.c.l.b16 %v40
  %v99 = vunpack.c.l.b16 %v41
  %v100 = vunpack.c.l.b16 %v42
  %v101 = vunpack.c.l.b16 %v43
  %v102 = vpack.c.b16 %v87, %v86
  %v103 = vpack.c.b16 %v89, %v88
  %v104 = vpack.c.b16 %v91, %v90
  %v105 = vpack.c.b16 %v93, %v92
  %v106 = vpack.c.b16 %v95, %v94
  %v107 = vpack.c.b16 %v97, %v96
  %v108 = vpack.c.b16 %v99, %v98
  %v109 = vpack.c.b16 %v101, %v100
  %v114 = vunpack.c.l.b16 %v44
  %v115 = vunpack.c.h.b16 %v44
  %v116 = vunpack.c.l.b16 %v45
  %v117 = vunpack.c.h.b16 %v45
  %v118 = vunpack.c.l.b16 %v46
  %v119 = vunpack.c.h.b16 %v46
  %v120 = vunpack.c.l.b16 %v47
  %v121 = vunpack.c.h.b16 %v47
  %v122 = vpack.c.b16 %v118, %v114
  %v123 = vpack.c.b16 %v119, %v115
  %v124 = vpack.c.b16 %v120, %v116
  %v125 = vpack.c.b16 %v121, %v117
  %vm130 = vcmask 130048
  %v132 = vsel %vm130, %v102, 0
  %v135 = vsel %vm130, %v103, 0
  %v138 = vsel %vm130, %v104, 0
  %v141 = vsel %vm130, %v105, 0
  %v144 = vsel %vm130, %v106, 0
  %v147 = vsel %vm130, %v107, 0
  %v150 = vsel %vm130, %v108, 0
  %v153 = vsel %vm130, %v109, 0
  %155 = vmatprep.subr.bf16.mxu0 %v123
  %156 = vmatpush1.bf16.msra.mxu0 %v122
  %157 = vmatprep.subr.bf16.mxu0 0
  %158 = vmatpush1.bf16.msra.mxu0 0
  %159 = vmatprep.subr.bf16.mxu0 0
  %160 = vmatpush1.bf16.msra.mxu0 0
  %161 = vmatprep.subr.bf16.mxu0 0
  %162 = vmatpush1.bf16.msra.mxu0 0
  %163 = vmatprep.subr.bf16.mxu0 0
  %164 = vmatpush1.bf16.msra.mxu0 0
  %165 = vmatprep.subr.bf16.mxu0 0
  %166 = vmatpush1.bf16.msra.mxu0 0
  %167 = vmatprep.subr.bf16.mxu0 0
  %168 = vmatpush1.bf16.msra.mxu0 0
  %169 = vmatprep.subr.bf16.mxu0 0
  %170 = vmatpush1.bf16.msra.mxu0 0
  %171 = vmatprep.subr.bf16.mxu0 0
  %172 = vmatpush1.bf16.msra.mxu0 0
  %173 = vmatprep.subr.bf16.mxu0 0
  %174 = vmatpush1.bf16.msra.mxu0 0
  %175 = vmatprep.subr.bf16.mxu0 0
  %176 = vmatpush1.bf16.msra.mxu0 0
  %177 = vmatprep.subr.bf16.mxu0 0
  %178 = vmatpush1.bf16.msra.mxu0 0
  %179 = vmatprep.subr.bf16.mxu0 0
  %180 = vmatpush1.bf16.msra.mxu0 0
  %181 = vmatprep.subr.bf16.mxu0 0
  %182 = vmatpush1.bf16.msra.mxu0 0
  %183 = vmatprep.subr.bf16.mxu0 0
  %184 = vmatpush1.bf16.msra.mxu0 0
  %185 = vmatprep.subr.bf16.mxu0 0
  %186 = vmatpush1.bf16.msra.mxu0 0
  %187 = vmatprep.mubr.bf16.mxu0 0
  %188 = vmatmul.mubr.bf16.gmra.mrb[0].mxu0 %v132
  %v189 = vpop.f32.mrb[0].mxu0
  %v190 = vadd.f32 %v53, %v189
  %v191 = vpop.f32.mrb[0].mxu0
  %v192 = vadd.f32 %v57, %v191
  %v193 = vpop.f32.mrb[0].mxu0
  %v194 = vadd.f32 %v53, %v193
  %v195 = vpop.f32.mrb[0].mxu0
  %v196 = vadd.f32 %v57, %v195
  %197 = vmatprep.mubr.bf16.mxu0 0
  %198 = vmatmul.mubr.bf16.gmra.mrb[0].mxu0 %v135
  %v199 = vpop.f32.mrb[0].mxu0
  %v200 = vadd.f32 %v53, %v199
  %v201 = vpop.f32.mrb[0].mxu0
  %v202 = vadd.f32 %v57, %v201
  %v203 = vpop.f32.mrb[0].mxu0
  %v204 = vadd.f32 %v53, %v203
  %v205 = vpop.f32.mrb[0].mxu0
  %v206 = vadd.f32 %v57, %v205
  %207 = vmatprep.mubr.bf16.mxu0 0
  %208 = vmatmul.mubr.bf16.gmra.mrb[0].mxu0 %v138
  %v209 = vpop.f32.mrb[0].mxu0
  %v210 = vadd.f32 %v53, %v209
  %v211 = vpop.f32.mrb[0].mxu0
  %v212 = vadd.f32 %v57, %v211
  %v213 = vpop.f32.mrb[0].mxu0
  %v214 = vadd.f32 %v53, %v213
  %v215 = vpop.f32.mrb[0].mxu0
  %v216 = vadd.f32 %v57, %v215
  %217 = vmatprep.mubr.bf16.mxu0 0
  %218 = vmatmul.mubr.bf16.gmra.mrb[0].mxu0 %v141
  %v219 = vpop.f32.mrb[0].mxu0
  %v220 = vadd.f32 %v53, %v219
  %v221 = vpop.f32.mrb[0].mxu0
  %v222 = vadd.f32 %v57, %v221
  %v223 = vpop.f32.mrb[0].mxu0
  %v224 = vadd.f32 %v53, %v223
  %v225 = vpop.f32.mrb[0].mxu0
  %v226 = vadd.f32 %v57, %v225
  %227 = vmatprep.mubr.bf16.mxu0 0
  %228 = vmatmul.mubr.bf16.gmra.mrb[0].mxu0 %v144
  %v229 = vpop.f32.mrb[0].mxu0
  %v230 = vadd.f32 %v53, %v229
  %v231 = vpop.f32.mrb[0].mxu0
  %v232 = vadd.f32 %v57, %v231
  %v233 = vpop.f32.mrb[0].mxu0
  %v234 = vadd.f32 %v53, %v233
  %v235 = vpop.f32.mrb[0].mxu0
  %v236 = vadd.f32 %v57, %v235
  %237 = vmatprep.mubr.bf16.mxu0 0
  %238 = vmatmul.mubr.bf16.gmra.mrb[0].mxu0 %v147
  %v239 = vpop.f32.mrb[0].mxu0
  %v240 = vadd.f32 %v53, %v239
  %v241 = vpop.f32.mrb[0].mxu0
  %v242 = vadd.f32 %v57, %v241
  %v243 = vpop.f32.mrb[0].mxu0
  %v244 = vadd.f32 %v53, %v243
  %v245 = vpop.f32.mrb[0].mxu0
  %v246 = vadd.f32 %v57, %v245
  %247 = vmatprep.mubr.bf16.mxu0 0
  %248 = vmatmul.mubr.bf16.gmra.mrb[0].mxu0 %v150
  %v249 = vpop.f32.mrb[0].mxu0
  %v250 = vadd.f32 %v53, %v249
  %v251 = vpop.f32.mrb[0].mxu0
  %v252 = vadd.f32 %v57, %v251
  %v253 = vpop.f32.mrb[0].mxu0
  %v254 = vadd.f32 %v53, %v253
  %v255 = vpop.f32.mrb[0].mxu0
  %v256 = vadd.f32 %v57, %v255
  %257 = vmatprep.mubr.bf16.mxu0 0
  %258 = vmatmul.mubr.bf16.gmra.mrb[0].mxu0 %v153
  %v259 = vpop.f32.mrb[0].mxu0
  %v260 = vadd.f32 %v53, %v259
  %v261 = vpop.f32.mrb[0].mxu0
  %v262 = vadd.f32 %v57, %v261
  %v263 = vpop.f32.mrb[0].mxu0
  %v264 = vadd.f32 %v53, %v263
  %v265 = vpop.f32.mrb[0].mxu0
  %v266 = vadd.f32 %v57, %v265
  %267 = vdwg.mxu0
  %268 = vmatprep.subr.bf16.mxu0 %v125
  %269 = vmatpush1.bf16.msra.mxu0 %v124
  %270 = vmatprep.subr.bf16.mxu0 0
  %271 = vmatpush1.bf16.msra.mxu0 0
  %272 = vmatprep.subr.bf16.mxu0 0
  %273 = vmatpush1.bf16.msra.mxu0 0
  %274 = vmatprep.subr.bf16.mxu0 0
  %275 = vmatpush1.bf16.msra.mxu0 0
  %276 = vmatprep.subr.bf16.mxu0 0
  %277 = vmatpush1.bf16.msra.mxu0 0
  %278 = vmatprep.subr.bf16.mxu0 0
  %279 = vmatpush1.bf16.msra.mxu0 0
  %280 = vmatprep.subr.bf16.mxu0 0
  %281 = vmatpush1.bf16.msra.mxu0 0
  %282 = vmatprep.subr.bf16.mxu0 0
  %283 = vmatpush1.bf16.msra.mxu0 0
  %284 = vmatprep.subr.bf16.mxu0 0
  %285 = vmatpush1.bf16.msra.mxu0 0
  %286 = vmatprep.subr.bf16.mxu0 0
  %287 = vmatpush1.bf16.msra.mxu0 0
  %288 = vmatprep.subr.bf16.mxu0 0
  %289 = vmatpush1.bf16.msra.mxu0 0
  %290 = vmatprep.subr.bf16.mxu0 0
  %291 = vmatpush1.bf16.msra.mxu0 0
  %292 = vmatprep.subr.bf16.mxu0 0
  %293 = vmatpush1.bf16.msra.mxu0 0
  %294 = vmatprep.subr.bf16.mxu0 0
  %295 = vmatpush1.bf16.msra.mxu0 0
  %296 = vmatprep.subr.bf16.mxu0 0
  %297 = vmatpush1.bf16.msra.mxu0 0
  %298 = vmatprep.subr.bf16.mxu0 0
  %299 = vmatpush1.bf16.msra.mxu0 0
  %300 = vmatprep.mubr.bf16.mxu0 0
  %301 = vmatmul.mubr.bf16.gmra.mrb[0].mxu0 %v132
  %v302 = vpop.f32.mrb[0].mxu0
  %v303 = vadd.f32 %v61, %v302
  %v304 = vpop.f32.mrb[0].mxu0
  %v305 = vadd.f32 %v65, %v304
  %v306 = vpop.f32.mrb[0].mxu0
  %v307 = vadd.f32 %v61, %v306
  %v308 = vpop.f32.mrb[0].mxu0
  %v309 = vadd.f32 %v65, %v308
  %310 = vmatprep.mubr.bf16.mxu0 0
  %311 = vmatmul.mubr.bf16.gmra.mrb[0].mxu0 %v135
  %v312 = vpop.f32.mrb[0].mxu0
  %v313 = vadd.f32 %v61, %v312
  %v314 = vpop.f32.mrb[0].mxu0
  %v315 = vadd.f32 %v65, %v314
  %v316 = vpop.f32.mrb[0].mxu0
  %v317 = vadd.f32 %v61, %v316
  %v318 = vpop.f32.mrb[0].mxu0
  %v319 = vadd.f32 %v65, %v318
  %320 = vmatprep.mubr.bf16.mxu0 0
  %321 = vmatmul.mubr.bf16.gmra.mrb[0].mxu0 %v138
  %v322 = vpop.f32.mrb[0].mxu0
  %v323 = vadd.f32 %v61, %v322
  %v324 = vpop.f32.mrb[0].mxu0
  %v325 = vadd.f32 %v65, %v324
  %v326 = vpop.f32.mrb[0].mxu0
  %v327 = vadd.f32 %v61, %v326
  %v328 = vpop.f32.mrb[0].mxu0
  %v329 = vadd.f32 %v65, %v328
  %330 = vmatprep.mubr.bf16.mxu0 0
  %331 = vmatmul.mubr.bf16.gmra.mrb[0].mxu0 %v141
  %v332 = vpop.f32.mrb[0].mxu0
  %v333 = vadd.f32 %v61, %v332
  %v334 = vpop.f32.mrb[0].mxu0
  %v335 = vadd.f32 %v65, %v334
  %v336 = vpop.f32.mrb[0].mxu0
  %v337 = vadd.f32 %v61, %v336
  %v338 = vpop.f32.mrb[0].mxu0
  %v339 = vadd.f32 %v65, %v338
  %340 = vmatprep.mubr.bf16.mxu0 0
  %341 = vmatmul.mubr.bf16.gmra.mrb[0].mxu0 %v144
  %v342 = vpop.f32.mrb[0].mxu0
  %v343 = vadd.f32 %v61, %v342
  %v344 = vpop.f32.mrb[0].mxu0
  %v345 = vadd.f32 %v65, %v344
  %v346 = vpop.f32.mrb[0].mxu0
  %v347 = vadd.f32 %v61, %v346
  %v348 = vpop.f32.mrb[0].mxu0
  %v349 = vadd.f32 %v65, %v348
  %350 = vmatprep.mubr.bf16.mxu0 0
  %351 = vmatmul.mubr.bf16.gmra.mrb[0].mxu0 %v147
  %v352 = vpop.f32.mrb[0].mxu0
  %v353 = vadd.f32 %v61, %v352
  %v354 = vpop.f32.mrb[0].mxu0
  %v355 = vadd.f32 %v65, %v354
  %v356 = vpop.f32.mrb[0].mxu0
  %v357 = vadd.f32 %v61, %v356
  %v358 = vpop.f32.mrb[0].mxu0
  %v359 = vadd.f32 %v65, %v358
  %360 = vmatprep.mubr.bf16.mxu0 0
  %361 = vmatmul.mubr.bf16.gmra.mrb[0].mxu0 %v150
  %v362 = vpop.f32.mrb[0].mxu0
  %v363 = vadd.f32 %v61, %v362
  %v364 = vpop.f32.mrb[0].mxu0
  %v365 = vadd.f32 %v65, %v364
  %v366 = vpop.f32.mrb[0].mxu0
  %v367 = vadd.f32 %v61, %v366
  %v368 = vpop.f32.mrb[0].mxu0
  %v369 = vadd.f32 %v65, %v368
  %370 = vmatprep.mubr.bf16.mxu0 0
  %371 = vmatmul.mubr.bf16.gmra.mrb[0].mxu0 %v153
  %v372 = vpop.f32.mrb[0].mxu0
  %v373 = vadd.f32 %v61, %v372
  %v374 = vpop.f32.mrb[0].mxu0
  %v375 = vadd.f32 %v65, %v374
  %v376 = vpop.f32.mrb[0].mxu0
  %v377 = vadd.f32 %v61, %v376
  %v378 = vpop.f32.mrb[0].mxu0
  %v379 = vadd.f32 %v65, %v378
  %380 = vdwg.mxu0
  %381 = vst [vmem:[#allocation2] sm:$0xff] %v190
  %382 = vst [vmem:[#allocation2 + $0x8] sm:$0xff] %v192
  %383 = vst [vmem:[#allocation2 + $0x10] sm:$0xff] %v303
  %384 = vst [vmem:[#allocation2 + $0x18] sm:$0xff] %v305
  %385 = vst [vmem:[#allocation2 + $0x20] sm:$0xff] %v194
  %386 = vst [vmem:[#allocation2 + $0x28] sm:$0xff] %v196
  %387 = vst [vmem:[#allocation2 + $0x30] sm:$0xff] %v307
  %388 = vst [vmem:[#allocation2 + $0x38] sm:$0xff] %v309
  %389 = vst [vmem:[#allocation2 + $0x40] sm:$0xff] %v200
  %390 = vst [vmem:[#allocation2 + $0x48] sm:$0xff] %v202
  %391 = vst [vmem:[#allocation2 + $0x50] sm:$0xff] %v313
  %392 = vst [vmem:[#allocation2 + $0x58] sm:$0xff] %v315
  %393 = vst [vmem:[#allocation2 + $0x60] sm:$0xff] %v204
  %394 = vst [vmem:[#allocation2 + $0x68] sm:$0xff] %v206
  %395 = vst [vmem:[#allocation2 + $0x70] sm:$0xff] %v317
  %396 = vst [vmem:[#allocation2 + $0x78] sm:$0xff] %v319
  %397 = vst [vmem:[#allocation2 + $0x80] sm:$0xff] %v210
  %398 = vst [vmem:[#allocation2 + $0x88] sm:$0xff] %v212
  %399 = vst [vmem:[#allocation2 + $0x90] sm:$0xff] %v323
  %400 = vst [vmem:[#allocation2 + $0x98] sm:$0xff] %v325
  %401 = vst [vmem:[#allocation2 + $0xa0] sm:$0xff] %v214
  %402 = vst [vmem:[#allocation2 + $0xa8] sm:$0xff] %v216
  %403 = vst [vmem:[#allocation2 + $0xb0] sm:$0xff] %v327
  %404 = vst [vmem:[#allocation2 + $0xb8] sm:$0xff] %v329
  %405 = vst [vmem:[#allocation2 + $0xc0] sm:$0xff] %v220
  %406 = vst [vmem:[#allocation2 + $0xc8] sm:$0xff] %v222
  %407 = vst [vmem:[#allocation2 + $0xd0] sm:$0xff] %v333
  %408 = vst [vmem:[#allocation2 + $0xd8] sm:$0xff] %v335
  %409 = vst [vmem:[#allocation2 + $0xe0] sm:$0xff] %v224
  %410 = vst [vmem:[#allocation2 + $0xe8] sm:$0xff] %v226
  %411 = vst [vmem:[#allocation2 + $0xf0] sm:$0xff] %v337
  %412 = vst [vmem:[#allocation2 + $0xf8] sm:$0xff] %v339
  %413 = vst [vmem:[#allocation2 + $0x100] sm:$0xff] %v230
  %414 = vst [vmem:[#allocation2 + $0x108] sm:$0xff] %v232
  %415 = vst [vmem:[#allocation2 + $0x110] sm:$0xff] %v343
  %416 = vst [vmem:[#allocation2 + $0x118] sm:$0xff] %v345
  %417 = vst [vmem:[#allocation2 + $0x120] sm:$0xff] %v234
  %418 = vst [vmem:[#allocation2 + $0x128] sm:$0xff] %v236
  %419 = vst [vmem:[#allocation2 + $0x130] sm:$0xff] %v347
  %420 = vst [vmem:[#allocation2 + $0x138] sm:$0xff] %v349
  %421 = vst [vmem:[#allocation2 + $0x140] sm:$0xff] %v240
  %422 = vst [vmem:[#allocation2 + $0x148] sm:$0xff] %v242
  %423 = vst [vmem:[#allocation2 + $0x150] sm:$0xff] %v353
  %424 = vst [vmem:[#allocation2 + $0x158] sm:$0xff] %v355
  %425 = vst [vmem:[#allocation2 + $0x160] sm:$0xff] %v244
  %426 = vst [vmem:[#allocation2 + $0x168] sm:$0xff] %v246
  %427 = vst [vmem:[#allocation2 + $0x170] sm:$0xff] %v357
  %428 = vst [vmem:[#allocation2 + $0x178] sm:$0xff] %v359
  %429 = vst [vmem:[#allocation2 + $0x180] sm:$0xff] %v250
  %430 = vst [vmem:[#allocation2 + $0x188] sm:$0xff] %v252
  %431 = vst [vmem:[#allocation2 + $0x190] sm:$0xff] %v363
  %432 = vst [vmem:[#allocation2 + $0x198] sm:$0xff] %v365
  %433 = vst [vmem:[#allocation2 + $0x1a0] sm:$0xff] %v254
  %434 = vst [vmem:[#allocation2 + $0x1a8] sm:$0xff] %v256
  %435 = vst [vmem:[#allocation2 + $0x1b0] sm:$0xff] %v367
  %436 = vst [vmem:[#allocation2 + $0x1b8] sm:$0xff] %v369
  %437 = vst [vmem:[#allocation2 + $0x1c0] sm:$0xff] %v260
  %438 = vst [vmem:[#allocation2 + $0x1c8] sm:$0xff] %v262
  %439 = vst [vmem:[#allocation2 + $0x1d0] sm:$0xff] %v373
  %440 = vst [vmem:[#allocation2 + $0x1d8] sm:$0xff] %v375
  %441 = vst [vmem:[#allocation2 + $0x1e0] sm:$0xff] %v264
  %442 = vst [vmem:[#allocation2 + $0x1e8] sm:$0xff] %v266
  %443 = vst [vmem:[#allocation2 + $0x1f0] sm:$0xff] %v377
  %444 = vst [vmem:[#allocation2 + $0x1f8] sm:$0xff] %v379
  %v445 = vld [vmem:[#allocation3] sm:$0xff]
  %v446 = vld [vmem:[#allocation3 + $0x8] sm:$0xff]
  %v447 = vld [vmem:[#allocation4] sm:$0xff]
  %v448 = vld [vmem:[#allocation4 + $0x8] sm:$0xff]
  %s449 = smul.u32 0, 4
  %s450 = smul.addr %s449, 8
  %s451 = scalar_lea.vmem [#allocation2], %s450
  %v452 = vld [vmem:[%s451] sm:$0xff]
  %v453 = vld [vmem:[%s451 + $0x8] sm:$0xff]
  %v454 = vld [vmem:[%s451 + $0x10] sm:$0xff]
  %v455 = vld [vmem:[%s451 + $0x18] sm:$0xff]
  %v456 = vld [vmem:[%s451 + $0x20] sm:$0xff]
  %v457 = vld [vmem:[%s451 + $0x28] sm:$0xff]
  %v458 = vld [vmem:[%s451 + $0x30] sm:$0xff]
  %v459 = vld [vmem:[%s451 + $0x38] sm:$0xff]
  %v460 = vpack.c.bf16 %v446, %v445
  %v461 = vld [vmem:[%s2] sm:$0xff]
  %v462 = vld [vmem:[%s2 + $0x8] sm:$0xff]
  %v463 = vld [vmem:[%s2 + $0x10] sm:$0xff]
  %v464 = vld [vmem:[%s2 + $0x18] sm:$0xff]
  %v465 = vld [vmem:[%s2 + $0x20] sm:$0xff]
  %v466 = vld [vmem:[%s2 + $0x28] sm:$0xff]
  %v467 = vld [vmem:[%s2 + $0x30] sm:$0xff]
  %v468 = vld [vmem:[%s2 + $0x38] sm:$0xff]
  %v469 = vld [vmem:[%s2 + $0x40] sm:$0xff]
  %v470 = vld [vmem:[%s2 + $0x48] sm:$0xff]
  %v471 = vld [vmem:[%s2 + $0x50] sm:$0xff]
  %v472 = vld [vmem:[%s2 + $0x58] sm:$0xff]
  %v473 = vld [vmem:[%s2 + $0x60] sm:$0xff]
  %v474 = vld [vmem:[%s2 + $0x68] sm:$0xff]
  %v475 = vld [vmem:[%s2 + $0x70] sm:$0xff]
  %v476 = vld [vmem:[%s2 + $0x78] sm:$0xff]
  %v477 = vld [vmem:[%s2 + $0x80] sm:$0xff]
  %v478 = vld [vmem:[%s2 + $0x88] sm:$0xff]
  %v479 = vld [vmem:[%s2 + $0x90] sm:$0xff]
  %v480 = vld [vmem:[%s2 + $0x98] sm:$0xff]
  %v481 = vld [vmem:[%s2 + $0xa0] sm:$0xff]
  %v482 = vld [vmem:[%s2 + $0xa8] sm:$0xff]
  %v483 = vld [vmem:[%s2 + $0xb0] sm:$0xff]
  %v484 = vld [vmem:[%s2 + $0xb8] sm:$0xff]
  %v485 = vld [vmem:[%s2 + $0xc0] sm:$0xff]
  %v486 = vld [vmem:[%s2 + $0xc8] sm:$0xff]
  %v487 = vld [vmem:[%s2 + $0xd0] sm:$0xff]
  %v488 = vld [vmem:[%s2 + $0xd8] sm:$0xff]
  %v489 = vld [vmem:[%s2 + $0xe0] sm:$0xff]
  %v490 = vld [vmem:[%s2 + $0xe8] sm:$0xff]
  %v491 = vld [vmem:[%s2 + $0xf0] sm:$0xff]
  %v492 = vld [vmem:[%s2 + $0xf8] sm:$0xff]
  %v525 = vunpack.c.l.b16 %v461
  %v526 = vunpack.c.h.b16 %v461
  %v527 = vunpack.c.l.b16 %v462
  %v528 = vunpack.c.h.b16 %v462
  %v529 = vunpack.c.l.b16 %v463
  %v530 = vunpack.c.h.b16 %v463
  %v531 = vunpack.c.l.b16 %v464
  %v532 = vunpack.c.h.b16 %v464
  %v533 = vunpack.c.l.b16 %v465
  %v534 = vunpack.c.h.b16 %v465
  %v535 = vunpack.c.l.b16 %v466
  %v536 = vunpack.c.h.b16 %v466
  %v537 = vunpack.c.l.b16 %v467
  %v538 = vunpack.c.h.b16 %v467
  %v539 = vunpack.c.l.b16 %v468
  %v540 = vunpack.c.h.b16 %v468
  %v541 = vunpack.c.l.b16 %v469
  %v542 = vunpack.c.h.b16 %v469
  %v543 = vunpack.c.l.b16 %v470
  %v544 = vunpack.c.h.b16 %v470
  %v545 = vunpack.c.l.b16 %v471
  %v546 = vunpack.c.h.b16 %v471
  %v547 = vunpack.c.l.b16 %v472
  %v548 = vunpack.c.h.b16 %v472
  %v549 = vunpack.c.l.b16 %v473
  %v550 = vunpack.c.h.b16 %v473
  %v551 = vunpack.c.l.b16 %v474
  %v552 = vunpack.c.h.b16 %v474
  %v553 = vunpack.c.l.b16 %v475
  %v554 = vunpack.c.h.b16 %v475
  %v555 = vunpack.c.l.b16 %v476
  %v556 = vunpack.c.h.b16 %v476
  %v557 = vunpack.c.l.b16 %v477
  %v558 = vunpack.c.h.b16 %v477
  %v559 = vunpack.c.l.b16 %v478
  %v560 = vunpack.c.h.b16 %v478
  %v561 = vunpack.c.l.b16 %v479
  %v562 = vunpack.c.h.b16 %v479
  %v563 = vunpack.c.l.b16 %v480
  %v564 = vunpack.c.h.b16 %v480
  %v565 = vunpack.c.l.b16 %v481
  %v566 = vunpack.c.h.b16 %v481
  %v567 = vunpack.c.l.b16 %v482
  %v568 = vunpack.c.h.b16 %v482
  %v569 = vunpack.c.l.b16 %v483
  %v570 = vunpack.c.h.b16 %v483
  %v571 = vunpack.c.l.b16 %v484
  %v572 = vunpack.c.h.b16 %v484
  %v573 = vunpack.c.l.b16 %v485
  %v574 = vunpack.c.h.b16 %v485
  %v575 = vunpack.c.l.b16 %v486
  %v576 = vunpack.c.h.b16 %v486
  %v577 = vunpack.c.l.b16 %v487
  %v578 = vunpack.c.h.b16 %v487
  %v579 = vunpack.c.l.b16 %v488
  %v580 = vunpack.c.h.b16 %v488
  %v581 = vunpack.c.l.b16 %v489
  %v582 = vunpack.c.h.b16 %v489
  %v583 = vunpack.c.l.b16 %v490
  %v584 = vunpack.c.h.b16 %v490
  %v585 = vunpack.c.l.b16 %v491
  %v586 = vunpack.c.h.b16 %v491
  %v587 = vunpack.c.l.b16 %v492
  %v588 = vunpack.c.h.b16 %v492
  %v589 = vpack.c.b16 %v529, %v525
  %v590 = vpack.c.b16 %v530, %v526
  %v591 = vpack.c.b16 %v531, %v527
  %v592 = vpack.c.b16 %v532, %v528
  %v593 = vpack.c.b16 %v537, %v533
  %v594 = vpack.c.b16 %v538, %v534
  %v595 = vpack.c.b16 %v539, %v535
  %v596 = vpack.c.b16 %v540, %v536
  %v597 = vpack.c.b16 %v545, %v541
  %v598 = vpack.c.b16 %v546, %v542
  %v599 = vpack.c.b16 %v547, %v543
  %v600 = vpack.c.b16 %v548, %v544
  %v601 = vpack.c.b16 %v553, %v549
  %v602 = vpack.c.b16 %v554, %v550
  %v603 = vpack.c.b16 %v555, %v551
  %v604 = vpack.c.b16 %v556, %v552
  %v605 = vpack.c.b16 %v561, %v557
  %v606 = vpack.c.b16 %v562, %v558
  %v607 = vpack.c.b16 %v563, %v559
  %v608 = vpack.c.b16 %v564, %v560
  %v609 = vpack.c.b16 %v569, %v565
  %v610 = vpack.c.b16 %v570, %v566
  %v611 = vpack.c.b16 %v571, %v567
  %v612 = vpack.c.b16 %v572, %v568
  %v613 = vpack.c.b16 %v577, %v573
  %v614 = vpack.c.b16 %v578, %v574
  %v615 = vpack.c.b16 %v579, %v575
  %v616 = vpack.c.b16 %v580, %v576
  %v617 = vpack.c.b16 %v585, %v581
  %v618 = vpack.c.b16 %v586, %v582
  %v619 = vpack.c.b16 %v587, %v583
  %v620 = vpack.c.b16 %v588, %v584
  %653 = vmatprep.subr.bf16.mxu0 %v590
  %654 = vmatpush1.bf16.msra.mxu0 %v589
  %655 = vmatprep.subr.bf16.mxu0 %v594
  %656 = vmatpush1.bf16.msra.mxu0 %v593
  %657 = vmatprep.subr.bf16.mxu0 %v598
  %658 = vmatpush1.bf16.msra.mxu0 %v597
  %659 = vmatprep.subr.bf16.mxu0 %v602
  %660 = vmatpush1.bf16.msra.mxu0 %v601
  %661 = vmatprep.subr.bf16.mxu0 %v606
  %662 = vmatpush1.bf16.msra.mxu0 %v605
  %663 = vmatprep.subr.bf16.mxu0 %v610
  %664 = vmatpush1.bf16.msra.mxu0 %v609
  %665 = vmatprep.subr.bf16.mxu0 %v614
  %666 = vmatpush1.bf16.msra.mxu0 %v613
  %667 = vmatprep.subr.bf16.mxu0 %v618
  %668 = vmatpush1.bf16.msra.mxu0 %v617
  %669 = vmatprep.subr.bf16.mxu0 0
  %670 = vmatpush1.bf16.msra.mxu0 0
  %671 = vmatprep.subr.bf16.mxu0 0
  %672 = vmatpush1.bf16.msra.mxu0 0
  %673 = vmatprep.subr.bf16.mxu0 0
  %674 = vmatpush1.bf16.msra.mxu0 0
  %675 = vmatprep.subr.bf16.mxu0 0
  %676 = vmatpush1.bf16.msra.mxu0 0
  %677 = vmatprep.subr.bf16.mxu0 0
  %678 = vmatpush1.bf16.msra.mxu0 0
  %679 = vmatprep.subr.bf16.mxu0 0
  %680 = vmatpush1.bf16.msra.mxu0 0
  %681 = vmatprep.subr.bf16.mxu0 0
  %682 = vmatpush1.bf16.msra.mxu0 0
  %683 = vmatprep.subr.bf16.mxu0 0
  %684 = vmatpush1.bf16.msra.mxu0 0
  %685 = vmatprep.mubr.bf16.mxu0 0
  %686 = vmatmul.mubr.bf16.gmra.mrb[0].mxu0 %v460
  %v687 = vpop.f32.mrb[0].mxu0
  %v688 = vadd.f32 0.0, %v687
  %v689 = vpop.f32.mrb[0].mxu0
  %v690 = vadd.f32 0.0, %v689
  %v691 = vpop.f32.mrb[0].mxu0
  %v692 = vadd.f32 0.0, %v691
  %v693 = vpop.f32.mrb[0].mxu0
  %v694 = vadd.f32 0.0, %v693
  %695 = vdwg.mxu0
  %696 = vmatprep.subr.bf16.mxu0 %v592
  %697 = vmatpush1.bf16.msra.mxu0 %v591
  %698 = vmatprep.subr.bf16.mxu0 %v596
  %699 = vmatpush1.bf16.msra.mxu0 %v595
  %700 = vmatprep.subr.bf16.mxu0 %v600
  %701 = vmatpush1.bf16.msra.mxu0 %v599
  %702 = vmatprep.subr.bf16.mxu0 %v604
  %703 = vmatpush1.bf16.msra.mxu0 %v603
  %704 = vmatprep.subr.bf16.mxu0 %v608
  %705 = vmatpush1.bf16.msra.mxu0 %v607
  %706 = vmatprep.subr.bf16.mxu0 %v612
  %707 = vmatpush1.bf16.msra.mxu0 %v611
  %708 = vmatprep.subr.bf16.mxu0 %v616
  %709 = vmatpush1.bf16.msra.mxu0 %v615
  %710 = vmatprep.subr.bf16.mxu0 %v620
  %711 = vmatpush1.bf16.msra.mxu0 %v619
  %712 = vmatprep.subr.bf16.mxu0 0
  %713 = vmatpush1.bf16.msra.mxu0 0
  %714 = vmatprep.subr.bf16.mxu0 0
  %715 = vmatpush1.bf16.msra.mxu0 0
  %716 = vmatprep.subr.bf16.mxu0 0
  %717 = vmatpush1.bf16.msra.mxu0 0
  %718 = vmatprep.subr.bf16.mxu0 0
  %719 = vmatpush1.bf16.msra.mxu0 0
  %720 = vmatprep.subr.bf16.mxu0 0
  %721 = vmatpush1.bf16.msra.mxu0 0
  %722 = vmatprep.subr.bf16.mxu0 0
  %723 = vmatpush1.bf16.msra.mxu0 0
  %724 = vmatprep.subr.bf16.mxu0 0
  %725 = vmatpush1.bf16.msra.mxu0 0
  %726 = vmatprep.subr.bf16.mxu0 0
  %727 = vmatpush1.bf16.msra.mxu0 0
  %728 = vmatprep.mubr.bf16.mxu0 0
  %729 = vmatmul.mubr.bf16.gmra.mrb[0].mxu0 %v460
  %v730 = vpop.f32.mrb[0].mxu0
  %v731 = vadd.f32 0.0, %v730
  %v732 = vpop.f32.mrb[0].mxu0
  %v733 = vadd.f32 0.0, %v732
  %v734 = vpop.f32.mrb[0].mxu0
  %v735 = vadd.f32 0.0, %v734
  %v736 = vpop.f32.mrb[0].mxu0
  %v737 = vadd.f32 0.0, %v736
  %738 = vdwg.mxu0
  %v739 = vadd.f32 %v452, %v688
  %v740 = vadd.f32 %v453, %v690
  %v741 = vadd.f32 %v454, %v731
  %v742 = vadd.f32 %v455, %v733
  %v743 = vadd.f32 %v456, %v692
  %v744 = vadd.f32 %v457, %v694
  %v745 = vadd.f32 %v458, %v735
  %v746 = vadd.f32 %v459, %v737
  %v747 = vxor.u32 %v739, 2147483648
  %v748 = vxor.u32 %v743, 2147483648
  %v749 = vmul.f32 %v747, 1.442695
  %v750 = vpow.pop %v749
  %v751 = vmul.f32 %v748, 1.442695
  %v752 = vpow.pop %v751
  %v753 = vadd.f32 %v750, 1.0
  %v754 = vadd.f32 %v752, 1.0
  %v755 = vrcp.pop %v753
  %v756 = vmul.f32 1.0, %v755
  %v757 = vrcp.pop %v754
  %v758 = vmul.f32 1.0, %v757
  %v759 = vxor.u32 %v740, 2147483648
  %v760 = vxor.u32 %v744, 2147483648
  %v761 = vmul.f32 %v759, 1.442695
  %v762 = vpow.pop %v761
  %v763 = vmul.f32 %v760, 1.442695
  %v764 = vpow.pop %v763
  %v765 = vadd.f32 %v762, 1.0
  %v766 = vadd.f32 %v764, 1.0
  %v767 = vrcp.pop %v765
  %v768 = vmul.f32 1.0, %v767
  %v769 = vrcp.pop %v766
  %v770 = vmul.f32 1.0, %v769
  %v771 = vtanh.pop %v741
  %v772 = vtanh.pop %v745
  %v773 = vxor.u32 %v742, 2147483648
  %v774 = vxor.u32 %v746, 2147483648
  %v775 = vmul.f32 %v773, 1.442695
  %v776 = vpow.pop %v775
  %v777 = vmul.f32 %v774, 1.442695
  %v778 = vpow.pop %v777
  %v779 = vadd.f32 %v776, 1.0
  %v780 = vadd.f32 %v778, 1.0
  %v781 = vrcp.pop %v779
  %v782 = vmul.f32 1.0, %v781
  %v783 = vrcp.pop %v780
  %v784 = vmul.f32 1.0, %v783
  %v785 = vmul.f32 %v768, %v447
  %v786 = vmul.f32 %v770, %v448
  %v787 = vmul.f32 %v756, %v771
  %v788 = vmul.f32 %v758, %v772
  %v789 = vadd.f32 %v785, %v787
  %v790 = vadd.f32 %v786, %v788
  %v791 = vtanh.pop %v789
  %v792 = vtanh.pop %v790
  %v793 = vmul.f32 %v782, %v791
  %v794 = vmul.f32 %v784, %v792
  %795 = vst [vmem:[%s4] sm:$0xff] %v793
  %796 = vst [vmem:[%s4 + $0x8] sm:$0xff] %v794
  %s797 = smul.u32 2, 4
  %s798 = smul.addr %s797, 8
  %s799 = scalar_lea.vmem [#allocation2], %s798
  %v800 = vld [vmem:[%s799] sm:$0xff]
  %v801 = vld [vmem:[%s799 + $0x8] sm:$0xff]
  %v802 = vld [vmem:[%s799 + $0x10] sm:$0xff]
  %v803 = vld [vmem:[%s799 + $0x18] sm:$0xff]
  %v804 = vld [vmem:[%s799 + $0x20] sm:$0xff]
  %v805 = vld [vmem:[%s799 + $0x28] sm:$0xff]
  %v806 = vld [vmem:[%s799 + $0x30] sm:$0xff]
  %v807 = vld [vmem:[%s799 + $0x38] sm:$0xff]
  %v808 = vpack.c.bf16 %v794, %v793
  %v809 = vld [vmem:[%s2] sm:$0xff]
  %v810 = vld [vmem:[%s2 + $0x8] sm:$0xff]
  %v811 = vld [vmem:[%s2 + $0x10] sm:$0xff]
  %v812 = vld [vmem:[%s2 + $0x18] sm:$0xff]
  %v813 = vld [vmem:[%s2 + $0x20] sm:$0xff]
  %v814 = vld [vmem:[%s2 + $0x28] sm:$0xff]
  %v815 = vld [vmem:[%s2 + $0x30] sm:$0xff]
  %v816 = vld [vmem:[%s2 + $0x38] sm:$0xff]
  %v817 = vld [vmem:[%s2 + $0x40] sm:$0xff]
  %v818 = vld [vmem:[%s2 + $0x48] sm:$0xff]
  %v819 = vld [vmem:[%s2 + $0x50] sm:$0xff]
  %v820 = vld [vmem:[%s2 + $0x58] sm:$0xff]
  %v821 = vld [vmem:[%s2 + $0x60] sm:$0xff]
  %v822 = vld [vmem:[%s2 + $0x68] sm:$0xff]
  %v823 = vld [vmem:[%s2 + $0x70] sm:$0xff]
  %v824 = vld [vmem:[%s2 + $0x78] sm:$0xff]
  %v825 = vld [vmem:[%s2 + $0x80] sm:$0xff]
  %v826 = vld [vmem:[%s2 + $0x88] sm:$0xff]
  %v827 = vld [vmem:[%s2 + $0x90] sm:$0xff]
  %v828 = vld [vmem:[%s2 + $0x98] sm:$0xff]
  %v829 = vld [vmem:[%s2 + $0xa0] sm:$0xff]
  %v830 = vld [vmem:[%s2 + $0xa8] sm:$0xff]
  %v831 = vld [vmem:[%s2 + $0xb0] sm:$0xff]
  %v832 = vld [vmem:[%s2 + $0xb8] sm:$0xff]
  %v833 = vld [vmem:[%s2 + $0xc0] sm:$0xff]
  %v834 = vld [vmem:[%s2 + $0xc8] sm:$0xff]
  %v835 = vld [vmem:[%s2 + $0xd0] sm:$0xff]
  %v836 = vld [vmem:[%s2 + $0xd8] sm:$0xff]
  %v837 = vld [vmem:[%s2 + $0xe0] sm:$0xff]
  %v838 = vld [vmem:[%s2 + $0xe8] sm:$0xff]
  %v839 = vld [vmem:[%s2 + $0xf0] sm:$0xff]
  %v840 = vld [vmem:[%s2 + $0xf8] sm:$0xff]
  %v873 = vunpack.c.l.b16 %v809
  %v874 = vunpack.c.h.b16 %v809
  %v875 = vunpack.c.l.b16 %v810
  %v876 = vunpack.c.h.b16 %v810
  %v877 = vunpack.c.l.b16 %v811
  %v878 = vunpack.c.h.b16 %v811
  %v879 = vunpack.c.l.b16 %v812
  %v880 = vunpack.c.h.b16 %v812
  %v881 = vunpack.c.l.b16 %v813
  %v882 = vunpack.c.h.b16 %v813
  %v883 = vunpack.c.l.b16 %v814
  %v884 = vunpack.c.h.b16 %v814
  %v885 = vunpack.c.l.b16 %v815
  %v886 = vunpack.c.h.b16 %v815
  %v887 = vunpack.c.l.b16 %v816
  %v888 = vunpack.c.h.b16 %v816
  %v889 = vunpack.c.l.b16 %v817
  %v890 = vunpack.c.h.b16 %v817
  %v891 = vunpack.c.l.b16 %v818
  %v892 = vunpack.c.h.b16 %v818
  %v893 = vunpack.c.l.b16 %v819
  %v894 = vunpack.c.h.b16 %v819
  %v895 = vunpack.c.l.b16 %v820
  %v896 = vunpack.c.h.b16 %v820
  %v897 = vunpack.c.l.b16 %v821
  %v898 = vunpack.c.h.b16 %v821
  %v899 = vunpack.c.l.b16 %v822
  %v900 = vunpack.c.h.b16 %v822
  %v901 = vunpack.c.l.b16 %v823
  %v902 = vunpack.c.h.b16 %v823
  %v903 = vunpack.c.l.b16 %v824
  %v904 = vunpack.c.h.b16 %v824
  %v905 = vunpack.c.l.b16 %v825
  %v906 = vunpack.c.h.b16 %v825
  %v907 = vunpack.c.l.b16 %v826
  %v908 = vunpack.c.h.b16 %v826
  %v909 = vunpack.c.l.b16 %v827
  %v910 = vunpack.c.h.b16 %v827
  %v911 = vunpack.c.l.b16 %v828
  %v912 = vunpack.c.h.b16 %v828
  %v913 = vunpack.c.l.b16 %v829
  %v914 = vunpack.c.h.b16 %v829
  %v915 = vunpack.c.l.b16 %v830
  %v916 = vunpack.c.h.b16 %v830
  %v917 = vunpack.c.l.b16 %v831
  %v918 = vunpack.c.h.b16 %v831
  %v919 = vunpack.c.l.b16 %v832
  %v920 = vunpack.c.h.b16 %v832
  %v921 = vunpack.c.l.b16 %v833
  %v922 = vunpack.c.h.b16 %v833
  %v923 = vunpack.c.l.b16 %v834
  %v924 = vunpack.c.h.b16 %v834
  %v925 = vunpack.c.l.b16 %v835
  %v926 = vunpack.c.h.b16 %v835
  %v927 = vunpack.c.l.b16 %v836
  %v928 = vunpack.c.h.b16 %v836
  %v929 = vunpack.c.l.b16 %v837
  %v930 = vunpack.c.h.b16 %v837
  %v931 = vunpack.c.l.b16 %v838
  %v932 = vunpack.c.h.b16 %v838
  %v933 = vunpack.c.l.b16 %v839
  %v934 = vunpack.c.h.b16 %v839
  %v935 = vunpack.c.l.b16 %v840
  %v936 = vunpack.c.h.b16 %v840
  %v937 = vpack.c.b16 %v877, %v873
  %v938 = vpack.c.b16 %v878, %v874
  %v939 = vpack.c.b16 %v879, %v875
  %v940 = vpack.c.b16 %v880, %v876
  %v941 = vpack.c.b16 %v885, %v881
  %v942 = vpack.c.b16 %v886, %v882
  %v943 = vpack.c.b16 %v887, %v883
  %v944 = vpack.c.b16 %v888, %v884
  %v945 = vpack.c.b16 %v893, %v889
  %v946 = vpack.c.b16 %v894, %v890
  %v947 = vpack.c.b16 %v895, %v891
  %v948 = vpack.c.b16 %v896, %v892
  %v949 = vpack.c.b16 %v901, %v897
  %v950 = vpack.c.b16 %v902, %v898
  %v951 = vpack.c.b16 %v903, %v899
  %v952 = vpack.c.b16 %v904, %v900
  %v953 = vpack.c.b16 %v909, %v905
  %v954 = vpack.c.b16 %v910, %v906
  %v955 = vpack.c.b16 %v911, %v907
  %v956 = vpack.c.b16 %v912, %v908
  %v957 = vpack.c.b16 %v917, %v913
  %v958 = vpack.c.b16 %v918, %v914
  %v959 = vpack.c.b16 %v919, %v915
  %v960 = vpack.c.b16 %v920, %v916
  %v961 = vpack.c.b16 %v925, %v921
  %v962 = vpack.c.b16 %v926, %v922
  %v963 = vpack.c.b16 %v927, %v923
  %v964 = vpack.c.b16 %v928, %v924
  %v965 = vpack.c.b16 %v933, %v929
  %v966 = vpack.c.b16 %v934, %v930
  %v967 = vpack.c.b16 %v935, %v931
  %v968 = vpack.c.b16 %v936, %v932
  %1001 = vmatprep.subr.bf16.mxu0 %v938
  %1002 = vmatpush1.bf16.msra.mxu0 %v937
  %1003 = vmatprep.subr.bf16.mxu0 %v942
  %1004 = vmatpush1.bf16.msra.mxu0 %v941
  %1005 = vmatprep.subr.bf16.mxu0 %v946
  %1006 = vmatpush1.bf16.msra.mxu0 %v945
  %1007 = vmatprep.subr.bf16.mxu0 %v950
  %1008 = vmatpush1.bf16.msra.mxu0 %v949
  %1009 = vmatprep.subr.bf16.mxu0 %v954
  %1010 = vmatpush1.bf16.msra.mxu0 %v953
  %1011 = vmatprep.subr.bf16.mxu0 %v958
  %1012 = vmatpush1.bf16.msra.mxu0 %v957
  %1013 = vmatprep.subr.bf16.mxu0 %v962
  %1014 = vmatpush1.bf16.msra.mxu0 %v961
  %1015 = vmatprep.subr.bf16.mxu0 %v966
  %1016 = vmatpush1.bf16.msra.mxu0 %v965
  %1017 = vmatprep.subr.bf16.mxu0 0
  %1018 = vmatpush1.bf16.msra.mxu0 0
  %1019 = vmatprep.subr.bf16.mxu0 0
  %1020 = vmatpush1.bf16.msra.mxu0 0
  %1021 = vmatprep.subr.bf16.mxu0 0
  %1022 = vmatpush1.bf16.msra.mxu0 0
  %1023 = vmatprep.subr.bf16.mxu0 0
  %1024 = vmatpush1.bf16.msra.mxu0 0
  %1025 = vmatprep.subr.bf16.mxu0 0
  %1026 = vmatpush1.bf16.msra.mxu0 0
  %1027 = vmatprep.subr.bf16.mxu0 0
  %1028 = vmatpush1.bf16.msra.mxu0 0
  %1029 = vmatprep.subr.bf16.mxu0 0
  %1030 = vmatpush1.bf16.msra.mxu0 0
  %1031 = vmatprep.subr.bf16.mxu0 0
  %1032 = vmatpush1.bf16.msra.mxu0 0
  %1033 = vmatprep.mubr.bf16.mxu0 0
  %1034 = vmatmul.mubr.bf16.gmra.mrb[0].mxu0 %v808
  %v1035 = vpop.f32.mrb[0].mxu0
  %v1036 = vadd.f32 0.0, %v1035
  %v1037 = vpop.f32.mrb[0].mxu0
  %v1038 = vadd.f32 0.0, %v1037
  %v1039 = vpop.f32.mrb[0].mxu0
  %v1040 = vadd.f32 0.0, %v1039
  %v1041 = vpop.f32.mrb[0].mxu0
  %v1042 = vadd.f32 0.0, %v1041
  %1043 = vdwg.mxu0
  %1044 = vmatprep.subr.bf16.mxu0 %v940
  %1045 = vmatpush1.bf16.msra.mxu0 %v939
  %1046 = vmatprep.subr.bf16.mxu0 %v944
  %1047 = vmatpush1.bf16.msra.mxu0 %v943
  %1048 = vmatprep.subr.bf16.mxu0 %v948
  %1049 = vmatpush1.bf16.msra.mxu0 %v947
  %1050 = vmatprep.subr.bf16.mxu0 %v952
  %1051 = vmatpush1.bf16.msra.mxu0 %v951
  %1052 = vmatprep.subr.bf16.mxu0 %v956
  %1053 = vmatpush1.bf16.msra.mxu0 %v955
  %1054 = vmatprep.subr.bf16.mxu0 %v960
  %1055 = vmatpush1.bf16.msra.mxu0 %v959
  %1056 = vmatprep.subr.bf16.mxu0 %v964
  %1057 = vmatpush1.bf16.msra.mxu0 %v963
  %1058 = vmatprep.subr.bf16.mxu0 %v968
  %1059 = vmatpush1.bf16.msra.mxu0 %v967
  %1060 = vmatprep.subr.bf16.mxu0 0
  %1061 = vmatpush1.bf16.msra.mxu0 0
  %1062 = vmatprep.subr.bf16.mxu0 0
  %1063 = vmatpush1.bf16.msra.mxu0 0
  %1064 = vmatprep.subr.bf16.mxu0 0
  %1065 = vmatpush1.bf16.msra.mxu0 0
  %1066 = vmatprep.subr.bf16.mxu0 0
  %1067 = vmatpush1.bf16.msra.mxu0 0
  %1068 = vmatprep.subr.bf16.mxu0 0
  %1069 = vmatpush1.bf16.msra.mxu0 0
  %1070 = vmatprep.subr.bf16.mxu0 0
  %1071 = vmatpush1.bf16.msra.mxu0 0
  %1072 = vmatprep.subr.bf16.mxu0 0
  %1073 = vmatpush1.bf16.msra.mxu0 0
  %1074 = vmatprep.subr.bf16.mxu0 0
  %1075 = vmatpush1.bf16.msra.mxu0 0
  %1076 = vmatprep.mubr.bf16.mxu0 0
  %1077 = vmatmul.mubr.bf16.gmra.mrb[0].mxu0 %v808
  %v1078 = vpop.f32.mrb[0].mxu0
  %v1079 = vadd.f32 0.0, %v1078
  %v1080 = vpop.f32.mrb[0].mxu0
  %v1081 = vadd.f32 0.0, %v1080
  %v1082 = vpop.f32.mrb[0].mxu0
  %v1083 = vadd.f32 0.0, %v1082
  %v1084 = vpop.f32.mrb[0].mxu0
  %v1085 = vadd.f32 0.0, %v1084
  %1086 = vdwg.mxu0
  %v1087 = vadd.f32 %v800, %v1036
  %v1088 = vadd.f32 %v801, %v1038
  %v1089 = vadd.f32 %v802, %v1079
  %v1090 = vadd.f32 %v803, %v1081
  %v1091 = vadd.f32 %v804, %v1040
  %v1092 = vadd.f32 %v805, %v1042
  %v1093 = vadd.f32 %v806, %v1083
  %v1094 = vadd.f32 %v807, %v1085
  %v1095 = vxor.u32 %v1087, 2147483648
  %v1096 = vxor.u32 %v1091, 2147483648
  %v1097 = vmul.f32 %v1095, 1.442695
  %v1098 = vpow.pop %v1097
  %v1099 = vmul.f32 %v1096, 1.442695
  %v1100 = vpow.pop %v1099
  %v1101 = vadd.f32 %v1098, 1.0
  %v1102 = vadd.f32 %v1100, 1.0
  %v1103 = vrcp.pop %v1101
  %v1104 = vmul.f32 1.0, %v1103
  %v1105 = vrcp.pop %v1102
  %v1106 = vmul.f32 1.0, %v1105
  %v1107 = vxor.u32 %v1088, 2147483648
  %v1108 = vxor.u32 %v1092, 2147483648
  %v1109 = vmul.f32 %v1107, 1.442695
  %v1110 = vpow.pop %v1109
  %v1111 = vmul.f32 %v1108, 1.442695
  %v1112 = vpow.pop %v1111
  %v1113 = vadd.f32 %v1110, 1.0
  %v1114 = vadd.f32 %v1112, 1.0
  %v1115 = vrcp.pop %v1113
  %v1116 = vmul.f32 1.0, %v1115
  %v1117 = vrcp.pop %v1114
  %v1118 = vmul.f32 1.0, %v1117
  %v1119 = vtanh.pop %v1089
  %v1120 = vtanh.pop %v1093
  %v1121 = vxor.u32 %v1090, 2147483648
  %v1122 = vxor.u32 %v1094, 2147483648
  %v1123 = vmul.f32 %v1121, 1.442695
  %v1124 = vpow.pop %v1123
  %v1125 = vmul.f32 %v1122, 1.442695
  %v1126 = vpow.pop %v1125
  %v1127 = vadd.f32 %v1124, 1.0
  %v1128 = vadd.f32 %v1126, 1.0
  %v1129 = vrcp.pop %v1127
  %v1130 = vmul.f32 1.0, %v1129
  %v1131 = vrcp.pop %v1128
  %v1132 = vmul.f32 1.0, %v1131
  %v1133 = vmul.f32 %v1116, %v789
  %v1134 = vmul.f32 %v1118, %v790
  %v1135 = vmul.f32 %v1104, %v1119
  %v1136 = vmul.f32 %v1106, %v1120
  %v1137 = vadd.f32 %v1133, %v1135
  %v1138 = vadd.f32 %v1134, %v1136
  %v1139 = vtanh.pop %v1137
  %v1140 = vtanh.pop %v1138
  %v1141 = vmul.f32 %v1130, %v1139
  %v1142 = vmul.f32 %v1132, %v1140
  %s1143 = scalar_lea.vmem %s4, 16
  %1144 = vst [vmem:[%s1143] sm:$0xff] %v1141
  %1145 = vst [vmem:[%s1143 + $0x8] sm:$0xff] %v1142
  %s1146 = smul.u32 4, 4
  %s1147 = smul.addr %s1146, 8
  %s1148 = scalar_lea.vmem [#allocation2], %s1147
  %v1149 = vld [vmem:[%s1148] sm:$0xff]
  %v1150 = vld [vmem:[%s1148 + $0x8] sm:$0xff]
  %v1151 = vld [vmem:[%s1148 + $0x10] sm:$0xff]
  %v1152 = vld [vmem:[%s1148 + $0x18] sm:$0xff]
  %v1153 = vld [vmem:[%s1148 + $0x20] sm:$0xff]
  %v1154 = vld [vmem:[%s1148 + $0x28] sm:$0xff]
  %v1155 = vld [vmem:[%s1148 + $0x30] sm:$0xff]
  %v1156 = vld [vmem:[%s1148 + $0x38] sm:$0xff]
  %v1157 = vpack.c.bf16 %v1142, %v1141
  %v1158 = vld [vmem:[%s2] sm:$0xff]
  %v1159 = vld [vmem:[%s2 + $0x8] sm:$0xff]
  %v1160 = vld [vmem:[%s2 + $0x10] sm:$0xff]
  %v1161 = vld [vmem:[%s2 + $0x18] sm:$0xff]
  %v1162 = vld [vmem:[%s2 + $0x20] sm:$0xff]
  %v1163 = vld [vmem:[%s2 + $0x28] sm:$0xff]
  %v1164 = vld [vmem:[%s2 + $0x30] sm:$0xff]
  %v1165 = vld [vmem:[%s2 + $0x38] sm:$0xff]
  %v1166 = vld [vmem:[%s2 + $0x40] sm:$0xff]
  %v1167 = vld [vmem:[%s2 + $0x48] sm:$0xff]
  %v1168 = vld [vmem:[%s2 + $0x50] sm:$0xff]
  %v1169 = vld [vmem:[%s2 + $0x58] sm:$0xff]
  %v1170 = vld [vmem:[%s2 + $0x60] sm:$0xff]
  %v1171 = vld [vmem:[%s2 + $0x68] sm:$0xff]
  %v1172 = vld [vmem:[%s2 + $0x70] sm:$0xff]
  %v1173 = vld [vmem:[%s2 + $0x78] sm:$0xff]
  %v1174 = vld [vmem:[%s2 + $0x80] sm:$0xff]
  %v1175 = vld [vmem:[%s2 + $0x88] sm:$0xff]
  %v1176 = vld [vmem:[%s2 + $0x90] sm:$0xff]
  %v1177 = vld [vmem:[%s2 + $0x98] sm:$0xff]
  %v1178 = vld [vmem:[%s2 + $0xa0] sm:$0xff]
  %v1179 = vld [vmem:[%s2 + $0xa8] sm:$0xff]
  %v1180 = vld [vmem:[%s2 + $0xb0] sm:$0xff]
  %v1181 = vld [vmem:[%s2 + $0xb8] sm:$0xff]
  %v1182 = vld [vmem:[%s2 + $0xc0] sm:$0xff]
  %v1183 = vld [vmem:[%s2 + $0xc8] sm:$0xff]
  %v1184 = vld [vmem:[%s2 + $0xd0] sm:$0xff]
  %v1185 = vld [vmem:[%s2 + $0xd8] sm:$0xff]
  %v1186 = vld [vmem:[%s2 + $0xe0] sm:$0xff]
  %v1187 = vld [vmem:[%s2 + $0xe8] sm:$0xff]
  %v1188 = vld [vmem:[%s2 + $0xf0] sm:$0xff]
  %v1189 = vld [vmem:[%s2 + $0xf8] sm:$0xff]
  %v1222 = vunpack.c.l.b16 %v1158
  %v1223 = vunpack.c.h.b16 %v1158
  %v1224 = vunpack.c.l.b16 %v1159
  %v1225 = vunpack.c.h.b16 %v1159
  %v1226 = vunpack.c.l.b16 %v1160
  %v1227 = vunpack.c.h.b16 %v1160
  %v1228 = vunpack.c.l.b16 %v1161
  %v1229 = vunpack.c.h.b16 %v1161
  %v1230 = vunpack.c.l.b16 %v1162
  %v1231 = vunpack.c.h.b16 %v1162
  %v1232 = vunpack.c.l.b16 %v1163
  %v1233 = vunpack.c.h.b16 %v1163
  %v1234 = vunpack.c.l.b16 %v1164
  %v1235 = vunpack.c.h.b16 %v1164
  %v1236 = vunpack.c.l.b16 %v1165
  %v1237 = vunpack.c.h.b16 %v1165
  %v1238 = vunpack.c.l.b16 %v1166
  %v1239 = vunpack.c.h.b16 %v1166
  %v1240 = vunpack.c.l.b16 %v1167
  %v1241 = vunpack.c.h.b16 %v1167
  %v1242 = vunpack.c.l.b16 %v1168
  %v1243 = vunpack.c.h.b16 %v1168
  %v1244 = vunpack.c.l.b16 %v1169
  %v1245 = vunpack.c.h.b16 %v1169
  %v1246 = vunpack.c.l.b16 %v1170
  %v1247 = vunpack.c.h.b16 %v1170
  %v1248 = vunpack.c.l.b16 %v1171
  %v1249 = vunpack.c.h.b16 %v1171
  %v1250 = vunpack.c.l.b16 %v1172
  %v1251 = vunpack.c.h.b16 %v1172
  %v1252 = vunpack.c.l.b16 %v1173
  %v1253 = vunpack.c.h.b16 %v1173
  %v1254 = vunpack.c.l.b16 %v1174
  %v1255 = vunpack.c.h.b16 %v1174
  %v1256 = vunpack.c.l.b16 %v1175
  %v1257 = vunpack.c.h.b16 %v1175
  %v1258 = vunpack.c.l.b16 %v1176
  %v1259 = vunpack.c.h.b16 %v1176
  %v1260 = vunpack.c.l.b16 %v1177
  %v1261 = vunpack.c.h.b16 %v1177
  %v1262 = vunpack.c.l.b16 %v1178
  %v1263 = vunpack.c.h.b16 %v1178
  %v1264 = vunpack.c.l.b16 %v1179
  %v1265 = vunpack.c.h.b16 %v1179
  %v1266 = vunpack.c.l.b16 %v1180
  %v1267 = vunpack.c.h.b16 %v1180
  %v1268 = vunpack.c.l.b16 %v1181
  %v1269 = vunpack.c.h.b16 %v1181
  %v1270 = vunpack.c.l.b16 %v1182
  %v1271 = vunpack.c.h.b16 %v1182
  %v1272 = vunpack.c.l.b16 %v1183
  %v1273 = vunpack.c.h.b16 %v1183
  %v1274 = vunpack.c.l.b16 %v1184
  %v1275 = vunpack.c.h.b16 %v1184
  %v1276 = vunpack.c.l.b16 %v1185
  %v1277 = vunpack.c.h.b16 %v1185
  %v1278 = vunpack.c.l.b16 %v1186
  %v1279 = vunpack.c.h.b16 %v1186
  %v1280 = vunpack.c.l.b16 %v1187
  %v1281 = vunpack.c.h.b16 %v1187
  %v1282 = vunpack.c.l.b16 %v1188
  %v1283 = vunpack.c.h.b16 %v1188
  %v1284 = vunpack.c.l.b16 %v1189
  %v1285 = vunpack.c.h.b16 %v1189
  %v1286 = vpack.c.b16 %v1226, %v1222
  %v1287 = vpack.c.b16 %v1227, %v1223
  %v1288 = vpack.c.b16 %v1228, %v1224
  %v1289 = vpack.c.b16 %v1229, %v1225
  %v1290 = vpack.c.b16 %v1234, %v1230
  %v1291 = vpack.c.b16 %v1235, %v1231
  %v1292 = vpack.c.b16 %v1236, %v1232
  %v1293 = vpack.c.b16 %v1237, %v1233
  %v1294 = vpack.c.b16 %v1242, %v1238
  %v1295 = vpack.c.b16 %v1243, %v1239
  %v1296 = vpack.c.b16 %v1244, %v1240
  %v1297 = vpack.c.b16 %v1245, %v1241
  %v1298 = vpack.c.b16 %v1250, %v1246
  %v1299 = vpack.c.b16 %v1251, %v1247
  %v1300 = vpack.c.b16 %v1252, %v1248
  %v1301 = vpack.c.b16 %v1253, %v1249
  %v1302 = vpack.c.b16 %v1258, %v1254
  %v1303 = vpack.c.b16 %v1259, %v1255
  %v1304 = vpack.c.b16 %v1260, %v1256
  %v1305 = vpack.c.b16 %v1261, %v1257
  %v1306 = vpack.c.b16 %v1266, %v1262
  %v1307 = vpack.c.b16 %v1267, %v1263
  %v1308 = vpack.c.b16 %v1268, %v1264
  %v1309 = vpack.c.b16 %v1269, %v1265
  %v1310 = vpack.c.b16 %v1274, %v1270
  %v1311 = vpack.c.b16 %v1275, %v1271
  %v1312 = vpack.c.b16 %v1276, %v1272
  %v1313 = vpack.c.b16 %v1277, %v1273
  %v1314 = vpack.c.b16 %v1282, %v1278
  %v1315 = vpack.c.b16 %v1283, %v1279
  %v1316 = vpack.c.b16 %v1284, %v1280
  %v1317 = vpack.c.b16 %v1285, %v1281
  %1350 = vmatprep.subr.bf16.mxu0 %v1287
  %1351 = vmatpush1.bf16.msra.mxu0 %v1286
  %1352 = vmatprep.subr.bf16.mxu0 %v1291
  %1353 = vmatpush1.bf16.msra.mxu0 %v1290
  %1354 = vmatprep.subr.bf16.mxu0 %v1295
  %1355 = vmatpush1.bf16.msra.mxu0 %v1294
  %1356 = vmatprep.subr.bf16.mxu0 %v1299
  %1357 = vmatpush1.bf16.msra.mxu0 %v1298
  %1358 = vmatprep.subr.bf16.mxu0 %v1303
  %1359 = vmatpush1.bf16.msra.mxu0 %v1302
  %1360 = vmatprep.subr.bf16.mxu0 %v1307
  %1361 = vmatpush1.bf16.msra.mxu0 %v1306
  %1362 = vmatprep.subr.bf16.mxu0 %v1311
  %1363 = vmatpush1.bf16.msra.mxu0 %v1310
  %1364 = vmatprep.subr.bf16.mxu0 %v1315
  %1365 = vmatpush1.bf16.msra.mxu0 %v1314
  %1366 = vmatprep.subr.bf16.mxu0 0
  %1367 = vmatpush1.bf16.msra.mxu0 0
  %1368 = vmatprep.subr.bf16.mxu0 0
  %1369 = vmatpush1.bf16.msra.mxu0 0
  %1370 = vmatprep.subr.bf16.mxu0 0
  %1371 = vmatpush1.bf16.msra.mxu0 0
  %1372 = vmatprep.subr.bf16.mxu0 0
  %1373 = vmatpush1.bf16.msra.mxu0 0
  %1374 = vmatprep.subr.bf16.mxu0 0
  %1375 = vmatpush1.bf16.msra.mxu0 0
  %1376 = vmatprep.subr.bf16.mxu0 0
  %1377 = vmatpush1.bf16.msra.mxu0 0
  %1378 = vmatprep.subr.bf16.mxu0 0
  %1379 = vmatpush1.bf16.msra.mxu0 0
  %1380 = vmatprep.subr.bf16.mxu0 0
  %1381 = vmatpush1.bf16.msra.mxu0 0
  %1382 = vmatprep.mubr.bf16.mxu0 0
  %1383 = vmatmul.mubr.bf16.gmra.mrb[0].mxu0 %v1157
  %v1384 = vpop.f32.mrb[0].mxu0
  %v1385 = vadd.f32 0.0, %v1384
  %v1386 = vpop.f32.mrb[0].mxu0
  %v1387 = vadd.f32 0.0, %v1386
  %v1388 = vpop.f32.mrb[0].mxu0
  %v1389 = vadd.f32 0.0, %v1388
  %v1390 = vpop.f32.mrb[0].mxu0
  %v1391 = vadd.f32 0.0, %v1390
  %1392 = vdwg.mxu0
  %1393 = vmatprep.subr.bf16.mxu0 %v1289
  %1394 = vmatpush1.bf16.msra.mxu0 %v1288
  %1395 = vmatprep.subr.bf16.mxu0 %v1293
  %1396 = vmatpush1.bf16.msra.mxu0 %v1292
  %1397 = vmatprep.subr.bf16.mxu0 %v1297
  %1398 = vmatpush1.bf16.msra.mxu0 %v1296
  %1399 = vmatprep.subr.bf16.mxu0 %v1301
  %1400 = vmatpush1.bf16.msra.mxu0 %v1300
  %1401 = vmatprep.subr.bf16.mxu0 %v1305
  %1402 = vmatpush1.bf16.msra.mxu0 %v1304
  %1403 = vmatprep.subr.bf16.mxu0 %v1309
  %1404 = vmatpush1.bf16.msra.mxu0 %v1308
  %1405 = vmatprep.subr.bf16.mxu0 %v1313
  %1406 = vmatpush1.bf16.msra.mxu0 %v1312
  %1407 = vmatprep.subr.bf16.mxu0 %v1317
  %1408 = vmatpush1.bf16.msra.mxu0 %v1316
  %1409 = vmatprep.subr.bf16.mxu0 0
  %1410 = vmatpush1.bf16.msra.mxu0 0
  %1411 = vmatprep.subr.bf16.mxu0 0
  %1412 = vmatpush1.bf16.msra.mxu0 0
  %1413 = vmatprep.subr.bf16.mxu0 0
  %1414 = vmatpush1.bf16.msra.mxu0 0
  %1415 = vmatprep.subr.bf16.mxu0 0
  %1416 = vmatpush1.bf16.msra.mxu0 0
  %1417 = vmatprep.subr.bf16.mxu0 0
  %1418 = vmatpush1.bf16.msra.mxu0 0
  %1419 = vmatprep.subr.bf16.mxu0 0
  %1420 = vmatpush1.bf16.msra.mxu0 0
  %1421 = vmatprep.subr.bf16.mxu0 0
  %1422 = vmatpush1.bf16.msra.mxu0 0
  %1423 = vmatprep.subr.bf16.mxu0 0
  %1424 = vmatpush1.bf16.msra.mxu0 0
  %1425 = vmatprep.mubr.bf16.mxu0 0
  %1426 = vmatmul.mubr.bf16.gmra.mrb[0].mxu0 %v1157
  %v1427 = vpop.f32.mrb[0].mxu0
  %v1428 = vadd.f32 0.0, %v1427
  %v1429 = vpop.f32.mrb[0].mxu0
  %v1430 = vadd.f32 0.0, %v1429
  %v1431 = vpop.f32.mrb[0].mxu0
  %v1432 = vadd.f32 0.0, %v1431
  %v1433 = vpop.f32.mrb[0].mxu0
  %v1434 = vadd.f32 0.0, %v1433
  %1435 = vdwg.mxu0
  %v1436 = vadd.f32 %v1149, %v1385
  %v1437 = vadd.f32 %v1150, %v1387
  %v1438 = vadd.f32 %v1151, %v1428
  %v1439 = vadd.f32 %v1152, %v1430
  %v1440 = vadd.f32 %v1153, %v1389
  %v1441 = vadd.f32 %v1154, %v1391
  %v1442 = vadd.f32 %v1155, %v1432
  %v1443 = vadd.f32 %v1156, %v1434
  %v1444 = vxor.u32 %v1436, 2147483648
  %v1445 = vxor.u32 %v1440, 2147483648
  %v1446 = vmul.f32 %v1444, 1.442695
  %v1447 = vpow.pop %v1446
  %v1448 = vmul.f32 %v1445, 1.442695
  %v1449 = vpow.pop %v1448
  %v1450 = vadd.f32 %v1447, 1.0
  %v1451 = vadd.f32 %v1449, 1.0
  %v1452 = vrcp.pop %v1450
  %v1453 = vmul.f32 1.0, %v1452
  %v1454 = vrcp.pop %v1451
  %v1455 = vmul.f32 1.0, %v1454
  %v1456 = vxor.u32 %v1437, 2147483648
  %v1457 = vxor.u32 %v1441, 2147483648
  %v1458 = vmul.f32 %v1456, 1.442695
  %v1459 = vpow.pop %v1458
  %v1460 = vmul.f32 %v1457, 1.442695
  %v1461 = vpow.pop %v1460
  %v1462 = vadd.f32 %v1459, 1.0
  %v1463 = vadd.f32 %v1461, 1.0
  %v1464 = vrcp.pop %v1462
  %v1465 = vmul.f32 1.0, %v1464
  %v1466 = vrcp.pop %v1463
  %v1467 = vmul.f32 1.0, %v1466
  %v1468 = vtanh.pop %v1438
  %v1469 = vtanh.pop %v1442
  %v1470 = vxor.u32 %v1439, 2147483648
  %v1471 = vxor.u32 %v1443, 2147483648
  %v1472 = vmul.f32 %v1470, 1.442695
  %v1473 = vpow.pop %v1472
  %v1474 = vmul.f32 %v1471, 1.442695
  %v1475 = vpow.pop %v1474
  %v1476 = vadd.f32 %v1473, 1.0
  %v1477 = vadd.f32 %v1475, 1.0
  %v1478 = vrcp.pop %v1476
  %v1479 = vmul.f32 1.0, %v1478
  %v1480 = vrcp.pop %v1477
  %v1481 = vmul.f32 1.0, %v1480
  %v1482 = vmul.f32 %v1465, %v1137
  %v1483 = vmul.f32 %v1467, %v1138
  %v1484 = vmul.f32 %v1453, %v1468
  %v1485 = vmul.f32 %v1455, %v1469
  %v1486 = vadd.f32 %v1482, %v1484
  %v1487 = vadd.f32 %v1483, %v1485
  %v1488 = vtanh.pop %v1486
  %v1489 = vtanh.pop %v1487
  %v1490 = vmul.f32 %v1479, %v1488
  %v1491 = vmul.f32 %v1481, %v1489
  %s1492 = scalar_lea.vmem %s4, 32
  %1493 = vst [vmem:[%s1492] sm:$0xff] %v1490
  %1494 = vst [vmem:[%s1492 + $0x8] sm:$0xff] %v1491
  %s1495 = smul.u32 6, 4
  %s1496 = smul.addr %s1495, 8
  %s1497 = scalar_lea.vmem [#allocation2], %s1496
  %v1498 = vld [vmem:[%s1497] sm:$0xff]
  %v1499 = vld [vmem:[%s1497 + $0x8] sm:$0xff]
  %v1500 = vld [vmem:[%s1497 + $0x10] sm:$0xff]
  %v1501 = vld [vmem:[%s1497 + $0x18] sm:$0xff]
  %v1502 = vld [vmem:[%s1497 + $0x20] sm:$0xff]
  %v1503 = vld [vmem:[%s1497 + $0x28] sm:$0xff]
  %v1504 = vld [vmem:[%s1497 + $0x30] sm:$0xff]
  %v1505 = vld [vmem:[%s1497 + $0x38] sm:$0xff]
  %v1506 = vpack.c.bf16 %v1491, %v1490
  %v1507 = vld [vmem:[%s2] sm:$0xff]
  %v1508 = vld [vmem:[%s2 + $0x8] sm:$0xff]
  %v1509 = vld [vmem:[%s2 + $0x10] sm:$0xff]
  %v1510 = vld [vmem:[%s2 + $0x18] sm:$0xff]
  %v1511 = vld [vmem:[%s2 + $0x20] sm:$0xff]
  %v1512 = vld [vmem:[%s2 + $0x28] sm:$0xff]
  %v1513 = vld [vmem:[%s2 + $0x30] sm:$0xff]
  %v1514 = vld [vmem:[%s2 + $0x38] sm:$0xff]
  %v1515 = vld [vmem:[%s2 + $0x40] sm:$0xff]
  %v1516 = vld [vmem:[%s2 + $0x48] sm:$0xff]
  %v1517 = vld [vmem:[%s2 + $0x50] sm:$0xff]
  %v1518 = vld [vmem:[%s2 + $0x58] sm:$0xff]
  %v1519 = vld [vmem:[%s2 + $0x60] sm:$0xff]
  %v1520 = vld [vmem:[%s2 + $0x68] sm:$0xff]
  %v1521 = vld [vmem:[%s2 + $0x70] sm:$0xff]
  %v1522 = vld [vmem:[%s2 + $0x78] sm:$0xff]
  %v1523 = vld [vmem:[%s2 + $0x80] sm:$0xff]
  %v1524 = vld [vmem:[%s2 + $0x88] sm:$0xff]
  %v1525 = vld [vmem:[%s2 + $0x90] sm:$0xff]
  %v1526 = vld [vmem:[%s2 + $0x98] sm:$0xff]
  %v1527 = vld [vmem:[%s2 + $0xa0] sm:$0xff]
  %v1528 = vld [vmem:[%s2 + $0xa8] sm:$0xff]
  %v1529 = vld [vmem:[%s2 + $0xb0] sm:$0xff]
  %v1530 = vld [vmem:[%s2 + $0xb8] sm:$0xff]
  %v1531 = vld [vmem:[%s2 + $0xc0] sm:$0xff]
  %v1532 = vld [vmem:[%s2 + $0xc8] sm:$0xff]
  %v1533 = vld [vmem:[%s2 + $0xd0] sm:$0xff]
  %v1534 = vld [vmem:[%s2 + $0xd8] sm:$0xff]
  %v1535 = vld [vmem:[%s2 + $0xe0] sm:$0xff]
  %v1536 = vld [vmem:[%s2 + $0xe8] sm:$0xff]
  %v1537 = vld [vmem:[%s2 + $0xf0] sm:$0xff]
  %v1538 = vld [vmem:[%s2 + $0xf8] sm:$0xff]
  %v1571 = vunpack.c.l.b16 %v1507
  %v1572 = vunpack.c.h.b16 %v1507
  %v1573 = vunpack.c.l.b16 %v1508
  %v1574 = vunpack.c.h.b16 %v1508
  %v1575 = vunpack.c.l.b16 %v1509
  %v1576 = vunpack.c.h.b16 %v1509
  %v1577 = vunpack.c.l.b16 %v1510
  %v1578 = vunpack.c.h.b16 %v1510
  %v1579 = vunpack.c.l.b16 %v1511
  %v1580 = vunpack.c.h.b16 %v1511
  %v1581 = vunpack.c.l.b16 %v1512
  %v1582 = vunpack.c.h.b16 %v1512
  %v1583 = vunpack.c.l.b16 %v1513
  %v1584 = vunpack.c.h.b16 %v1513
  %v1585 = vunpack.c.l.b16 %v1514
  %v1586 = vunpack.c.h.b16 %v1514
  %v1587 = vunpack.c.l.b16 %v1515
  %v1588 = vunpack.c.h.b16 %v1515
  %v1589 = vunpack.c.l.b16 %v1516
  %v1590 = vunpack.c.h.b16 %v1516
  %v1591 = vunpack.c.l.b16 %v1517
  %v1592 = vunpack.c.h.b16 %v1517
  %v1593 = vunpack.c.l.b16 %v1518
  %v1594 = vunpack.c.h.b16 %v1518
  %v1595 = vunpack.c.l.b16 %v1519
  %v1596 = vunpack.c.h.b16 %v1519
  %v1597 = vunpack.c.l.b16 %v1520
  %v1598 = vunpack.c.h.b16 %v1520
  %v1599 = vunpack.c.l.b16 %v1521
  %v1600 = vunpack.c.h.b16 %v1521
  %v1601 = vunpack.c.l.b16 %v1522
  %v1602 = vunpack.c.h.b16 %v1522
  %v1603 = vunpack.c.l.b16 %v1523
  %v1604 = vunpack.c.h.b16 %v1523
  %v1605 = vunpack.c.l.b16 %v1524
  %v1606 = vunpack.c.h.b16 %v1524
  %v1607 = vunpack.c.l.b16 %v1525
  %v1608 = vunpack.c.h.b16 %v1525
  %v1609 = vunpack.c.l.b16 %v1526
  %v1610 = vunpack.c.h.b16 %v1526
  %v1611 = vunpack.c.l.b16 %v1527
  %v1612 = vunpack.c.h.b16 %v1527
  %v1613 = vunpack.c.l.b16 %v1528
  %v1614 = vunpack.c.h.b16 %v1528
  %v1615 = vunpack.c.l.b16 %v1529
  %v1616 = vunpack.c.h.b16 %v1529
  %v1617 = vunpack.c.l.b16 %v1530
  %v1618 = vunpack.c.h.b16 %v1530
  %v1619 = vunpack.c.l.b16 %v1531
  %v1620 = vunpack.c.h.b16 %v1531
  %v1621 = vunpack.c.l.b16 %v1532
  %v1622 = vunpack.c.h.b16 %v1532
  %v1623 = vunpack.c.l.b16 %v1533
  %v1624 = vunpack.c.h.b16 %v1533
  %v1625 = vunpack.c.l.b16 %v1534
  %v1626 = vunpack.c.h.b16 %v1534
  %v1627 = vunpack.c.l.b16 %v1535
  %v1628 = vunpack.c.h.b16 %v1535
  %v1629 = vunpack.c.l.b16 %v1536
  %v1630 = vunpack.c.h.b16 %v1536
  %v1631 = vunpack.c.l.b16 %v1537
  %v1632 = vunpack.c.h.b16 %v1537
  %v1633 = vunpack.c.l.b16 %v1538
  %v1634 = vunpack.c.h.b16 %v1538
  %v1635 = vpack.c.b16 %v1575, %v1571
  %v1636 = vpack.c.b16 %v1576, %v1572
  %v1637 = vpack.c.b16 %v1577, %v1573
  %v1638 = vpack.c.b16 %v1578, %v1574
  %v1639 = vpack.c.b16 %v1583, %v1579
  %v1640 = vpack.c.b16 %v1584, %v1580
  %v1641 = vpack.c.b16 %v1585, %v1581
  %v1642 = vpack.c.b16 %v1586, %v1582
  %v1643 = vpack.c.b16 %v1591, %v1587
  %v1644 = vpack.c.b16 %v1592, %v1588
  %v1645 = vpack.c.b16 %v1593, %v1589
  %v1646 = vpack.c.b16 %v1594, %v1590
  %v1647 = vpack.c.b16 %v1599, %v1595
  %v1648 = vpack.c.b16 %v1600, %v1596
  %v1649 = vpack.c.b16 %v1601, %v1597
  %v1650 = vpack.c.b16 %v1602, %v1598
  %v1651 = vpack.c.b16 %v1607, %v1603
  %v1652 = vpack.c.b16 %v1608, %v1604
  %v1653 = vpack.c.b16 %v1609, %v1605
  %v1654 = vpack.c.b16 %v1610, %v1606
  %v1655 = vpack.c.b16 %v1615, %v1611
  %v1656 = vpack.c.b16 %v1616, %v1612
  %v1657 = vpack.c.b16 %v1617, %v1613
  %v1658 = vpack.c.b16 %v1618, %v1614
  %v1659 = vpack.c.b16 %v1623, %v1619
  %v1660 = vpack.c.b16 %v1624, %v1620
  %v1661 = vpack.c.b16 %v1625, %v1621
  %v1662 = vpack.c.b16 %v1626, %v1622
  %v1663 = vpack.c.b16 %v1631, %v1627
  %v1664 = vpack.c.b16 %v1632, %v1628
  %v1665 = vpack.c.b16 %v1633, %v1629
  %v1666 = vpack.c.b16 %v1634, %v1630
  %1699 = vmatprep.subr.bf16.mxu0 %v1636
  %1700 = vmatpush1.bf16.msra.mxu0 %v1635
  %1701 = vmatprep.subr.bf16.mxu0 %v1640
  %1702 = vmatpush1.bf16.msra.mxu0 %v1639
  %1703 = vmatprep.subr.bf16.mxu0 %v1644
  %1704 = vmatpush1.bf16.msra.mxu0 %v1643
  %1705 = vmatprep.subr.bf16.mxu0 %v1648
  %1706 = vmatpush1.bf16.msra.mxu0 %v1647
  %1707 = vmatprep.subr.bf16.mxu0 %v1652
  %1708 = vmatpush1.bf16.msra.mxu0 %v1651
  %1709 = vmatprep.subr.bf16.mxu0 %v1656
  %1710 = vmatpush1.bf16.msra.mxu0 %v1655
  %1711 = vmatprep.subr.bf16.mxu0 %v1660
  %1712 = vmatpush1.bf16.msra.mxu0 %v1659
  %1713 = vmatprep.subr.bf16.mxu0 %v1664
  %1714 = vmatpush1.bf16.msra.mxu0 %v1663
  %1715 = vmatprep.subr.bf16.mxu0 0
  %1716 = vmatpush1.bf16.msra.mxu0 0
  %1717 = vmatprep.subr.bf16.mxu0 0
  %1718 = vmatpush1.bf16.msra.mxu0 0
  %1719 = vmatprep.subr.bf16.mxu0 0
  %1720 = vmatpush1.bf16.msra.mxu0 0
  %1721 = vmatprep.subr.bf16.mxu0 0
  %1722 = vmatpush1.bf16.msra.mxu0 0
  %1723 = vmatprep.subr.bf16.mxu0 0
  %1724 = vmatpush1.bf16.msra.mxu0 0
  %1725 = vmatprep.subr.bf16.mxu0 0
  %1726 = vmatpush1.bf16.msra.mxu0 0
  %1727 = vmatprep.subr.bf16.mxu0 0
  %1728 = vmatpush1.bf16.msra.mxu0 0
  %1729 = vmatprep.subr.bf16.mxu0 0
  %1730 = vmatpush1.bf16.msra.mxu0 0
  %1731 = vmatprep.mubr.bf16.mxu0 0
  %1732 = vmatmul.mubr.bf16.gmra.mrb[0].mxu0 %v1506
  %v1733 = vpop.f32.mrb[0].mxu0
  %v1734 = vadd.f32 0.0, %v1733
  %v1735 = vpop.f32.mrb[0].mxu0
  %v1736 = vadd.f32 0.0, %v1735
  %v1737 = vpop.f32.mrb[0].mxu0
  %v1738 = vadd.f32 0.0, %v1737
  %v1739 = vpop.f32.mrb[0].mxu0
  %v1740 = vadd.f32 0.0, %v1739
  %1741 = vdwg.mxu0
  %1742 = vmatprep.subr.bf16.mxu0 %v1638
  %1743 = vmatpush1.bf16.msra.mxu0 %v1637
  %1744 = vmatprep.subr.bf16.mxu0 %v1642
  %1745 = vmatpush1.bf16.msra.mxu0 %v1641
  %1746 = vmatprep.subr.bf16.mxu0 %v1646
  %1747 = vmatpush1.bf16.msra.mxu0 %v1645
  %1748 = vmatprep.subr.bf16.mxu0 %v1650
  %1749 = vmatpush1.bf16.msra.mxu0 %v1649
  %1750 = vmatprep.subr.bf16.mxu0 %v1654
  %1751 = vmatpush1.bf16.msra.mxu0 %v1653
  %1752 = vmatprep.subr.bf16.mxu0 %v1658
  %1753 = vmatpush1.bf16.msra.mxu0 %v1657
  %1754 = vmatprep.subr.bf16.mxu0 %v1662
  %1755 = vmatpush1.bf16.msra.mxu0 %v1661
  %1756 = vmatprep.subr.bf16.mxu0 %v1666
  %1757 = vmatpush1.bf16.msra.mxu0 %v1665
  %1758 = vmatprep.subr.bf16.mxu0 0
  %1759 = vmatpush1.bf16.msra.mxu0 0
  %1760 = vmatprep.subr.bf16.mxu0 0
  %1761 = vmatpush1.bf16.msra.mxu0 0
  %1762 = vmatprep.subr.bf16.mxu0 0
  %1763 = vmatpush1.bf16.msra.mxu0 0
  %1764 = vmatprep.subr.bf16.mxu0 0
  %1765 = vmatpush1.bf16.msra.mxu0 0
  %1766 = vmatprep.subr.bf16.mxu0 0
  %1767 = vmatpush1.bf16.msra.mxu0 0
  %1768 = vmatprep.subr.bf16.mxu0 0
  %1769 = vmatpush1.bf16.msra.mxu0 0
  %1770 = vmatprep.subr.bf16.mxu0 0
  %1771 = vmatpush1.bf16.msra.mxu0 0
  %1772 = vmatprep.subr.bf16.mxu0 0
  %1773 = vmatpush1.bf16.msra.mxu0 0
  %1774 = vmatprep.mubr.bf16.mxu0 0
  %1775 = vmatmul.mubr.bf16.gmra.mrb[0].mxu0 %v1506
  %v1776 = vpop.f32.mrb[0].mxu0
  %v1777 = vadd.f32 0.0, %v1776
  %v1778 = vpop.f32.mrb[0].mxu0
  %v1779 = vadd.f32 0.0, %v1778
  %v1780 = vpop.f32.mrb[0].mxu0
  %v1781 = vadd.f32 0.0, %v1780
  %v1782 = vpop.f32.mrb[0].mxu0
  %v1783 = vadd.f32 0.0, %v1782
  %1784 = vdwg.mxu0
  %v1785 = vadd.f32 %v1498, %v1734
  %v1786 = vadd.f32 %v1499, %v1736
  %v1787 = vadd.f32 %v1500, %v1777
  %v1788 = vadd.f32 %v1501, %v1779
  %v1789 = vadd.f32 %v1502, %v1738
  %v1790 = vadd.f32 %v1503, %v1740
  %v1791 = vadd.f32 %v1504, %v1781
  %v1792 = vadd.f32 %v1505, %v1783
  %v1793 = vxor.u32 %v1785, 2147483648
  %v1794 = vxor.u32 %v1789, 2147483648
  %v1795 = vmul.f32 %v1793, 1.442695
  %v1796 = vpow.pop %v1795
  %v1797 = vmul.f32 %v1794, 1.442695
  %v1798 = vpow.pop %v1797
  %v1799 = vadd.f32 %v1796, 1.0
  %v1800 = vadd.f32 %v1798, 1.0
  %v1801 = vrcp.pop %v1799
  %v1802 = vmul.f32 1.0, %v1801
  %v1803 = vrcp.pop %v1800
  %v1804 = vmul.f32 1.0, %v1803
  %v1805 = vxor.u32 %v1786, 2147483648
  %v1806 = vxor.u32 %v1790, 2147483648
  %v1807 = vmul.f32 %v1805, 1.442695
  %v1808 = vpow.pop %v1807
  %v1809 = vmul.f32 %v1806, 1.442695
  %v1810 = vpow.pop %v1809
  %v1811 = vadd.f32 %v1808, 1.0
  %v1812 = vadd.f32 %v1810, 1.0
  %v1813 = vrcp.pop %v1811
  %v1814 = vmul.f32 1.0, %v1813
  %v1815 = vrcp.pop %v1812
  %v1816 = vmul.f32 1.0, %v1815
  %v1817 = vtanh.pop %v1787
  %v1818 = vtanh.pop %v1791
  %v1819 = vxor.u32 %v1788, 2147483648
  %v1820 = vxor.u32 %v1792, 2147483648
  %v1821 = vmul.f32 %v1819, 1.442695
  %v1822 = vpow.pop %v1821
  %v1823 = vmul.f32 %v1820, 1.442695
  %v1824 = vpow.pop %v1823
  %v1825 = vadd.f32 %v1822, 1.0
  %v1826 = vadd.f32 %v1824, 1.0
  %v1827 = vrcp.pop %v1825
  %v1828 = vmul.f32 1.0, %v1827
  %v1829 = vrcp.pop %v1826
  %v1830 = vmul.f32 1.0, %v1829
  %v1831 = vmul.f32 %v1814, %v1486
  %v1832 = vmul.f32 %v1816, %v1487
  %v1833 = vmul.f32 %v1802, %v1817
  %v1834 = vmul.f32 %v1804, %v1818
  %v1835 = vadd.f32 %v1831, %v1833
  %v1836 = vadd.f32 %v1832, %v1834
  %v1837 = vtanh.pop %v1835
  %v1838 = vtanh.pop %v1836
  %v1839 = vmul.f32 %v1828, %v1837
  %v1840 = vmul.f32 %v1830, %v1838
  %s1841 = scalar_lea.vmem %s4, 48
  %1842 = vst [vmem:[%s1841] sm:$0xff] %v1839
  %1843 = vst [vmem:[%s1841 + $0x8] sm:$0xff] %v1840
  %s1844 = smul.u32 8, 4
  %s1845 = smul.addr %s1844, 8
  %s1846 = scalar_lea.vmem [#allocation2], %s1845
  %v1847 = vld [vmem:[%s1846] sm:$0xff]
  %v1848 = vld [vmem:[%s1846 + $0x8] sm:$0xff]
  %v1849 = vld [vmem:[%s1846 + $0x10] sm:$0xff]
  %v1850 = vld [vmem:[%s1846 + $0x18] sm:$0xff]
  %v1851 = vld [vmem:[%s1846 + $0x20] sm:$0xff]
  %v1852 = vld [vmem:[%s1846 + $0x28] sm:$0xff]
  %v1853 = vld [vmem:[%s1846 + $0x30] sm:$0xff]
  %v1854 = vld [vmem:[%s1846 + $0x38] sm:$0xff]
  %v1855 = vpack.c.bf16 %v1840, %v1839
  %v1856 = vld [vmem:[%s2] sm:$0xff]
  %v1857 = vld [vmem:[%s2 + $0x8] sm:$0xff]
  %v1858 = vld [vmem:[%s2 + $0x10] sm:$0xff]
  %v1859 = vld [vmem:[%s2 + $0x18] sm:$0xff]
  %v1860 = vld [vmem:[%s2 + $0x20] sm:$0xff]
  %v1861 = vld [vmem:[%s2 + $0x28] sm:$0xff]
  %v1862 = vld [vmem:[%s2 + $0x30] sm:$0xff]
  %v1863 = vld [vmem:[%s2 + $0x38] sm:$0xff]
  %v1864 = vld [vmem:[%s2 + $0x40] sm:$0xff]
  %v1865 = vld [vmem:[%s2 + $0x48] sm:$0xff]
  %v1866 = vld [vmem:[%s2 + $0x50] sm:$0xff]
  %v1867 = vld [vmem:[%s2 + $0x58] sm:$0xff]
  %v1868 = vld [vmem:[%s2 + $0x60] sm:$0xff]
  %v1869 = vld [vmem:[%s2 + $0x68] sm:$0xff]
  %v1870 = vld [vmem:[%s2 + $0x70] sm:$0xff]
  %v1871 = vld [vmem:[%s2 + $0x78] sm:$0xff]
  %v1872 = vld [vmem:[%s2 + $0x80] sm:$0xff]
  %v1873 = vld [vmem:[%s2 + $0x88] sm:$0xff]
  %v1874 = vld [vmem:[%s2 + $0x90] sm:$0xff]
  %v1875 = vld [vmem:[%s2 + $0x98] sm:$0xff]
  %v1876 = vld [vmem:[%s2 + $0xa0] sm:$0xff]
  %v1877 = vld [vmem:[%s2 + $0xa8] sm:$0xff]
  %v1878 = vld [vmem:[%s2 + $0xb0] sm:$0xff]
  %v1879 = vld [vmem:[%s2 + $0xb8] sm:$0xff]
  %v1880 = vld [vmem:[%s2 + $0xc0] sm:$0xff]
  %v1881 = vld [vmem:[%s2 + $0xc8] sm:$0xff]
  %v1882 = vld [vmem:[%s2 + $0xd0] sm:$0xff]
  %v1883 = vld [vmem:[%s2 + $0xd8] sm:$0xff]
  %v1884 = vld [vmem:[%s2 + $0xe0] sm:$0xff]
  %v1885 = vld [vmem:[%s2 + $0xe8] sm:$0xff]
  %v1886 = vld [vmem:[%s2 + $0xf0] sm:$0xff]
  %v1887 = vld [vmem:[%s2 + $0xf8] sm:$0xff]
  %v1920 = vunpack.c.l.b16 %v1856
  %v1921 = vunpack.c.h.b16 %v1856
  %v1922 = vunpack.c.l.b16 %v1857
  %v1923 = vunpack.c.h.b16 %v1857
  %v1924 = vunpack.c.l.b16 %v1858
  %v1925 = vunpack.c.h.b16 %v1858
  %v1926 = vunpack.c.l.b16 %v1859
  %v1927 = vunpack.c.h.b16 %v1859
  %v1928 = vunpack.c.l.b16 %v1860
  %v1929 = vunpack.c.h.b16 %v1860
  %v1930 = vunpack.c.l.b16 %v1861
  %v1931 = vunpack.c.h.b16 %v1861
  %v1932 = vunpack.c.l.b16 %v1862
  %v1933 = vunpack.c.h.b16 %v1862
  %v1934 = vunpack.c.l.b16 %v1863
  %v1935 = vunpack.c.h.b16 %v1863
  %v1936 = vunpack.c.l.b16 %v1864
  %v1937 = vunpack.c.h.b16 %v1864
  %v1938 = vunpack.c.l.b16 %v1865
  %v1939 = vunpack.c.h.b16 %v1865
  %v1940 = vunpack.c.l.b16 %v1866
  %v1941 = vunpack.c.h.b16 %v1866
  %v1942 = vunpack.c.l.b16 %v1867
  %v1943 = vunpack.c.h.b16 %v1867
  %v1944 = vunpack.c.l.b16 %v1868
  %v1945 = vunpack.c.h.b16 %v1868
  %v1946 = vunpack.c.l.b16 %v1869
  %v1947 = vunpack.c.h.b16 %v1869
  %v1948 = vunpack.c.l.b16 %v1870
  %v1949 = vunpack.c.h.b16 %v1870
  %v1950 = vunpack.c.l.b16 %v1871
  %v1951 = vunpack.c.h.b16 %v1871
  %v1952 = vunpack.c.l.b16 %v1872
  %v1953 = vunpack.c.h.b16 %v1872
  %v1954 = vunpack.c.l.b16 %v1873
  %v1955 = vunpack.c.h.b16 %v1873
  %v1956 = vunpack.c.l.b16 %v1874
  %v1957 = vunpack.c.h.b16 %v1874
  %v1958 = vunpack.c.l.b16 %v1875
  %v1959 = vunpack.c.h.b16 %v1875
  %v1960 = vunpack.c.l.b16 %v1876
  %v1961 = vunpack.c.h.b16 %v1876
  %v1962 = vunpack.c.l.b16 %v1877
  %v1963 = vunpack.c.h.b16 %v1877
  %v1964 = vunpack.c.l.b16 %v1878
  %v1965 = vunpack.c.h.b16 %v1878
  %v1966 = vunpack.c.l.b16 %v1879
  %v1967 = vunpack.c.h.b16 %v1879
  %v1968 = vunpack.c.l.b16 %v1880
  %v1969 = vunpack.c.h.b16 %v1880
  %v1970 = vunpack.c.l.b16 %v1881
  %v1971 = vunpack.c.h.b16 %v1881
  %v1972 = vunpack.c.l.b16 %v1882
  %v1973 = vunpack.c.h.b16 %v1882
  %v1974 = vunpack.c.l.b16 %v1883
  %v1975 = vunpack.c.h.b16 %v1883
  %v1976 = vunpack.c.l.b16 %v1884
  %v1977 = vunpack.c.h.b16 %v1884
  %v1978 = vunpack.c.l.b16 %v1885
  %v1979 = vunpack.c.h.b16 %v1885
  %v1980 = vunpack.c.l.b16 %v1886
  %v1981 = vunpack.c.h.b16 %v1886
  %v1982 = vunpack.c.l.b16 %v1887
  %v1983 = vunpack.c.h.b16 %v1887
  %v1984 = vpack.c.b16 %v1924, %v1920
  %v1985 = vpack.c.b16 %v1925, %v1921
  %v1986 = vpack.c.b16 %v1926, %v1922
  %v1987 = vpack.c.b16 %v1927, %v1923
  %v1988 = vpack.c.b16 %v1932, %v1928
  %v1989 = vpack.c.b16 %v1933, %v1929
  %v1990 = vpack.c.b16 %v1934, %v1930
  %v1991 = vpack.c.b16 %v1935, %v1931
  %v1992 = vpack.c.b16 %v1940, %v1936
  %v1993 = vpack.c.b16 %v1941, %v1937
  %v1994 = vpack.c.b16 %v1942, %v1938
  %v1995 = vpack.c.b16 %v1943, %v1939
  %v1996 = vpack.c.b16 %v1948, %v1944
  %v1997 = vpack.c.b16 %v1949, %v1945
  %v1998 = vpack.c.b16 %v1950, %v1946
  %v1999 = vpack.c.b16 %v1951, %v1947
  %v2000 = vpack.c.b16 %v1956, %v1952
  %v2001 = vpack.c.b16 %v1957, %v1953
  %v2002 = vpack.c.b16 %v1958, %v1954
  %v2003 = vpack.c.b16 %v1959, %v1955
  %v2004 = vpack.c.b16 %v1964, %v1960
  %v2005 = vpack.c.b16 %v1965, %v1961
  %v2006 = vpack.c.b16 %v1966, %v1962
  %v2007 = vpack.c.b16 %v1967, %v1963
  %v2008 = vpack.c.b16 %v1972, %v1968
  %v2009 = vpack.c.b16 %v1973, %v1969
  %v2010 = vpack.c.b16 %v1974, %v1970
  %v2011 = vpack.c.b16 %v1975, %v1971
  %v2012 = vpack.c.b16 %v1980, %v1976
  %v2013 = vpack.c.b16 %v1981, %v1977
  %v2014 = vpack.c.b16 %v1982, %v1978
  %v2015 = vpack.c.b16 %v1983, %v1979
  %2048 = vmatprep.subr.bf16.mxu0 %v1985
  %2049 = vmatpush1.bf16.msra.mxu0 %v1984
  %2050 = vmatprep.subr.bf16.mxu0 %v1989
  %2051 = vmatpush1.bf16.msra.mxu0 %v1988
  %2052 = vmatprep.subr.bf16.mxu0 %v1993
  %2053 = vmatpush1.bf16.msra.mxu0 %v1992
  %2054 = vmatprep.subr.bf16.mxu0 %v1997
  %2055 = vmatpush1.bf16.msra.mxu0 %v1996
  %2056 = vmatprep.subr.bf16.mxu0 %v2001
  %2057 = vmatpush1.bf16.msra.mxu0 %v2000
  %2058 = vmatprep.subr.bf16.mxu0 %v2005
  %2059 = vmatpush1.bf16.msra.mxu0 %v2004
  %2060 = vmatprep.subr.bf16.mxu0 %v2009
  %2061 = vmatpush1.bf16.msra.mxu0 %v2008
  %2062 = vmatprep.subr.bf16.mxu0 %v2013
  %2063 = vmatpush1.bf16.msra.mxu0 %v2012
  %2064 = vmatprep.subr.bf16.mxu0 0
  %2065 = vmatpush1.bf16.msra.mxu0 0
  %2066 = vmatprep.subr.bf16.mxu0 0
  %2067 = vmatpush1.bf16.msra.mxu0 0
  %2068 = vmatprep.subr.bf16.mxu0 0
  %2069 = vmatpush1.bf16.msra.mxu0 0
  %2070 = vmatprep.subr.bf16.mxu0 0
  %2071 = vmatpush1.bf16.msra.mxu0 0
  %2072 = vmatprep.subr.bf16.mxu0 0
  %2073 = vmatpush1.bf16.msra.mxu0 0
  %2074 = vmatprep.subr.bf16.mxu0 0
  %2075 = vmatpush1.bf16.msra.mxu0 0
  %2076 = vmatprep.subr.bf16.mxu0 0
  %2077 = vmatpush1.bf16.msra.mxu0 0
  %2078 = vmatprep.subr.bf16.mxu0 0
  %2079 = vmatpush1.bf16.msra.mxu0 0
  %2080 = vmatprep.mubr.bf16.mxu0 0
  %2081 = vmatmul.mubr.bf16.gmra.mrb[0].mxu0 %v1855
  %v2082 = vpop.f32.mrb[0].mxu0
  %v2083 = vadd.f32 0.0, %v2082
  %v2084 = vpop.f32.mrb[0].mxu0
  %v2085 = vadd.f32 0.0, %v2084
  %v2086 = vpop.f32.mrb[0].mxu0
  %v2087 = vadd.f32 0.0, %v2086
  %v2088 = vpop.f32.mrb[0].mxu0
  %v2089 = vadd.f32 0.0, %v2088
  %2090 = vdwg.mxu0
  %2091 = vmatprep.subr.bf16.mxu0 %v1987
  %2092 = vmatpush1.bf16.msra.mxu0 %v1986
  %2093 = vmatprep.subr.bf16.mxu0 %v1991
  %2094 = vmatpush1.bf16.msra.mxu0 %v1990
  %2095 = vmatprep.subr.bf16.mxu0 %v1995
  %2096 = vmatpush1.bf16.msra.mxu0 %v1994
  %2097 = vmatprep.subr.bf16.mxu0 %v1999
  %2098 = vmatpush1.bf16.msra.mxu0 %v1998
  %2099 = vmatprep.subr.bf16.mxu0 %v2003
  %2100 = vmatpush1.bf16.msra.mxu0 %v2002
  %2101 = vmatprep.subr.bf16.mxu0 %v2007
  %2102 = vmatpush1.bf16.msra.mxu0 %v2006
  %2103 = vmatprep.subr.bf16.mxu0 %v2011
  %2104 = vmatpush1.bf16.msra.mxu0 %v2010
  %2105 = vmatprep.subr.bf16.mxu0 %v2015
  %2106 = vmatpush1.bf16.msra.mxu0 %v2014
  %2107 = vmatprep.subr.bf16.mxu0 0
  %2108 = vmatpush1.bf16.msra.mxu0 0
  %2109 = vmatprep.subr.bf16.mxu0 0
  %2110 = vmatpush1.bf16.msra.mxu0 0
  %2111 = vmatprep.subr.bf16.mxu0 0
  %2112 = vmatpush1.bf16.msra.mxu0 0
  %2113 = vmatprep.subr.bf16.mxu0 0
  %2114 = vmatpush1.bf16.msra.mxu0 0
  %2115 = vmatprep.subr.bf16.mxu0 0
  %2116 = vmatpush1.bf16.msra.mxu0 0
  %2117 = vmatprep.subr.bf16.mxu0 0
  %2118 = vmatpush1.bf16.msra.mxu0 0
  %2119 = vmatprep.subr.bf16.mxu0 0
  %2120 = vmatpush1.bf16.msra.mxu0 0
  %2121 = vmatprep.subr.bf16.mxu0 0
  %2122 = vmatpush1.bf16.msra.mxu0 0
  %2123 = vmatprep.mubr.bf16.mxu0 0
  %2124 = vmatmul.mubr.bf16.gmra.mrb[0].mxu0 %v1855
  %v2125 = vpop.f32.mrb[0].mxu0
  %v2126 = vadd.f32 0.0, %v2125
  %v2127 = vpop.f32.mrb[0].mxu0
  %v2128 = vadd.f32 0.0, %v2127
  %v2129 = vpop.f32.mrb[0].mxu0
  %v2130 = vadd.f32 0.0, %v2129
  %v2131 = vpop.f32.mrb[0].mxu0
  %v2132 = vadd.f32 0.0, %v2131
  %2133 = vdwg.mxu0
  %v2134 = vadd.f32 %v1847, %v2083
  %v2135 = vadd.f32 %v1848, %v2085
  %v2136 = vadd.f32 %v1849, %v2126
  %v2137 = vadd.f32 %v1850, %v2128
  %v2138 = vadd.f32 %v1851, %v2087
  %v2139 = vadd.f32 %v1852, %v2089
  %v2140 = vadd.f32 %v1853, %v2130
  %v2141 = vadd.f32 %v1854, %v2132
  %v2142 = vxor.u32 %v2134, 2147483648
  %v2143 = vxor.u32 %v2138, 2147483648
  %v2144 = vmul.f32 %v2142, 1.442695
  %v2145 = vpow.pop %v2144
  %v2146 = vmul.f32 %v2143, 1.442695
  %v2147 = vpow.pop %v2146
  %v2148 = vadd.f32 %v2145, 1.0
  %v2149 = vadd.f32 %v2147, 1.0
  %v2150 = vrcp.pop %v2148
  %v2151 = vmul.f32 1.0, %v2150
  %v2152 = vrcp.pop %v2149
  %v2153 = vmul.f32 1.0, %v2152
  %v2154 = vxor.u32 %v2135, 2147483648
  %v2155 = vxor.u32 %v2139, 2147483648
  %v2156 = vmul.f32 %v2154, 1.442695
  %v2157 = vpow.pop %v2156
  %v2158 = vmul.f32 %v2155, 1.442695
  %v2159 = vpow.pop %v2158
  %v2160 = vadd.f32 %v2157, 1.0
  %v2161 = vadd.f32 %v2159, 1.0
  %v2162 = vrcp.pop %v2160
  %v2163 = vmul.f32 1.0, %v2162
  %v2164 = vrcp.pop %v2161
  %v2165 = vmul.f32 1.0, %v2164
  %v2166 = vtanh.pop %v2136
  %v2167 = vtanh.pop %v2140
  %v2168 = vxor.u32 %v2137, 2147483648
  %v2169 = vxor.u32 %v2141, 2147483648
  %v2170 = vmul.f32 %v2168, 1.442695
  %v2171 = vpow.pop %v2170
  %v2172 = vmul.f32 %v2169, 1.442695
  %v2173 = vpow.pop %v2172
  %v2174 = vadd.f32 %v2171, 1.0
  %v2175 = vadd.f32 %v2173, 1.0
  %v2176 = vrcp.pop %v2174
  %v2177 = vmul.f32 1.0, %v2176
  %v2178 = vrcp.pop %v2175
  %v2179 = vmul.f32 1.0, %v2178
  %v2180 = vmul.f32 %v2163, %v1835
  %v2181 = vmul.f32 %v2165, %v1836
  %v2182 = vmul.f32 %v2151, %v2166
  %v2183 = vmul.f32 %v2153, %v2167
  %v2184 = vadd.f32 %v2180, %v2182
  %v2185 = vadd.f32 %v2181, %v2183
  %v2186 = vtanh.pop %v2184
  %v2187 = vtanh.pop %v2185
  %v2188 = vmul.f32 %v2177, %v2186
  %v2189 = vmul.f32 %v2179, %v2187
  %s2190 = scalar_lea.vmem %s4, 64
  %2191 = vst [vmem:[%s2190] sm:$0xff] %v2188
  %2192 = vst [vmem:[%s2190 + $0x8] sm:$0xff] %v2189
  %s2193 = smul.u32 10, 4
  %s2194 = smul.addr %s2193, 8
  %s2195 = scalar_lea.vmem [#allocation2], %s2194
  %v2196 = vld [vmem:[%s2195] sm:$0xff]
  %v2197 = vld [vmem:[%s2195 + $0x8] sm:$0xff]
  %v2198 = vld [vmem:[%s2195 + $0x10] sm:$0xff]
  %v2199 = vld [vmem:[%s2195 + $0x18] sm:$0xff]
  %v2200 = vld [vmem:[%s2195 + $0x20] sm:$0xff]
  %v2201 = vld [vmem:[%s2195 + $0x28] sm:$0xff]
  %v2202 = vld [vmem:[%s2195 + $0x30] sm:$0xff]
  %v2203 = vld [vmem:[%s2195 + $0x38] sm:$0xff]
  %v2204 = vpack.c.bf16 %v2189, %v2188
  %v2205 = vld [vmem:[%s2] sm:$0xff]
  %v2206 = vld [vmem:[%s2 + $0x8] sm:$0xff]
  %v2207 = vld [vmem:[%s2 + $0x10] sm:$0xff]
  %v2208 = vld [vmem:[%s2 + $0x18] sm:$0xff]
  %v2209 = vld [vmem:[%s2 + $0x20] sm:$0xff]
  %v2210 = vld [vmem:[%s2 + $0x28] sm:$0xff]
  %v2211 = vld [vmem:[%s2 + $0x30] sm:$0xff]
  %v2212 = vld [vmem:[%s2 + $0x38] sm:$0xff]
  %v2213 = vld [vmem:[%s2 + $0x40] sm:$0xff]
  %v2214 = vld [vmem:[%s2 + $0x48] sm:$0xff]
  %v2215 = vld [vmem:[%s2 + $0x50] sm:$0xff]
  %v2216 = vld [vmem:[%s2 + $0x58] sm:$0xff]
  %v2217 = vld [vmem:[%s2 + $0x60] sm:$0xff]
  %v2218 = vld [vmem:[%s2 + $0x68] sm:$0xff]
  %v2219 = vld [vmem:[%s2 + $0x70] sm:$0xff]
  %v2220 = vld [vmem:[%s2 + $0x78] sm:$0xff]
  %v2221 = vld [vmem:[%s2 + $0x80] sm:$0xff]
  %v2222 = vld [vmem:[%s2 + $0x88] sm:$0xff]
  %v2223 = vld [vmem:[%s2 + $0x90] sm:$0xff]
  %v2224 = vld [vmem:[%s2 + $0x98] sm:$0xff]
  %v2225 = vld [vmem:[%s2 + $0xa0] sm:$0xff]
  %v2226 = vld [vmem:[%s2 + $0xa8] sm:$0xff]
  %v2227 = vld [vmem:[%s2 + $0xb0] sm:$0xff]
  %v2228 = vld [vmem:[%s2 + $0xb8] sm:$0xff]
  %v2229 = vld [vmem:[%s2 + $0xc0] sm:$0xff]
  %v2230 = vld [vmem:[%s2 + $0xc8] sm:$0xff]
  %v2231 = vld [vmem:[%s2 + $0xd0] sm:$0xff]
  %v2232 = vld [vmem:[%s2 + $0xd8] sm:$0xff]
  %v2233 = vld [vmem:[%s2 + $0xe0] sm:$0xff]
  %v2234 = vld [vmem:[%s2 + $0xe8] sm:$0xff]
  %v2235 = vld [vmem:[%s2 + $0xf0] sm:$0xff]
  %v2236 = vld [vmem:[%s2 + $0xf8] sm:$0xff]
  %v2269 = vunpack.c.l.b16 %v2205
  %v2270 = vunpack.c.h.b16 %v2205
  %v2271 = vunpack.c.l.b16 %v2206
  %v2272 = vunpack.c.h.b16 %v2206
  %v2273 = vunpack.c.l.b16 %v2207
  %v2274 = vunpack.c.h.b16 %v2207
  %v2275 = vunpack.c.l.b16 %v2208
  %v2276 = vunpack.c.h.b16 %v2208
  %v2277 = vunpack.c.l.b16 %v2209
  %v2278 = vunpack.c.h.b16 %v2209
  %v2279 = vunpack.c.l.b16 %v2210
  %v2280 = vunpack.c.h.b16 %v2210
  %v2281 = vunpack.c.l.b16 %v2211
  %v2282 = vunpack.c.h.b16 %v2211
  %v2283 = vunpack.c.l.b16 %v2212
  %v2284 = vunpack.c.h.b16 %v2212
  %v2285 = vunpack.c.l.b16 %v2213
  %v2286 = vunpack.c.h.b16 %v2213
  %v2287 = vunpack.c.l.b16 %v2214
  %v2288 = vunpack.c.h.b16 %v2214
  %v2289 = vunpack.c.l.b16 %v2215
  %v2290 = vunpack.c.h.b16 %v2215
  %v2291 = vunpack.c.l.b16 %v2216
  %v2292 = vunpack.c.h.b16 %v2216
  %v2293 = vunpack.c.l.b16 %v2217
  %v2294 = vunpack.c.h.b16 %v2217
  %v2295 = vunpack.c.l.b16 %v2218
  %v2296 = vunpack.c.h.b16 %v2218
  %v2297 = vunpack.c.l.b16 %v2219
  %v2298 = vunpack.c.h.b16 %v2219
  %v2299 = vunpack.c.l.b16 %v2220
  %v2300 = vunpack.c.h.b16 %v2220
  %v2301 = vunpack.c.l.b16 %v2221
  %v2302 = vunpack.c.h.b16 %v2221
  %v2303 = vunpack.c.l.b16 %v2222
  %v2304 = vunpack.c.h.b16 %v2222
  %v2305 = vunpack.c.l.b16 %v2223
  %v2306 = vunpack.c.h.b16 %v2223
  %v2307 = vunpack.c.l.b16 %v2224
  %v2308 = vunpack.c.h.b16 %v2224
  %v2309 = vunpack.c.l.b16 %v2225
  %v2310 = vunpack.c.h.b16 %v2225
  %v2311 = vunpack.c.l.b16 %v2226
  %v2312 = vunpack.c.h.b16 %v2226
  %v2313 = vunpack.c.l.b16 %v2227
  %v2314 = vunpack.c.h.b16 %v2227
  %v2315 = vunpack.c.l.b16 %v2228
  %v2316 = vunpack.c.h.b16 %v2228
  %v2317 = vunpack.c.l.b16 %v2229
  %v2318 = vunpack.c.h.b16 %v2229
  %v2319 = vunpack.c.l.b16 %v2230
  %v2320 = vunpack.c.h.b16 %v2230
  %v2321 = vunpack.c.l.b16 %v2231
  %v2322 = vunpack.c.h.b16 %v2231
  %v2323 = vunpack.c.l.b16 %v2232
  %v2324 = vunpack.c.h.b16 %v2232
  %v2325 = vunpack.c.l.b16 %v2233
  %v2326 = vunpack.c.h.b16 %v2233
  %v2327 = vunpack.c.l.b16 %v2234
  %v2328 = vunpack.c.h.b16 %v2234
  %v2329 = vunpack.c.l.b16 %v2235
  %v2330 = vunpack.c.h.b16 %v2235
  %v2331 = vunpack.c.l.b16 %v2236
  %v2332 = vunpack.c.h.b16 %v2236
  %v2333 = vpack.c.b16 %v2273, %v2269
  %v2334 = vpack.c.b16 %v2274, %v2270
  %v2335 = vpack.c.b16 %v2275, %v2271
  %v2336 = vpack.c.b16 %v2276, %v2272
  %v2337 = vpack.c.b16 %v2281, %v2277
  %v2338 = vpack.c.b16 %v2282, %v2278
  %v2339 = vpack.c.b16 %v2283, %v2279
  %v2340 = vpack.c.b16 %v2284, %v2280
  %v2341 = vpack.c.b16 %v2289, %v2285
  %v2342 = vpack.c.b16 %v2290, %v2286
  %v2343 = vpack.c.b16 %v2291, %v2287
  %v2344 = vpack.c.b16 %v2292, %v2288
  %v2345 = vpack.c.b16 %v2297, %v2293
  %v2346 = vpack.c.b16 %v2298, %v2294
  %v2347 = vpack.c.b16 %v2299, %v2295
  %v2348 = vpack.c.b16 %v2300, %v2296
  %v2349 = vpack.c.b16 %v2305, %v2301
  %v2350 = vpack.c.b16 %v2306, %v2302
  %v2351 = vpack.c.b16 %v2307, %v2303
  %v2352 = vpack.c.b16 %v2308, %v2304
  %v2353 = vpack.c.b16 %v2313, %v2309
  %v2354 = vpack.c.b16 %v2314, %v2310
  %v2355 = vpack.c.b16 %v2315, %v2311
  %v2356 = vpack.c.b16 %v2316, %v2312
  %v2357 = vpack.c.b16 %v2321, %v2317
  %v2358 = vpack.c.b16 %v2322, %v2318
  %v2359 = vpack.c.b16 %v2323, %v2319
  %v2360 = vpack.c.b16 %v2324, %v2320
  %v2361 = vpack.c.b16 %v2329, %v2325
  %v2362 = vpack.c.b16 %v2330, %v2326
  %v2363 = vpack.c.b16 %v2331, %v2327
  %v2364 = vpack.c.b16 %v2332, %v2328
  %2397 = vmatprep.subr.bf16.mxu0 %v2334
  %2398 = vmatpush1.bf16.msra.mxu0 %v2333
  %2399 = vmatprep.subr.bf16.mxu0 %v2338
  %2400 = vmatpush1.bf16.msra.mxu0 %v2337
  %2401 = vmatprep.subr.bf16.mxu0 %v2342
  %2402 = vmatpush1.bf16.msra.mxu0 %v2341
  %2403 = vmatprep.subr.bf16.mxu0 %v2346
  %2404 = vmatpush1.bf16.msra.mxu0 %v2345
  %2405 = vmatprep.subr.bf16.mxu0 %v2350
  %2406 = vmatpush1.bf16.msra.mxu0 %v2349
  %2407 = vmatprep.subr.bf16.mxu0 %v2354
  %2408 = vmatpush1.bf16.msra.mxu0 %v2353
  %2409 = vmatprep.subr.bf16.mxu0 %v2358
  %2410 = vmatpush1.bf16.msra.mxu0 %v2357
  %2411 = vmatprep.subr.bf16.mxu0 %v2362
  %2412 = vmatpush1.bf16.msra.mxu0 %v2361
  %2413 = vmatprep.subr.bf16.mxu0 0
  %2414 = vmatpush1.bf16.msra.mxu0 0
  %2415 = vmatprep.subr.bf16.mxu0 0
  %2416 = vmatpush1.bf16.msra.mxu0 0
  %2417 = vmatprep.subr.bf16.mxu0 0
  %2418 = vmatpush1.bf16.msra.mxu0 0
  %2419 = vmatprep.subr.bf16.mxu0 0
  %2420 = vmatpush1.bf16.msra.mxu0 0
  %2421 = vmatprep.subr.bf16.mxu0 0
  %2422 = vmatpush1.bf16.msra.mxu0 0
  %2423 = vmatprep.subr.bf16.mxu0 0
  %2424 = vmatpush1.bf16.msra.mxu0 0
  %2425 = vmatprep.subr.bf16.mxu0 0
  %2426 = vmatpush1.bf16.msra.mxu0 0
  %2427 = vmatprep.subr.bf16.mxu0 0
  %2428 = vmatpush1.bf16.msra.mxu0 0
  %2429 = vmatprep.mubr.bf16.mxu0 0
  %2430 = vmatmul.mubr.bf16.gmra.mrb[0].mxu0 %v2204
  %v2431 = vpop.f32.mrb[0].mxu0
  %v2432 = vadd.f32 0.0, %v2431
  %v2433 = vpop.f32.mrb[0].mxu0
  %v2434 = vadd.f32 0.0, %v2433
  %v2435 = vpop.f32.mrb[0].mxu0
  %v2436 = vadd.f32 0.0, %v2435
  %v2437 = vpop.f32.mrb[0].mxu0
  %v2438 = vadd.f32 0.0, %v2437
  %2439 = vdwg.mxu0
  %2440 = vmatprep.subr.bf16.mxu0 %v2336
  %2441 = vmatpush1.bf16.msra.mxu0 %v2335
  %2442 = vmatprep.subr.bf16.mxu0 %v2340
  %2443 = vmatpush1.bf16.msra.mxu0 %v2339
  %2444 = vmatprep.subr.bf16.mxu0 %v2344
  %2445 = vmatpush1.bf16.msra.mxu0 %v2343
  %2446 = vmatprep.subr.bf16.mxu0 %v2348
  %2447 = vmatpush1.bf16.msra.mxu0 %v2347
  %2448 = vmatprep.subr.bf16.mxu0 %v2352
  %2449 = vmatpush1.bf16.msra.mxu0 %v2351
  %2450 = vmatprep.subr.bf16.mxu0 %v2356
  %2451 = vmatpush1.bf16.msra.mxu0 %v2355
  %2452 = vmatprep.subr.bf16.mxu0 %v2360
  %2453 = vmatpush1.bf16.msra.mxu0 %v2359
  %2454 = vmatprep.subr.bf16.mxu0 %v2364
  %2455 = vmatpush1.bf16.msra.mxu0 %v2363
  %2456 = vmatprep.subr.bf16.mxu0 0
  %2457 = vmatpush1.bf16.msra.mxu0 0
  %2458 = vmatprep.subr.bf16.mxu0 0
  %2459 = vmatpush1.bf16.msra.mxu0 0
  %2460 = vmatprep.subr.bf16.mxu0 0
  %2461 = vmatpush1.bf16.msra.mxu0 0
  %2462 = vmatprep.subr.bf16.mxu0 0
  %2463 = vmatpush1.bf16.msra.mxu0 0
  %2464 = vmatprep.subr.bf16.mxu0 0
  %2465 = vmatpush1.bf16.msra.mxu0 0
  %2466 = vmatprep.subr.bf16.mxu0 0
  %2467 = vmatpush1.bf16.msra.mxu0 0
  %2468 = vmatprep.subr.bf16.mxu0 0
  %2469 = vmatpush1.bf16.msra.mxu0 0
  %2470 = vmatprep.subr.bf16.mxu0 0
  %2471 = vmatpush1.bf16.msra.mxu0 0
  %2472 = vmatprep.mubr.bf16.mxu0 0
  %2473 = vmatmul.mubr.bf16.gmra.mrb[0].mxu0 %v2204
  %v2474 = vpop.f32.mrb[0].mxu0
  %v2475 = vadd.f32 0.0, %v2474
  %v2476 = vpop.f32.mrb[0].mxu0
  %v2477 = vadd.f32 0.0, %v2476
  %v2478 = vpop.f32.mrb[0].mxu0
  %v2479 = vadd.f32 0.0, %v2478
  %v2480 = vpop.f32.mrb[0].mxu0
  %v2481 = vadd.f32 0.0, %v2480
  %2482 = vdwg.mxu0
  %v2483 = vadd.f32 %v2196, %v2432
  %v2484 = vadd.f32 %v2197, %v2434
  %v2485 = vadd.f32 %v2198, %v2475
  %v2486 = vadd.f32 %v2199, %v2477
  %v2487 = vadd.f32 %v2200, %v2436
  %v2488 = vadd.f32 %v2201, %v2438
  %v2489 = vadd.f32 %v2202, %v2479
  %v2490 = vadd.f32 %v2203, %v2481
  %v2491 = vxor.u32 %v2483, 2147483648
  %v2492 = vxor.u32 %v2487, 2147483648
  %v2493 = vmul.f32 %v2491, 1.442695
  %v2494 = vpow.pop %v2493
  %v2495 = vmul.f32 %v2492, 1.442695
  %v2496 = vpow.pop %v2495
  %v2497 = vadd.f32 %v2494, 1.0
  %v2498 = vadd.f32 %v2496, 1.0
  %v2499 = vrcp.pop %v2497
  %v2500 = vmul.f32 1.0, %v2499
  %v2501 = vrcp.pop %v2498
  %v2502 = vmul.f32 1.0, %v2501
  %v2503 = vxor.u32 %v2484, 2147483648
  %v2504 = vxor.u32 %v2488, 2147483648
  %v2505 = vmul.f32 %v2503, 1.442695
  %v2506 = vpow.pop %v2505
  %v2507 = vmul.f32 %v2504, 1.442695
  %v2508 = vpow.pop %v2507
  %v2509 = vadd.f32 %v2506, 1.0
  %v2510 = vadd.f32 %v2508, 1.0
  %v2511 = vrcp.pop %v2509
  %v2512 = vmul.f32 1.0, %v2511
  %v2513 = vrcp.pop %v2510
  %v2514 = vmul.f32 1.0, %v2513
  %v2515 = vtanh.pop %v2485
  %v2516 = vtanh.pop %v2489
  %v2517 = vxor.u32 %v2486, 2147483648
  %v2518 = vxor.u32 %v2490, 2147483648
  %v2519 = vmul.f32 %v2517, 1.442695
  %v2520 = vpow.pop %v2519
  %v2521 = vmul.f32 %v2518, 1.442695
  %v2522 = vpow.pop %v2521
  %v2523 = vadd.f32 %v2520, 1.0
  %v2524 = vadd.f32 %v2522, 1.0
  %v2525 = vrcp.pop %v2523
  %v2526 = vmul.f32 1.0, %v2525
  %v2527 = vrcp.pop %v2524
  %v2528 = vmul.f32 1.0, %v2527
  %v2529 = vmul.f32 %v2512, %v2184
  %v2530 = vmul.f32 %v2514, %v2185
  %v2531 = vmul.f32 %v2500, %v2515
  %v2532 = vmul.f32 %v2502, %v2516
  %v2533 = vadd.f32 %v2529, %v2531
  %v2534 = vadd.f32 %v2530, %v2532
  %v2535 = vtanh.pop %v2533
  %v2536 = vtanh.pop %v2534
  %v2537 = vmul.f32 %v2526, %v2535
  %v2538 = vmul.f32 %v2528, %v2536
  %s2539 = scalar_lea.vmem %s4, 80
  %2540 = vst [vmem:[%s2539] sm:$0xff] %v2537
  %2541 = vst [vmem:[%s2539 + $0x8] sm:$0xff] %v2538
  %s2542 = smul.u32 12, 4
  %s2543 = smul.addr %s2542, 8
  %s2544 = scalar_lea.vmem [#allocation2], %s2543
  %v2545 = vld [vmem:[%s2544] sm:$0xff]
  %v2546 = vld [vmem:[%s2544 + $0x8] sm:$0xff]
  %v2547 = vld [vmem:[%s2544 + $0x10] sm:$0xff]
  %v2548 = vld [vmem:[%s2544 + $0x18] sm:$0xff]
  %v2549 = vld [vmem:[%s2544 + $0x20] sm:$0xff]
  %v2550 = vld [vmem:[%s2544 + $0x28] sm:$0xff]
  %v2551 = vld [vmem:[%s2544 + $0x30] sm:$0xff]
  %v2552 = vld [vmem:[%s2544 + $0x38] sm:$0xff]
  %v2553 = vpack.c.bf16 %v2538, %v2537
  %v2554 = vld [vmem:[%s2] sm:$0xff]
  %v2555 = vld [vmem:[%s2 + $0x8] sm:$0xff]
  %v2556 = vld [vmem:[%s2 + $0x10] sm:$0xff]
  %v2557 = vld [vmem:[%s2 + $0x18] sm:$0xff]
  %v2558 = vld [vmem:[%s2 + $0x20] sm:$0xff]
  %v2559 = vld [vmem:[%s2 + $0x28] sm:$0xff]
  %v2560 = vld [vmem:[%s2 + $0x30] sm:$0xff]
  %v2561 = vld [vmem:[%s2 + $0x38] sm:$0xff]
  %v2562 = vld [vmem:[%s2 + $0x40] sm:$0xff]
  %v2563 = vld [vmem:[%s2 + $0x48] sm:$0xff]
  %v2564 = vld [vmem:[%s2 + $0x50] sm:$0xff]
  %v2565 = vld [vmem:[%s2 + $0x58] sm:$0xff]
  %v2566 = vld [vmem:[%s2 + $0x60] sm:$0xff]
  %v2567 = vld [vmem:[%s2 + $0x68] sm:$0xff]
  %v2568 = vld [vmem:[%s2 + $0x70] sm:$0xff]
  %v2569 = vld [vmem:[%s2 + $0x78] sm:$0xff]
  %v2570 = vld [vmem:[%s2 + $0x80] sm:$0xff]
  %v2571 = vld [vmem:[%s2 + $0x88] sm:$0xff]
  %v2572 = vld [vmem:[%s2 + $0x90] sm:$0xff]
  %v2573 = vld [vmem:[%s2 + $0x98] sm:$0xff]
  %v2574 = vld [vmem:[%s2 + $0xa0] sm:$0xff]
  %v2575 = vld [vmem:[%s2 + $0xa8] sm:$0xff]
  %v2576 = vld [vmem:[%s2 + $0xb0] sm:$0xff]
  %v2577 = vld [vmem:[%s2 + $0xb8] sm:$0xff]
  %v2578 = vld [vmem:[%s2 + $0xc0] sm:$0xff]
  %v2579 = vld [vmem:[%s2 + $0xc8] sm:$0xff]
  %v2580 = vld [vmem:[%s2 + $0xd0] sm:$0xff]
  %v2581 = vld [vmem:[%s2 + $0xd8] sm:$0xff]
  %v2582 = vld [vmem:[%s2 + $0xe0] sm:$0xff]
  %v2583 = vld [vmem:[%s2 + $0xe8] sm:$0xff]
  %v2584 = vld [vmem:[%s2 + $0xf0] sm:$0xff]
  %v2585 = vld [vmem:[%s2 + $0xf8] sm:$0xff]
  %v2618 = vunpack.c.l.b16 %v2554
  %v2619 = vunpack.c.h.b16 %v2554
  %v2620 = vunpack.c.l.b16 %v2555
  %v2621 = vunpack.c.h.b16 %v2555
  %v2622 = vunpack.c.l.b16 %v2556
  %v2623 = vunpack.c.h.b16 %v2556
  %v2624 = vunpack.c.l.b16 %v2557
  %v2625 = vunpack.c.h.b16 %v2557
  %v2626 = vunpack.c.l.b16 %v2558
  %v2627 = vunpack.c.h.b16 %v2558
  %v2628 = vunpack.c.l.b16 %v2559
  %v2629 = vunpack.c.h.b16 %v2559
  %v2630 = vunpack.c.l.b16 %v2560
  %v2631 = vunpack.c.h.b16 %v2560
  %v2632 = vunpack.c.l.b16 %v2561
  %v2633 = vunpack.c.h.b16 %v2561
  %v2634 = vunpack.c.l.b16 %v2562
  %v2635 = vunpack.c.h.b16 %v2562
  %v2636 = vunpack.c.l.b16 %v2563
  %v2637 = vunpack.c.h.b16 %v2563
  %v2638 = vunpack.c.l.b16 %v2564
  %v2639 = vunpack.c.h.b16 %v2564
  %v2640 = vunpack.c.l.b16 %v2565
  %v2641 = vunpack.c.h.b16 %v2565
  %v2642 = vunpack.c.l.b16 %v2566
  %v2643 = vunpack.c.h.b16 %v2566
  %v2644 = vunpack.c.l.b16 %v2567
  %v2645 = vunpack.c.h.b16 %v2567
  %v2646 = vunpack.c.l.b16 %v2568
  %v2647 = vunpack.c.h.b16 %v2568
  %v2648 = vunpack.c.l.b16 %v2569
  %v2649 = vunpack.c.h.b16 %v2569
  %v2650 = vunpack.c.l.b16 %v2570
  %v2651 = vunpack.c.h.b16 %v2570
  %v2652 = vunpack.c.l.b16 %v2571
  %v2653 = vunpack.c.h.b16 %v2571
  %v2654 = vunpack.c.l.b16 %v2572
  %v2655 = vunpack.c.h.b16 %v2572
  %v2656 = vunpack.c.l.b16 %v2573
  %v2657 = vunpack.c.h.b16 %v2573
  %v2658 = vunpack.c.l.b16 %v2574
  %v2659 = vunpack.c.h.b16 %v2574
  %v2660 = vunpack.c.l.b16 %v2575
  %v2661 = vunpack.c.h.b16 %v2575
  %v2662 = vunpack.c.l.b16 %v2576
  %v2663 = vunpack.c.h.b16 %v2576
  %v2664 = vunpack.c.l.b16 %v2577
  %v2665 = vunpack.c.h.b16 %v2577
  %v2666 = vunpack.c.l.b16 %v2578
  %v2667 = vunpack.c.h.b16 %v2578
  %v2668 = vunpack.c.l.b16 %v2579
  %v2669 = vunpack.c.h.b16 %v2579
  %v2670 = vunpack.c.l.b16 %v2580
  %v2671 = vunpack.c.h.b16 %v2580
  %v2672 = vunpack.c.l.b16 %v2581
  %v2673 = vunpack.c.h.b16 %v2581
  %v2674 = vunpack.c.l.b16 %v2582
  %v2675 = vunpack.c.h.b16 %v2582
  %v2676 = vunpack.c.l.b16 %v2583
  %v2677 = vunpack.c.h.b16 %v2583
  %v2678 = vunpack.c.l.b16 %v2584
  %v2679 = vunpack.c.h.b16 %v2584
  %v2680 = vunpack.c.l.b16 %v2585
  %v2681 = vunpack.c.h.b16 %v2585
  %v2682 = vpack.c.b16 %v2622, %v2618
  %v2683 = vpack.c.b16 %v2623, %v2619
  %v2684 = vpack.c.b16 %v2624, %v2620
  %v2685 = vpack.c.b16 %v2625, %v2621
  %v2686 = vpack.c.b16 %v2630, %v2626
  %v2687 = vpack.c.b16 %v2631, %v2627
  %v2688 = vpack.c.b16 %v2632, %v2628
  %v2689 = vpack.c.b16 %v2633, %v2629
  %v2690 = vpack.c.b16 %v2638, %v2634
  %v2691 = vpack.c.b16 %v2639, %v2635
  %v2692 = vpack.c.b16 %v2640, %v2636
  %v2693 = vpack.c.b16 %v2641, %v2637
  %v2694 = vpack.c.b16 %v2646, %v2642
  %v2695 = vpack.c.b16 %v2647, %v2643
  %v2696 = vpack.c.b16 %v2648, %v2644
  %v2697 = vpack.c.b16 %v2649, %v2645
  %v2698 = vpack.c.b16 %v2654, %v2650
  %v2699 = vpack.c.b16 %v2655, %v2651
  %v2700 = vpack.c.b16 %v2656, %v2652
  %v2701 = vpack.c.b16 %v2657, %v2653
  %v2702 = vpack.c.b16 %v2662, %v2658
  %v2703 = vpack.c.b16 %v2663, %v2659
  %v2704 = vpack.c.b16 %v2664, %v2660
  %v2705 = vpack.c.b16 %v2665, %v2661
  %v2706 = vpack.c.b16 %v2670, %v2666
  %v2707 = vpack.c.b16 %v2671, %v2667
  %v2708 = vpack.c.b16 %v2672, %v2668
  %v2709 = vpack.c.b16 %v2673, %v2669
  %v2710 = vpack.c.b16 %v2678, %v2674
  %v2711 = vpack.c.b16 %v2679, %v2675
  %v2712 = vpack.c.b16 %v2680, %v2676
  %v2713 = vpack.c.b16 %v2681, %v2677
  %2746 = vmatprep.subr.bf16.mxu0 %v2683
  %2747 = vmatpush1.bf16.msra.mxu0 %v2682
  %2748 = vmatprep.subr.bf16.mxu0 %v2687
  %2749 = vmatpush1.bf16.msra.mxu0 %v2686
  %2750 = vmatprep.subr.bf16.mxu0 %v2691
  %2751 = vmatpush1.bf16.msra.mxu0 %v2690
  %2752 = vmatprep.subr.bf16.mxu0 %v2695
  %2753 = vmatpush1.bf16.msra.mxu0 %v2694
  %2754 = vmatprep.subr.bf16.mxu0 %v2699
  %2755 = vmatpush1.bf16.msra.mxu0 %v2698
  %2756 = vmatprep.subr.bf16.mxu0 %v2703
  %2757 = vmatpush1.bf16.msra.mxu0 %v2702
  %2758 = vmatprep.subr.bf16.mxu0 %v2707
  %2759 = vmatpush1.bf16.msra.mxu0 %v2706
  %2760 = vmatprep.subr.bf16.mxu0 %v2711
  %2761 = vmatpush1.bf16.msra.mxu0 %v2710
  %2762 = vmatprep.subr.bf16.mxu0 0
  %2763 = vmatpush1.bf16.msra.mxu0 0
  %2764 = vmatprep.subr.bf16.mxu0 0
  %2765 = vmatpush1.bf16.msra.mxu0 0
  %2766 = vmatprep.subr.bf16.mxu0 0
  %2767 = vmatpush1.bf16.msra.mxu0 0
  %2768 = vmatprep.subr.bf16.mxu0 0
  %2769 = vmatpush1.bf16.msra.mxu0 0
  %2770 = vmatprep.subr.bf16.mxu0 0
  %2771 = vmatpush1.bf16.msra.mxu0 0
  %2772 = vmatprep.subr.bf16.mxu0 0
  %2773 = vmatpush1.bf16.msra.mxu0 0
  %2774 = vmatprep.subr.bf16.mxu0 0
  %2775 = vmatpush1.bf16.msra.mxu0 0
  %2776 = vmatprep.subr.bf16.mxu0 0
  %2777 = vmatpush1.bf16.msra.mxu0 0
  %2778 = vmatprep.mubr.bf16.mxu0 0
  %2779 = vmatmul.mubr.bf16.gmra.mrb[0].mxu0 %v2553
  %v2780 = vpop.f32.mrb[0].mxu0
  %v2781 = vadd.f32 0.0, %v2780
  %v2782 = vpop.f32.mrb[0].mxu0
  %v2783 = vadd.f32 0.0, %v2782
  %v2784 = vpop.f32.mrb[0].mxu0
  %v2785 = vadd.f32 0.0, %v2784
  %v2786 = vpop.f32.mrb[0].mxu0
  %v2787 = vadd.f32 0.0, %v2786
  %2788 = vdwg.mxu0
  %2789 = vmatprep.subr.bf16.mxu0 %v2685
  %2790 = vmatpush1.bf16.msra.mxu0 %v2684
  %2791 = vmatprep.subr.bf16.mxu0 %v2689
  %2792 = vmatpush1.bf16.msra.mxu0 %v2688
  %2793 = vmatprep.subr.bf16.mxu0 %v2693
  %2794 = vmatpush1.bf16.msra.mxu0 %v2692
  %2795 = vmatprep.subr.bf16.mxu0 %v2697
  %2796 = vmatpush1.bf16.msra.mxu0 %v2696
  %2797 = vmatprep.subr.bf16.mxu0 %v2701
  %2798 = vmatpush1.bf16.msra.mxu0 %v2700
  %2799 = vmatprep.subr.bf16.mxu0 %v2705
  %2800 = vmatpush1.bf16.msra.mxu0 %v2704
  %2801 = vmatprep.subr.bf16.mxu0 %v2709
  %2802 = vmatpush1.bf16.msra.mxu0 %v2708
  %2803 = vmatprep.subr.bf16.mxu0 %v2713
  %2804 = vmatpush1.bf16.msra.mxu0 %v2712
  %2805 = vmatprep.subr.bf16.mxu0 0
  %2806 = vmatpush1.bf16.msra.mxu0 0
  %2807 = vmatprep.subr.bf16.mxu0 0
  %2808 = vmatpush1.bf16.msra.mxu0 0
  %2809 = vmatprep.subr.bf16.mxu0 0
  %2810 = vmatpush1.bf16.msra.mxu0 0
  %2811 = vmatprep.subr.bf16.mxu0 0
  %2812 = vmatpush1.bf16.msra.mxu0 0
  %2813 = vmatprep.subr.bf16.mxu0 0
  %2814 = vmatpush1.bf16.msra.mxu0 0
  %2815 = vmatprep.subr.bf16.mxu0 0
  %2816 = vmatpush1.bf16.msra.mxu0 0
  %2817 = vmatprep.subr.bf16.mxu0 0
  %2818 = vmatpush1.bf16.msra.mxu0 0
  %2819 = vmatprep.subr.bf16.mxu0 0
  %2820 = vmatpush1.bf16.msra.mxu0 0
  %2821 = vmatprep.mubr.bf16.mxu0 0
  %2822 = vmatmul.mubr.bf16.gmra.mrb[0].mxu0 %v2553
  %v2823 = vpop.f32.mrb[0].mxu0
  %v2824 = vadd.f32 0.0, %v2823
  %v2825 = vpop.f32.mrb[0].mxu0
  %v2826 = vadd.f32 0.0, %v2825
  %v2827 = vpop.f32.mrb[0].mxu0
  %v2828 = vadd.f32 0.0, %v2827
  %v2829 = vpop.f32.mrb[0].mxu0
  %v2830 = vadd.f32 0.0, %v2829
  %2831 = vdwg.mxu0
  %v2832 = vadd.f32 %v2545, %v2781
  %v2833 = vadd.f32 %v2546, %v2783
  %v2834 = vadd.f32 %v2547, %v2824
  %v2835 = vadd.f32 %v2548, %v2826
  %v2836 = vadd.f32 %v2549, %v2785
  %v2837 = vadd.f32 %v2550, %v2787
  %v2838 = vadd.f32 %v2551, %v2828
  %v2839 = vadd.f32 %v2552, %v2830
  %v2840 = vxor.u32 %v2832, 2147483648
  %v2841 = vxor.u32 %v2836, 2147483648
  %v2842 = vmul.f32 %v2840, 1.442695
  %v2843 = vpow.pop %v2842
  %v2844 = vmul.f32 %v2841, 1.442695
  %v2845 = vpow.pop %v2844
  %v2846 = vadd.f32 %v2843, 1.0
  %v2847 = vadd.f32 %v2845, 1.0
  %v2848 = vrcp.pop %v2846
  %v2849 = vmul.f32 1.0, %v2848
  %v2850 = vrcp.pop %v2847
  %v2851 = vmul.f32 1.0, %v2850
  %v2852 = vxor.u32 %v2833, 2147483648
  %v2853 = vxor.u32 %v2837, 2147483648
  %v2854 = vmul.f32 %v2852, 1.442695
  %v2855 = vpow.pop %v2854
  %v2856 = vmul.f32 %v2853, 1.442695
  %v2857 = vpow.pop %v2856
  %v2858 = vadd.f32 %v2855, 1.0
  %v2859 = vadd.f32 %v2857, 1.0
  %v2860 = vrcp.pop %v2858
  %v2861 = vmul.f32 1.0, %v2860
  %v2862 = vrcp.pop %v2859
  %v2863 = vmul.f32 1.0, %v2862
  %v2864 = vtanh.pop %v2834
  %v2865 = vtanh.pop %v2838
  %v2866 = vxor.u32 %v2835, 2147483648
  %v2867 = vxor.u32 %v2839, 2147483648
  %v2868 = vmul.f32 %v2866, 1.442695
  %v2869 = vpow.pop %v2868
  %v2870 = vmul.f32 %v2867, 1.442695
  %v2871 = vpow.pop %v2870
  %v2872 = vadd.f32 %v2869, 1.0
  %v2873 = vadd.f32 %v2871, 1.0
  %v2874 = vrcp.pop %v2872
  %v2875 = vmul.f32 1.0, %v2874
  %v2876 = vrcp.pop %v2873
  %v2877 = vmul.f32 1.0, %v2876
  %v2878 = vmul.f32 %v2861, %v2533
  %v2879 = vmul.f32 %v2863, %v2534
  %v2880 = vmul.f32 %v2849, %v2864
  %v2881 = vmul.f32 %v2851, %v2865
  %v2882 = vadd.f32 %v2878, %v2880
  %v2883 = vadd.f32 %v2879, %v2881
  %v2884 = vtanh.pop %v2882
  %v2885 = vtanh.pop %v2883
  %v2886 = vmul.f32 %v2875, %v2884
  %v2887 = vmul.f32 %v2877, %v2885
  %s2888 = scalar_lea.vmem %s4, 96
  %2889 = vst [vmem:[%s2888] sm:$0xff] %v2886
  %2890 = vst [vmem:[%s2888 + $0x8] sm:$0xff] %v2887
  %s2891 = smul.u32 14, 4
  %s2892 = smul.addr %s2891, 8
  %s2893 = scalar_lea.vmem [#allocation2], %s2892
  %v2894 = vld [vmem:[%s2893] sm:$0xff]
  %v2895 = vld [vmem:[%s2893 + $0x8] sm:$0xff]
  %v2896 = vld [vmem:[%s2893 + $0x10] sm:$0xff]
  %v2897 = vld [vmem:[%s2893 + $0x18] sm:$0xff]
  %v2898 = vld [vmem:[%s2893 + $0x20] sm:$0xff]
  %v2899 = vld [vmem:[%s2893 + $0x28] sm:$0xff]
  %v2900 = vld [vmem:[%s2893 + $0x30] sm:$0xff]
  %v2901 = vld [vmem:[%s2893 + $0x38] sm:$0xff]
  %v2902 = vpack.c.bf16 %v2887, %v2886
  %v2903 = vld [vmem:[%s2] sm:$0xff]
  %v2904 = vld [vmem:[%s2 + $0x8] sm:$0xff]
  %v2905 = vld [vmem:[%s2 + $0x10] sm:$0xff]
  %v2906 = vld [vmem:[%s2 + $0x18] sm:$0xff]
  %v2907 = vld [vmem:[%s2 + $0x20] sm:$0xff]
  %v2908 = vld [vmem:[%s2 + $0x28] sm:$0xff]
  %v2909 = vld [vmem:[%s2 + $0x30] sm:$0xff]
  %v2910 = vld [vmem:[%s2 + $0x38] sm:$0xff]
  %v2911 = vld [vmem:[%s2 + $0x40] sm:$0xff]
  %v2912 = vld [vmem:[%s2 + $0x48] sm:$0xff]
  %v2913 = vld [vmem:[%s2 + $0x50] sm:$0xff]
  %v2914 = vld [vmem:[%s2 + $0x58] sm:$0xff]
  %v2915 = vld [vmem:[%s2 + $0x60] sm:$0xff]
  %v2916 = vld [vmem:[%s2 + $0x68] sm:$0xff]
  %v2917 = vld [vmem:[%s2 + $0x70] sm:$0xff]
  %v2918 = vld [vmem:[%s2 + $0x78] sm:$0xff]
  %v2919 = vld [vmem:[%s2 + $0x80] sm:$0xff]
  %v2920 = vld [vmem:[%s2 + $0x88] sm:$0xff]
  %v2921 = vld [vmem:[%s2 + $0x90] sm:$0xff]
  %v2922 = vld [vmem:[%s2 + $0x98] sm:$0xff]
  %v2923 = vld [vmem:[%s2 + $0xa0] sm:$0xff]
  %v2924 = vld [vmem:[%s2 + $0xa8] sm:$0xff]
  %v2925 = vld [vmem:[%s2 + $0xb0] sm:$0xff]
  %v2926 = vld [vmem:[%s2 + $0xb8] sm:$0xff]
  %v2927 = vld [vmem:[%s2 + $0xc0] sm:$0xff]
  %v2928 = vld [vmem:[%s2 + $0xc8] sm:$0xff]
  %v2929 = vld [vmem:[%s2 + $0xd0] sm:$0xff]
  %v2930 = vld [vmem:[%s2 + $0xd8] sm:$0xff]
  %v2931 = vld [vmem:[%s2 + $0xe0] sm:$0xff]
  %v2932 = vld [vmem:[%s2 + $0xe8] sm:$0xff]
  %v2933 = vld [vmem:[%s2 + $0xf0] sm:$0xff]
  %v2934 = vld [vmem:[%s2 + $0xf8] sm:$0xff]
  %v2967 = vunpack.c.l.b16 %v2903
  %v2968 = vunpack.c.h.b16 %v2903
  %v2969 = vunpack.c.l.b16 %v2904
  %v2970 = vunpack.c.h.b16 %v2904
  %v2971 = vunpack.c.l.b16 %v2905
  %v2972 = vunpack.c.h.b16 %v2905
  %v2973 = vunpack.c.l.b16 %v2906
  %v2974 = vunpack.c.h.b16 %v2906
  %v2975 = vunpack.c.l.b16 %v2907
  %v2976 = vunpack.c.h.b16 %v2907
  %v2977 = vunpack.c.l.b16 %v2908
  %v2978 = vunpack.c.h.b16 %v2908
  %v2979 = vunpack.c.l.b16 %v2909
  %v2980 = vunpack.c.h.b16 %v2909
  %v2981 = vunpack.c.l.b16 %v2910
  %v2982 = vunpack.c.h.b16 %v2910
  %v2983 = vunpack.c.l.b16 %v2911
  %v2984 = vunpack.c.h.b16 %v2911
  %v2985 = vunpack.c.l.b16 %v2912
  %v2986 = vunpack.c.h.b16 %v2912
  %v2987 = vunpack.c.l.b16 %v2913
  %v2988 = vunpack.c.h.b16 %v2913
  %v2989 = vunpack.c.l.b16 %v2914
  %v2990 = vunpack.c.h.b16 %v2914
  %v2991 = vunpack.c.l.b16 %v2915
  %v2992 = vunpack.c.h.b16 %v2915
  %v2993 = vunpack.c.l.b16 %v2916
  %v2994 = vunpack.c.h.b16 %v2916
  %v2995 = vunpack.c.l.b16 %v2917
  %v2996 = vunpack.c.h.b16 %v2917
  %v2997 = vunpack.c.l.b16 %v2918
  %v2998 = vunpack.c.h.b16 %v2918
  %v2999 = vunpack.c.l.b16 %v2919
  %v3000 = vunpack.c.h.b16 %v2919
  %v3001 = vunpack.c.l.b16 %v2920
  %v3002 = vunpack.c.h.b16 %v2920
  %v3003 = vunpack.c.l.b16 %v2921
  %v3004 = vunpack.c.h.b16 %v2921
  %v3005 = vunpack.c.l.b16 %v2922
  %v3006 = vunpack.c.h.b16 %v2922
  %v3007 = vunpack.c.l.b16 %v2923
  %v3008 = vunpack.c.h.b16 %v2923
  %v3009 = vunpack.c.l.b16 %v2924
  %v3010 = vunpack.c.h.b16 %v2924
  %v3011 = vunpack.c.l.b16 %v2925
  %v3012 = vunpack.c.h.b16 %v2925
  %v3013 = vunpack.c.l.b16 %v2926
  %v3014 = vunpack.c.h.b16 %v2926
  %v3015 = vunpack.c.l.b16 %v2927
  %v3016 = vunpack.c.h.b16 %v2927
  %v3017 = vunpack.c.l.b16 %v2928
  %v3018 = vunpack.c.h.b16 %v2928
  %v3019 = vunpack.c.l.b16 %v2929
  %v3020 = vunpack.c.h.b16 %v2929
  %v3021 = vunpack.c.l.b16 %v2930
  %v3022 = vunpack.c.h.b16 %v2930
  %v3023 = vunpack.c.l.b16 %v2931
  %v3024 = vunpack.c.h.b16 %v2931
  %v3025 = vunpack.c.l.b16 %v2932
  %v3026 = vunpack.c.h.b16 %v2932
  %v3027 = vunpack.c.l.b16 %v2933
  %v3028 = vunpack.c.h.b16 %v2933
  %v3029 = vunpack.c.l.b16 %v2934
  %v3030 = vunpack.c.h.b16 %v2934
  %v3031 = vpack.c.b16 %v2971, %v2967
  %v3032 = vpack.c.b16 %v2972, %v2968
  %v3033 = vpack.c.b16 %v2973, %v2969
  %v3034 = vpack.c.b16 %v2974, %v2970
  %v3035 = vpack.c.b16 %v2979, %v2975
  %v3036 = vpack.c.b16 %v2980, %v2976
  %v3037 = vpack.c.b16 %v2981, %v2977
  %v3038 = vpack.c.b16 %v2982, %v2978
  %v3039 = vpack.c.b16 %v2987, %v2983
  %v3040 = vpack.c.b16 %v2988, %v2984
  %v3041 = vpack.c.b16 %v2989, %v2985
  %v3042 = vpack.c.b16 %v2990, %v2986
  %v3043 = vpack.c.b16 %v2995, %v2991
  %v3044 = vpack.c.b16 %v2996, %v2992
  %v3045 = vpack.c.b16 %v2997, %v2993
  %v3046 = vpack.c.b16 %v2998, %v2994
  %v3047 = vpack.c.b16 %v3003, %v2999
  %v3048 = vpack.c.b16 %v3004, %v3000
  %v3049 = vpack.c.b16 %v3005, %v3001
  %v3050 = vpack.c.b16 %v3006, %v3002
  %v3051 = vpack.c.b16 %v3011, %v3007
  %v3052 = vpack.c.b16 %v3012, %v3008
  %v3053 = vpack.c.b16 %v3013, %v3009
  %v3054 = vpack.c.b16 %v3014, %v3010
  %v3055 = vpack.c.b16 %v3019, %v3015
  %v3056 = vpack.c.b16 %v3020, %v3016
  %v3057 = vpack.c.b16 %v3021, %v3017
  %v3058 = vpack.c.b16 %v3022, %v3018
  %v3059 = vpack.c.b16 %v3027, %v3023
  %v3060 = vpack.c.b16 %v3028, %v3024
  %v3061 = vpack.c.b16 %v3029, %v3025
  %v3062 = vpack.c.b16 %v3030, %v3026
  %3095 = vmatprep.subr.bf16.mxu0 %v3032
  %3096 = vmatpush1.bf16.msra.mxu0 %v3031
  %3097 = vmatprep.subr.bf16.mxu0 %v3036
  %3098 = vmatpush1.bf16.msra.mxu0 %v3035
  %3099 = vmatprep.subr.bf16.mxu0 %v3040
  %3100 = vmatpush1.bf16.msra.mxu0 %v3039
  %3101 = vmatprep.subr.bf16.mxu0 %v3044
  %3102 = vmatpush1.bf16.msra.mxu0 %v3043
  %3103 = vmatprep.subr.bf16.mxu0 %v3048
  %3104 = vmatpush1.bf16.msra.mxu0 %v3047
  %3105 = vmatprep.subr.bf16.mxu0 %v3052
  %3106 = vmatpush1.bf16.msra.mxu0 %v3051
  %3107 = vmatprep.subr.bf16.mxu0 %v3056
  %3108 = vmatpush1.bf16.msra.mxu0 %v3055
  %3109 = vmatprep.subr.bf16.mxu0 %v3060
  %3110 = vmatpush1.bf16.msra.mxu0 %v3059
  %3111 = vmatprep.subr.bf16.mxu0 0
  %3112 = vmatpush1.bf16.msra.mxu0 0
  %3113 = vmatprep.subr.bf16.mxu0 0
  %3114 = vmatpush1.bf16.msra.mxu0 0
  %3115 = vmatprep.subr.bf16.mxu0 0
  %3116 = vmatpush1.bf16.msra.mxu0 0
  %3117 = vmatprep.subr.bf16.mxu0 0
  %3118 = vmatpush1.bf16.msra.mxu0 0
  %3119 = vmatprep.subr.bf16.mxu0 0
  %3120 = vmatpush1.bf16.msra.mxu0 0
  %3121 = vmatprep.subr.bf16.mxu0 0
  %3122 = vmatpush1.bf16.msra.mxu0 0
  %3123 = vmatprep.subr.bf16.mxu0 0
  %3124 = vmatpush1.bf16.msra.mxu0 0
  %3125 = vmatprep.subr.bf16.mxu0 0
  %3126 = vmatpush1.bf16.msra.mxu0 0
  %3127 = vmatprep.mubr.bf16.mxu0 0
  %3128 = vmatmul.mubr.bf16.gmra.mrb[0].mxu0 %v2902
  %v3129 = vpop.f32.mrb[0].mxu0
  %v3130 = vadd.f32 0.0, %v3129
  %v3131 = vpop.f32.mrb[0].mxu0
  %v3132 = vadd.f32 0.0, %v3131
  %v3133 = vpop.f32.mrb[0].mxu0
  %v3134 = vadd.f32 0.0, %v3133
  %v3135 = vpop.f32.mrb[0].mxu0
  %v3136 = vadd.f32 0.0, %v3135
  %3137 = vdwg.mxu0
  %3138 = vmatprep.subr.bf16.mxu0 %v3034
  %3139 = vmatpush1.bf16.msra.mxu0 %v3033
  %3140 = vmatprep.subr.bf16.mxu0 %v3038
  %3141 = vmatpush1.bf16.msra.mxu0 %v3037
  %3142 = vmatprep.subr.bf16.mxu0 %v3042
  %3143 = vmatpush1.bf16.msra.mxu0 %v3041
  %3144 = vmatprep.subr.bf16.mxu0 %v3046
  %3145 = vmatpush1.bf16.msra.mxu0 %v3045
  %3146 = vmatprep.subr.bf16.mxu0 %v3050
  %3147 = vmatpush1.bf16.msra.mxu0 %v3049
  %3148 = vmatprep.subr.bf16.mxu0 %v3054
  %3149 = vmatpush1.bf16.msra.mxu0 %v3053
  %3150 = vmatprep.subr.bf16.mxu0 %v3058
  %3151 = vmatpush1.bf16.msra.mxu0 %v3057
  %3152 = vmatprep.subr.bf16.mxu0 %v3062
  %3153 = vmatpush1.bf16.msra.mxu0 %v3061
  %3154 = vmatprep.subr.bf16.mxu0 0
  %3155 = vmatpush1.bf16.msra.mxu0 0
  %3156 = vmatprep.subr.bf16.mxu0 0
  %3157 = vmatpush1.bf16.msra.mxu0 0
  %3158 = vmatprep.subr.bf16.mxu0 0
  %3159 = vmatpush1.bf16.msra.mxu0 0
  %3160 = vmatprep.subr.bf16.mxu0 0
  %3161 = vmatpush1.bf16.msra.mxu0 0
  %3162 = vmatprep.subr.bf16.mxu0 0
  %3163 = vmatpush1.bf16.msra.mxu0 0
  %3164 = vmatprep.subr.bf16.mxu0 0
  %3165 = vmatpush1.bf16.msra.mxu0 0
  %3166 = vmatprep.subr.bf16.mxu0 0
  %3167 = vmatpush1.bf16.msra.mxu0 0
  %3168 = vmatprep.subr.bf16.mxu0 0
  %3169 = vmatpush1.bf16.msra.mxu0 0
  %3170 = vmatprep.mubr.bf16.mxu0 0
  %3171 = vmatmul.mubr.bf16.gmra.mrb[0].mxu0 %v2902
  %v3172 = vpop.f32.mrb[0].mxu0
  %v3173 = vadd.f32 0.0, %v3172
  %v3174 = vpop.f32.mrb[0].mxu0
  %v3175 = vadd.f32 0.0, %v3174
  %v3176 = vpop.f32.mrb[0].mxu0
  %v3177 = vadd.f32 0.0, %v3176
  %v3178 = vpop.f32.mrb[0].mxu0
  %v3179 = vadd.f32 0.0, %v3178
  %3180 = vdwg.mxu0
  %v3181 = vadd.f32 %v2894, %v3130
  %v3182 = vadd.f32 %v2895, %v3132
  %v3183 = vadd.f32 %v2896, %v3173
  %v3184 = vadd.f32 %v2897, %v3175
  %v3185 = vadd.f32 %v2898, %v3134
  %v3186 = vadd.f32 %v2899, %v3136
  %v3187 = vadd.f32 %v2900, %v3177
  %v3188 = vadd.f32 %v2901, %v3179
  %v3189 = vxor.u32 %v3181, 2147483648
  %v3190 = vxor.u32 %v3185, 2147483648
  %v3191 = vmul.f32 %v3189, 1.442695
  %v3192 = vpow.pop %v3191
  %v3193 = vmul.f32 %v3190, 1.442695
  %v3194 = vpow.pop %v3193
  %v3195 = vadd.f32 %v3192, 1.0
  %v3196 = vadd.f32 %v3194, 1.0
  %v3197 = vrcp.pop %v3195
  %v3198 = vmul.f32 1.0, %v3197
  %v3199 = vrcp.pop %v3196
  %v3200 = vmul.f32 1.0, %v3199
  %v3201 = vxor.u32 %v3182, 2147483648
  %v3202 = vxor.u32 %v3186, 2147483648
  %v3203 = vmul.f32 %v3201, 1.442695
  %v3204 = vpow.pop %v3203
  %v3205 = vmul.f32 %v3202, 1.442695
  %v3206 = vpow.pop %v3205
  %v3207 = vadd.f32 %v3204, 1.0
  %v3208 = vadd.f32 %v3206, 1.0
  %v3209 = vrcp.pop %v3207
  %v3210 = vmul.f32 1.0, %v3209
  %v3211 = vrcp.pop %v3208
  %v3212 = vmul.f32 1.0, %v3211
  %v3213 = vtanh.pop %v3183
  %v3214 = vtanh.pop %v3187
  %v3215 = vxor.u32 %v3184, 2147483648
  %v3216 = vxor.u32 %v3188, 2147483648
  %v3217 = vmul.f32 %v3215, 1.442695
  %v3218 = vpow.pop %v3217
  %v3219 = vmul.f32 %v3216, 1.442695
  %v3220 = vpow.pop %v3219
  %v3221 = vadd.f32 %v3218, 1.0
  %v3222 = vadd.f32 %v3220, 1.0
  %v3223 = vrcp.pop %v3221
  %v3224 = vmul.f32 1.0, %v3223
  %v3225 = vrcp.pop %v3222
  %v3226 = vmul.f32 1.0, %v3225
  %v3227 = vmul.f32 %v3210, %v2882
  %v3228 = vmul.f32 %v3212, %v2883
  %v3229 = vmul.f32 %v3198, %v3213
  %v3230 = vmul.f32 %v3200, %v3214
  %v3231 = vadd.f32 %v3227, %v3229
  %v3232 = vadd.f32 %v3228, %v3230
  %v3233 = vtanh.pop %v3231
  %v3234 = vtanh.pop %v3232
  %v3235 = vmul.f32 %v3224, %v3233
  %v3236 = vmul.f32 %v3226, %v3234
  %s3237 = scalar_lea.vmem %s4, 112
  %3238 = vst [vmem:[%s3237] sm:$0xff] %v3235
  %3239 = vst [vmem:[%s3237 + $0x8] sm:$0xff] %v3236
  // Predicated region
  $region22: #{lstm_encoder_forward.1} parent=0 // pred_check
    %p3240 = pneg %p20
  $region23: #{lstm_encoder_forward.1} parent=0 // pred_check_branch
    %3242 = sbr.rel (%p3240) target = $region25
  $region24: #{lstm_encoder_forward.1} parent=0 // pred_region
    %3243 = vst [vmem:[%s5] sm:$0xff] %v3231
    %3244 = vst [vmem:[%s5 + $0x8] sm:$0xff] %v3232
  $region25: #{lstm_encoder_forward.1} parent=0 // pred_fallthru
    _
  %3245 = vst [vmem:[#allocation3] sm:$0xff] %v3235
  %3246 = vst [vmem:[#allocation3 + $0x8] sm:$0xff] %v3236
  %3247 = vst [vmem:[#allocation4] sm:$0xff] %v3231
  %3248 = vst [vmem:[#allocation4 + $0x8] sm:$0xff] %v3232
  // Predicated region
  $region26: #{lstm_encoder_forward.1} parent=0 // pred_check
    _
  $region27: #{lstm_encoder_forward.1} parent=0 // pred_check_branch
    %3250 = sbr.rel (0) target = $region29
  $region28: #{lstm_encoder_forward.1} parent=0 // pred_region
    _
  $region29: #{lstm_encoder_forward.1} parent=0 // pred_fallthru
    _
  // Predicated region
  $region30: #{lstm_encoder_forward.1} parent=0 // pred_check
    _
  $region31: #{lstm_encoder_forward.1} parent=0 // pred_check_branch
    %3252 = sbr.rel (0) target = $region33
  $region32: #{lstm_encoder_forward.1} parent=0 // pred_region
    _
  $region33: #{lstm_encoder_forward.1} parent=0 // pred_fallthru
    _
  // Predicated region
  $region34: #{lstm_encoder_forward.1} parent=0 // pred_check
    _
  $region35: #{lstm_encoder_forward.1} parent=0 // pred_check_branch
    %3254 = sbr.rel (0) target = $region37
  $region36: #{lstm_encoder_forward.1} parent=0 // pred_region
    _
  $region37: #{lstm_encoder_forward.1} parent=0 // pred_fallthru
    _
  // Predicated region
  $region38: #{lstm_encoder_forward.1} parent=0 // pred_check
    _
  $region39: #{lstm_encoder_forward.1} parent=0 // pred_check_branch
    %3256 = sbr.rel (0) target = $region41
  $region40: #{lstm_encoder_forward.1} parent=0 // pred_region
    _
  $region41: #{lstm_encoder_forward.1} parent=0 // pred_fallthru
    _

</llo_original>
